<compile_context>
chip_gen: v7x
topology: tpu7x:2x2x1
jax: 0.10.0
libtpu: 0.0.40
codegen_flags: <defaults>
</compile_context>

<pallas_src>
import functools

import jax
import jax.numpy as jnp
from jax.experimental import pallas as pl
from jax.experimental.pallas import tpu as pltpu


# ----------------------------------------------------------------------------- kernel
def _overlap_decoder_kernel(xT_ref, pool_ref,
                            w1_ref, w2_ref, b2_ref,
                            w3_ref, b3_ref,
                            w4_ref, b4_ref,
                            w5_ref, b5_ref,
                            out_ref):
    xT = xT_ref[0]            # (C, TN)   bf16, channels-major point tile
    pool = pool_ref[0]        # (1024, 1) f32, precomputed W1b @ maxpool(pt1feat) + b1

    # layer 1: Conv1d(2C -> 1024, k=1). pt2 half on the MXU; the pooled half is the
    # precomputed per-batch column broadcast across the TN lanes.
    h = jnp.dot(w1_ref[...], xT, preferred_element_type=jnp.float32) + pool
    h = jnp.maximum(h, 0.0).astype(jnp.bfloat16)                      # (1024, TN)

    h = jnp.dot(w2_ref[...], h, preferred_element_type=jnp.float32) + b2_ref[...]
    h = jnp.maximum(h, 0.0).astype(jnp.bfloat16)                      # (512, TN)

    h = jnp.dot(w3_ref[...], h, preferred_element_type=jnp.float32) + b3_ref[...]
    h = jnp.maximum(h, 0.0).astype(jnp.bfloat16)                      # (256, TN)

    h = jnp.dot(w4_ref[...], h, preferred_element_type=jnp.float32) + b4_ref[...]
    h = jnp.maximum(h, 0.0).astype(jnp.bfloat16)                      # (128, TN)

    # layer 5 (128 -> 1) on the MXU: (1,128) @ (128,TN) -> lane-dense (1,TN) logits.
    z = jnp.dot(w5_ref[...], h, preferred_element_type=jnp.float32) + b5_ref[...]

    # sigmoid is monotone with sigmoid(0) = 0.5, so sigmoid(z) > 0.5  <=>  z > 0.
    out_ref[...] = (z > 0.0).astype(jnp.int32)[None]                  # (1, 1, TN)


# ------------------------------------------------------------------------ tiling logic
def _ceil_to(x, m):
    return ((x + m - 1) // m) * m


_VMEM_CAP_BYTES = None


def _vmem_capacity_bytes():
    """One-time device query, kept out of the jitted hot path."""
    global _VMEM_CAP_BYTES
    if _VMEM_CAP_BYTES is None:
        try:
            _VMEM_CAP_BYTES = int(pltpu.get_tpu_info().vmem_capacity_bytes)
        except Exception:
            _VMEM_CAP_BYTES = 64 * 1024 * 1024   # conservative: v7x per-TC VMEM
    return _VMEM_CAP_BYTES


def _choose_tiling(B, N):
    """Returns (tn, n_pad, vmem_limit_bytes)."""
    n_pad = _ceil_to(N, 128)
    # TN = 2048 only where VMEM is plentiful (v5e/v6e: 128 MiB); cap at 1024 on v7x.
    tn_cap = 2048 if _vmem_capacity_bytes() >= 100 * 1024 * 1024 else 1024
    tn = 128
    for cand in (2048, 1024, 512, 256):
        if cand <= tn_cap and n_pad % cand == 0:
            tn = cand
            break
    # Guarantee >= 2 "parallel" grid steps when possible so both v7x TCs get work.
    while B * (n_pad // tn) < 2 and tn > 128:
        tn //= 2
    vmem_limit = (48 if tn >= 2048 else 32) * 1024 * 1024
    return tn, n_pad, vmem_limit


# --------------------------------------------------------------------------- forward
@functools.partial(jax.jit, static_argnames=("tn", "n_pad", "vmem_limit"))
def _forward_impl(pt1feat, pt2feat, params, *, tn, n_pad, vmem_limit):
    B, N, C = pt1feat.shape
    w1, b1, w2, b2, w3, b3, w4, b4, w5, b5 = params
    bf = jnp.bfloat16

    # Conv1d(k=1) == per-point dense; keep (out, in) orientation so the kernel computes
    # W @ X with X channels-major — exactly the NCW Conv1d layout.
    w1a = w1[:, :C, 0].astype(bf)                 # (1024, C)   pt2 half of layer 1
    w1b = w1[:, C:, 0].astype(bf)                 # (1024, C)   pooled half of layer 1
    w2m = w2[..., 0].astype(bf)                   # (512, 1024)
    w3m = w3[..., 0].astype(bf)                   # (256, 512)
    w4m = w4[..., 0].astype(bf)                   # (128, 256)
    w5r = w5[:, :, 0].astype(bf)                  # (1, 128)
    b2c = b2.reshape(-1, 1).astype(jnp.float32)   # (512, 1)
    b3c = b3.reshape(-1, 1).astype(jnp.float32)   # (256, 1)
    b4c = b4.reshape(-1, 1).astype(jnp.float32)   # (128, 1)
    b5c = b5.reshape(1, 1).astype(jnp.float32)    # (1, 1)
    h1 = w1a.shape[0]

    # torch.max(pt1feat, 1)[0]: the only cross-N dependency. Fold the pooled half of
    # layer 1 here so the kernel never sees pt1feat.
    pool = jnp.max(pt1feat, axis=1)                                             # (B, C)
    pool_proj = (jnp.einsum('oc,bc->bo', w1b, pool.astype(bf),
                            preferred_element_type=jnp.float32)
                 + b1[None, :].astype(jnp.float32))[:, :, None]                 # (B, 1024, 1)

    # Cast before the transpose so the layout change moves bf16 (half the HBM bytes).
    xT = jnp.transpose(pt2feat.astype(bf), (0, 2, 1))                           # (B, C, N)
    if n_pad != N:
        xT = jnp.pad(xT, ((0, 0), (0, 0), (0, n_pad - N)))

    def const_spec(arr):                      # grid-invariant 2-D weights/biases
        return pl.BlockSpec(arr.shape, lambda b, n: (0, 0))

    grid_spec = pltpu.PrefetchScalarGridSpec(
        num_scalar_prefetch=0,
        grid=(B, n_pad // tn),
        in_specs=[
            pl.BlockSpec((1, C, tn), lambda b, n: (b, 0, n)),     # pt2feat^T tile
            pl.BlockSpec((1, h1, 1), lambda b, n: (b, 0, 0)),     # per-batch pooled column
            const_spec(w1a),
            const_spec(w2m), const_spec(b2c),
            const_spec(w3m), const_spec(b3c),
            const_spec(w4m), const_spec(b4c),
            const_spec(w5r), const_spec(b5c),
        ],
        out_specs=pl.BlockSpec((1, 1, tn), lambda b, n: (b, 0, n)),
    )

    out = pl.pallas_call(
        _overlap_decoder_kernel,
        out_shape=jax.ShapeDtypeStruct((B, 1, n_pad), jnp.int32),
        grid_spec=grid_spec,
        compiler_params=pltpu.CompilerParams(
            dimension_semantics=("parallel", "parallel"),
            vmem_limit_bytes=vmem_limit,
        ),
    )(xT, pool_proj, w1a, w2m, b2c, w3m, b3c, w4m, b4c, w5r, b5c)

    # torch returns int64 from torch.where(mask > 0.5, 1, 0); we return int32.
    return out[:, 0, :N]                                                        # (B, N)


def overlap_decoder_forward(pt1feat, pt2feat, params):
    B, N, _ = pt1feat.shape
    tn, n_pad, vmem_limit = _choose_tiling(B, N)     # pure-Python, device query cached
    return _forward_impl(pt1feat, pt2feat, tuple(params),
                         tn=tn, n_pad=n_pad, vmem_limit=vmem_limit)


# ----------------------------------------------------------------------- params / refs
def init_params(key, embed_dim):
    """Deterministic synthetic params with the Conv1d shapes from the module __init__."""
    layer_dims = [(1024, embed_dim * 2), (512, 1024), (256, 512), (128, 256), (1, 128)]
    params = []
    for out_c, in_c in layer_dims:
        kw, kb, key = jax.random.split(key, 3)
        w = jax.random.normal(kw, (out_c, in_c, 1), jnp.float32) / jnp.sqrt(in_c)  # Conv1d weight
        b = jax.random.normal(kb, (out_c,), jnp.float32) * 0.05                    # Conv1d bias
        params += [w, b]
    return params


def overlap_decoder_reference(pt1feat, pt2feat, params):
    """Pure-JAX f32 reference mirroring the PyTorch forward."""
    pool = jnp.max(pt1feat, axis=1, keepdims=True)                               # (B,1,C)
    feat = jnp.concatenate([pt2feat, jnp.broadcast_to(pool, pt2feat.shape)], 2)  # (B,N,2C)
    w1, b1, w2, b2, w3, b3, w4, b4, w5, b5 = params
    h = feat
    for w, b, relu in [(w1, b1, True), (w2, b2, True), (w3, b3, True),
                       (w4, b4, True), (w5, b5, False)]:
        h = jnp.einsum('bnc,oc->bno', h, w[..., 0],
                       preferred_element_type=jnp.float32, precision='highest') + b
        if relu:
            h = jnp.maximum(h, 0.0)
    mask = jax.nn.sigmoid(h)[..., 0]
    return jnp.where(mask > 0.5, 1, 0).astype(jnp.int32)


def overlap_decoder_reference_bf16(pt1feat, pt2feat, params):
    """Reference applying the same bf16 quantization as the kernel (tight agreement check)."""
    B, N, C = pt1feat.shape
    w1, b1, w2, b2, w3, b3, w4, b4, w5, b5 = params
    bf = jnp.bfloat16
    pool = jnp.max(pt1feat, axis=1)                                               # (B, C)
    pool_proj = jnp.einsum('oc,bc->bo', w1[:, C:, 0].astype(bf), pool.astype(bf),
                           preferred_element_type=jnp.float32) + b1               # (B, 1024)
    h = (jnp.einsum('oc,bnc->bno', w1[:, :C, 0].astype(bf), pt2feat.astype(bf),
                    preferred_element_type=jnp.float32) + pool_proj[:, None, :])
    h = jnp.maximum(h, 0.0).astype(bf)
    for w, b in ((w2, b2), (w3, b3), (w4, b4)):
        h = jnp.einsum('oc,bnc->bno', w[..., 0].astype(bf), h,
                       preferred_element_type=jnp.float32) + b
        h = jnp.maximum(h, 0.0).astype(bf)
    z = jnp.einsum('oc,bnc->bno', w5[..., 0].astype(bf), h,
                   preferred_element_type=jnp.float32)[..., 0] + b5[0]
    return (z > 0.0).astype(jnp.int32)


if __name__ == "__main__":
    B, N, EMBED = 2, 64, 32   # small embed_dim; hidden sizes (1024/512/256/128/1) per module
    key = jax.random.PRNGKey(0)
    k1, k2, kp = jax.random.split(key, 3)
    pt1feat = jax.random.normal(k1, (B, N, EMBED), jnp.float32)
    pt2feat = jax.random.normal(k2, (B, N, EMBED), jnp.float32)
    params = init_params(kp, EMBED)

    out = overlap_decoder_forward(pt1feat, pt2feat, params)
    out = jax.block_until_ready(out)

    assert out.shape == (B, N) and out.dtype == jnp.int32

    ref_bf16 = overlap_decoder_reference_bf16(pt1feat, pt2feat, params)
    ref_f32 = overlap_decoder_reference(pt1feat, pt2feat, params)
    agree_bf16 = float(jnp.mean((out == ref_bf16).astype(jnp.float32)))
    agree_f32 = float(jnp.mean((out == ref_f32).astype(jnp.float32)))
    assert agree_bf16 >= 0.95, f"bf16-matched reference agreement too low: {agree_bf16}"
    assert agree_f32 >= 0.85, f"f32 reference agreement too low: {agree_f32}"
    print("KERNEL_OK")
</pallas_src>

<mosaic_0001>
module attributes {stable_mosaic.version = 11 : i64} {
  func.func @_overlap_decoder_kernel(%arg0: i32, %arg1: i32, %arg2: memref<1x32x128xbf16, #tpu.memory_space<vmem>>, %arg3: memref<1x1024x1xf32, #tpu.memory_space<vmem>>, %arg4: memref<1024x32xbf16, #tpu.memory_space<vmem>>, %arg5: memref<512x1024xbf16, #tpu.memory_space<vmem>>, %arg6: memref<512x1xf32, #tpu.memory_space<vmem>>, %arg7: memref<256x512xbf16, #tpu.memory_space<vmem>>, %arg8: memref<256x1xf32, #tpu.memory_space<vmem>>, %arg9: memref<128x256xbf16, #tpu.memory_space<vmem>>, %arg10: memref<128x1xf32, #tpu.memory_space<vmem>>, %arg11: memref<1x128xbf16, #tpu.memory_space<vmem>>, %arg12: memref<1x1xf32, #tpu.memory_space<vmem>>, %arg13: memref<1x1x128xi32, #tpu.memory_space<vmem>>) attributes {dimension_semantics = [#tpu.dimension_semantics<parallel>, #tpu.dimension_semantics<parallel>], iteration_bounds = array<i64: 2, 1>, scalar_prefetch = 0 : i64, scratch_operands = 0 : i64, tpu.core_type = #tpu.core_type<tc>, window_params = [{transform_indices = @transform_0, window_bounds = array<i64: 1, 32, 128>}, {transform_indices = @transform_1, window_bounds = array<i64: 1, 1024, 1>}, {pipeline_mode = #tpu.pipeline_mode<synchronous>, transform_indices = @transform_2, window_bounds = array<i64: 1024, 32>}, {pipeline_mode = #tpu.pipeline_mode<synchronous>, transform_indices = @transform_3, window_bounds = array<i64: 512, 1024>}, {pipeline_mode = #tpu.pipeline_mode<synchronous>, transform_indices = @transform_4, window_bounds = array<i64: 512, 1>}, {pipeline_mode = #tpu.pipeline_mode<synchronous>, transform_indices = @transform_5, window_bounds = array<i64: 256, 512>}, {pipeline_mode = #tpu.pipeline_mode<synchronous>, transform_indices = @transform_6, window_bounds = array<i64: 256, 1>}, {pipeline_mode = #tpu.pipeline_mode<synchronous>, transform_indices = @transform_7, window_bounds = array<i64: 128, 256>}, {pipeline_mode = #tpu.pipeline_mode<synchronous>, transform_indices = @transform_8, window_bounds = array<i64: 128, 1>}, {pipeline_mode = #tpu.pipeline_mode<synchronous>, transform_indices = @transform_9, window_bounds = array<i64: 1, 128>}, {pipeline_mode = #tpu.pipeline_mode<synchronous>, transform_indices = @transform_10, window_bounds = array<i64: 1, 1>}, {transform_indices = @transform_11, window_bounds = array<i64: 1, 1, 128>}]} {
    %c0 = arith.constant 0 : index
    %c0_0 = arith.constant 0 : index
    %c0_1 = arith.constant 0 : index
    %0 = vector.load %arg2[%c0, %c0_0, %c0_1] : memref<1x32x128xbf16, #tpu.memory_space<vmem>>, vector<1x32x128xbf16>
    %1 = vector.shape_cast %0 : vector<1x32x128xbf16> to vector<32x128xbf16>
    %c0_2 = arith.constant 0 : index
    %c0_3 = arith.constant 0 : index
    %c0_4 = arith.constant 0 : index
    %2 = vector.load %arg3[%c0_2, %c0_3, %c0_4] : memref<1x1024x1xf32, #tpu.memory_space<vmem>>, vector<1x1024x1xf32>
    %3 = vector.shape_cast %2 : vector<1x1024x1xf32> to vector<1024x1xf32>
    %c0_5 = arith.constant 0 : index
    %c0_6 = arith.constant 0 : index
    %4 = vector.load %arg4[%c0_5, %c0_6] : memref<1024x32xbf16, #tpu.memory_space<vmem>>, vector<1024x32xbf16>
    %cst = arith.constant dense<0.000000e+00> : vector<1024x128xf32>
    %5 = tpu.matmul %4, %1, %cst {dimension_numbers = #tpu.dot_dimension_numbers<[1], [0], [0], [1], [0, 0, 1, 1], [], []>} : vector<1024x32xbf16>, vector<32x128xbf16>, vector<1024x128xf32> -> vector<1024x128xf32>
    %6 = vector.broadcast %3 : vector<1024x1xf32> to vector<1024x128xf32>
    %7 = arith.addf %5, %6 : vector<1024x128xf32>
    %cst_7 = arith.constant 0.000000e+00 : f32
    %8 = vector.broadcast %cst_7 : f32 to vector<1024x128xf32>
    %9 = arith.maximumf %7, %8 : vector<1024x128xf32>
    %10 = arith.truncf %9 : vector<1024x128xf32> to vector<1024x128xbf16>
    %c0_8 = arith.constant 0 : index
    %c0_9 = arith.constant 0 : index
    %11 = vector.load %arg5[%c0_8, %c0_9] : memref<512x1024xbf16, #tpu.memory_space<vmem>>, vector<512x1024xbf16>
    %cst_10 = arith.constant dense<0.000000e+00> : vector<512x128xf32>
    %12 = tpu.matmul %11, %10, %cst_10 {dimension_numbers = #tpu.dot_dimension_numbers<[1], [0], [0], [1], [0, 0, 1, 1], [], []>} : vector<512x1024xbf16>, vector<1024x128xbf16>, vector<512x128xf32> -> vector<512x128xf32>
    %c0_11 = arith.constant 0 : index
    %c0_12 = arith.constant 0 : index
    %13 = vector.load %arg6[%c0_11, %c0_12] : memref<512x1xf32, #tpu.memory_space<vmem>>, vector<512x1xf32>
    %14 = vector.broadcast %13 : vector<512x1xf32> to vector<512x128xf32>
    %15 = arith.addf %12, %14 : vector<512x128xf32>
    %cst_13 = arith.constant 0.000000e+00 : f32
    %16 = vector.broadcast %cst_13 : f32 to vector<512x128xf32>
    %17 = arith.maximumf %15, %16 : vector<512x128xf32>
    %18 = arith.truncf %17 : vector<512x128xf32> to vector<512x128xbf16>
    %c0_14 = arith.constant 0 : index
    %c0_15 = arith.constant 0 : index
    %19 = vector.load %arg7[%c0_14, %c0_15] : memref<256x512xbf16, #tpu.memory_space<vmem>>, vector<256x512xbf16>
    %cst_16 = arith.constant dense<0.000000e+00> : vector<256x128xf32>
    %20 = tpu.matmul %19, %18, %cst_16 {dimension_numbers = #tpu.dot_dimension_numbers<[1], [0], [0], [1], [0, 0, 1, 1], [], []>} : vector<256x512xbf16>, vector<512x128xbf16>, vector<256x128xf32> -> vector<256x128xf32>
    %c0_17 = arith.constant 0 : index
    %c0_18 = arith.constant 0 : index
    %21 = vector.load %arg8[%c0_17, %c0_18] : memref<256x1xf32, #tpu.memory_space<vmem>>, vector<256x1xf32>
    %22 = vector.broadcast %21 : vector<256x1xf32> to vector<256x128xf32>
    %23 = arith.addf %20, %22 : vector<256x128xf32>
    %cst_19 = arith.constant 0.000000e+00 : f32
    %24 = vector.broadcast %cst_19 : f32 to vector<256x128xf32>
    %25 = arith.maximumf %23, %24 : vector<256x128xf32>
    %26 = arith.truncf %25 : vector<256x128xf32> to vector<256x128xbf16>
    %c0_20 = arith.constant 0 : index
    %c0_21 = arith.constant 0 : index
    %27 = vector.load %arg9[%c0_20, %c0_21] : memref<128x256xbf16, #tpu.memory_space<vmem>>, vector<128x256xbf16>
    %cst_22 = arith.constant dense<0.000000e+00> : vector<128x128xf32>
    %28 = tpu.matmul %27, %26, %cst_22 {dimension_numbers = #tpu.dot_dimension_numbers<[1], [0], [0], [1], [0, 0, 1, 1], [], []>} : vector<128x256xbf16>, vector<256x128xbf16>, vector<128x128xf32> -> vector<128x128xf32>
    %c0_23 = arith.constant 0 : index
    %c0_24 = arith.constant 0 : index
    %29 = vector.load %arg10[%c0_23, %c0_24] : memref<128x1xf32, #tpu.memory_space<vmem>>, vector<128x1xf32>
    %30 = vector.broadcast %29 : vector<128x1xf32> to vector<128x128xf32>
    %31 = arith.addf %28, %30 : vector<128x128xf32>
    %cst_25 = arith.constant 0.000000e+00 : f32
    %32 = vector.broadcast %cst_25 : f32 to vector<128x128xf32>
    %33 = arith.maximumf %31, %32 : vector<128x128xf32>
    %34 = arith.truncf %33 : vector<128x128xf32> to vector<128x128xbf16>
    %c0_26 = arith.constant 0 : index
    %c0_27 = arith.constant 0 : index
    %35 = vector.load %arg11[%c0_26, %c0_27] : memref<1x128xbf16, #tpu.memory_space<vmem>>, vector<1x128xbf16>
    %cst_28 = arith.constant dense<0.000000e+00> : vector<1x128xf32>
    %36 = tpu.matmul %35, %34, %cst_28 {dimension_numbers = #tpu.dot_dimension_numbers<[1], [0], [0], [1], [0, 0, 1, 1], [], []>} : vector<1x128xbf16>, vector<128x128xbf16>, vector<1x128xf32> -> vector<1x128xf32>
    %c0_29 = arith.constant 0 : index
    %c0_30 = arith.constant 0 : index
    %37 = vector.load %arg12[%c0_29, %c0_30] : memref<1x1xf32, #tpu.memory_space<vmem>>, vector<1x1xf32>
    %38 = vector.broadcast %37 : vector<1x1xf32> to vector<1x128xf32>
    %39 = arith.addf %36, %38 : vector<1x128xf32>
    %cst_31 = arith.constant 0.000000e+00 : f32
    %40 = vector.broadcast %cst_31 : f32 to vector<1x128xf32>
    %41 = arith.cmpf ogt, %39, %40 : vector<1x128xf32>
    %42 = arith.extui %41 : vector<1x128xi1> to vector<1x128xi32>
    %43 = vector.shape_cast %42 : vector<1x128xi32> to vector<1x1x128xi32>
    %c0_32 = arith.constant 0 : index
    %c0_33 = arith.constant 0 : index
    %c0_34 = arith.constant 0 : index
    %44 = vector.load %arg13[%c0_32, %c0_33, %c0_34] : memref<1x1x128xi32, #tpu.memory_space<vmem>>, vector<1x1x128xi32>
    tpu.vector_store %arg13[%c0_32, %c0_33, %c0_34], %43 {strides = array<i32>} : memref<1x1x128xi32, #tpu.memory_space<vmem>>, vector<1x1x128xi32>,
    return
  }
  func.func @transform_0(%arg0: i32, %arg1: i32) -> (i32, i32, i32) {
    %c0_i32 = arith.constant 0 : i32
    %c0_i32_0 = arith.constant 0 : i32
    return %arg0, %c0_i32, %arg1 : i32, i32, i32
  }
  func.func @transform_1(%arg0: i32, %arg1: i32) -> (i32, i32, i32) {
    %c0_i32 = arith.constant 0 : i32
    %c0_i32_0 = arith.constant 0 : i32
    %c0_i32_1 = arith.constant 0 : i32
    return %arg0, %c0_i32, %c0_i32_0 : i32, i32, i32
  }
  func.func @transform_2(%arg0: i32, %arg1: i32) -> (i32, i32) {
    %c0_i32 = arith.constant 0 : i32
    %c0_i32_0 = arith.constant 0 : i32
    %c0_i32_1 = arith.constant 0 : i32
    return %c0_i32, %c0_i32_0 : i32, i32
  }
  func.func @transform_3(%arg0: i32, %arg1: i32) -> (i32, i32) {
    %c0_i32 = arith.constant 0 : i32
    %c0_i32_0 = arith.constant 0 : i32
    %c0_i32_1 = arith.constant 0 : i32
    return %c0_i32, %c0_i32_0 : i32, i32
  }
  func.func @transform_4(%arg0: i32, %arg1: i32) -> (i32, i32) {
    %c0_i32 = arith.constant 0 : i32
    %c0_i32_0 = arith.constant 0 : i32
    %c0_i32_1 = arith.constant 0 : i32
    return %c0_i32, %c0_i32_0 : i32, i32
  }
  func.func @transform_5(%arg0: i32, %arg1: i32) -> (i32, i32) {
    %c0_i32 = arith.constant 0 : i32
    %c0_i32_0 = arith.constant 0 : i32
    %c0_i32_1 = arith.constant 0 : i32
    return %c0_i32, %c0_i32_0 : i32, i32
  }
  func.func @transform_6(%arg0: i32, %arg1: i32) -> (i32, i32) {
    %c0_i32 = arith.constant 0 : i32
    %c0_i32_0 = arith.constant 0 : i32
    %c0_i32_1 = arith.constant 0 : i32
    return %c0_i32, %c0_i32_0 : i32, i32
  }
  func.func @transform_7(%arg0: i32, %arg1: i32) -> (i32, i32) {
    %c0_i32 = arith.constant 0 : i32
    %c0_i32_0 = arith.constant 0 : i32
    %c0_i32_1 = arith.constant 0 : i32
    return %c0_i32, %c0_i32_0 : i32, i32
  }
  func.func @transform_8(%arg0: i32, %arg1: i32) -> (i32, i32) {
    %c0_i32 = arith.constant 0 : i32
    %c0_i32_0 = arith.constant 0 : i32
    %c0_i32_1 = arith.constant 0 : i32
    return %c0_i32, %c0_i32_0 : i32, i32
  }
  func.func @transform_9(%arg0: i32, %arg1: i32) -> (i32, i32) {
    %c0_i32 = arith.constant 0 : i32
    %c0_i32_0 = arith.constant 0 : i32
    %c0_i32_1 = arith.constant 0 : i32
    return %c0_i32, %c0_i32_0 : i32, i32
  }
  func.func @transform_10(%arg0: i32, %arg1: i32) -> (i32, i32) {
    %c0_i32 = arith.constant 0 : i32
    %c0_i32_0 = arith.constant 0 : i32
    %c0_i32_1 = arith.constant 0 : i32
    return %c0_i32, %c0_i32_0 : i32, i32
  }
  func.func @transform_11(%arg0: i32, %arg1: i32) -> (i32, i32, i32) {
    %c0_i32 = arith.constant 0 : i32
    %c0_i32_0 = arith.constant 0 : i32
    return %arg0, %c0_i32, %arg1 : i32, i32, i32
  }
}

</mosaic_0001>

<llo_original>
// kernel: _forward_impl.1
$region0: #{_forward_impl.1}
  #allocation0 [shape = 'u32[]', space=smem, size = 0x4, offset = 0x4, fixed_abs, tag = 'smem constant byte address 0x4 - core index']
  #allocation1 [shape = 'u32[144,128]{1,0:T(1,128)}', space=vmem, size = 0x12000, scoped, tag = 'internal scratch']
  #allocation2 [shape = 'f32[1,1]{1,0:T(1,128)S(1)}', space=vmem, size = 0x200, scoped, tag = 'scoped memory for _forward_impl.1']
  %s0 = inlined_call_operand.vmem [shape: bf16[2,32,128], index: 0, kind: input, shape index: {}]
  %s1 = inlined_call_operand.vmem [shape: f32[2,1024,1], index: 1, kind: input, shape index: {}]
  %s2 = inlined_call_operand.vmem [shape: bf16[1024,32], index: 2, kind: input, shape index: {}]
  %s3 = inlined_call_operand.vmem [shape: bf16[512,1024], index: 3, kind: input, shape index: {}]
  %s4 = inlined_call_operand.vmem [shape: f32[512,1], index: 4, kind: input, shape index: {}]
  %s5 = inlined_call_operand.vmem [shape: bf16[256,512], index: 5, kind: input, shape index: {}]
  %s6 = inlined_call_operand.vmem [shape: f32[256,1], index: 6, kind: input, shape index: {}]
  %s7 = inlined_call_operand.vmem [shape: bf16[128,256], index: 7, kind: input, shape index: {}]
  %s8 = inlined_call_operand.vmem [shape: f32[128,1], index: 8, kind: input, shape index: {}]
  %s9 = inlined_call_operand.vmem [shape: bf16[1,128], index: 9, kind: input, shape index: {}]
  %s10 = inlined_call_operand.<no memory space> [shape: f32[1,1], index: 10, kind: input, shape index: {}]
  %s11 = inlined_call_operand.hbm [shape: s32[2,1,128], index: 11, kind: output, shape index: {}]
  %s12 = sld [smem:[#allocation0]]
  $region77: #{_forward_impl.1} parent=0
    _
  %s14 = ssub.s32 1, %s12
  %s15 = scalar_select 0, %s14, %s12
  %v16 = vstv %s10
  %17 = vst [vmem:[#allocation2] sm:$0x1] %v16
  $region1: #{_forward_impl.1} parent=0
    #allocation3 [shape = 'u8[1024]{0}', space=vmem, size = 0x400, scoped, tag = 'output window, operand 0']
    #allocation4 [shape = 's32[2]{0}', space=sflag, size = 0x8, scoped, tag = 'scoped memory for _forward_impl.1']
    %18 = vsyncpa [#allocation4], 0
    %s19 = scalar_lea.sflag [#allocation4], 1
    %20 = vsyncpa %s19, 0
    loop: start=0, step=1, limit=4
    $region2: #{_forward_impl.1} parent=1 // loop_pre_header
      _
    $region3: #{_forward_impl.1} parent=1 // loop_header
      %s22 = sphi 0, %s26
      %p23 = scmp.ge.s32.totalorder %s22, 4
      %s29 = sphi 0, %s41
      %s30 = sphi 0, %s37
      %s31 = sphi 0, %s29
      %s32 = sphi 0, %s30
      %s33 = sphi 0, %s31
      %s34 = sphi 0, %s32
      %s46 = sphi 0, %s48
      %s49 = sphi 0, %s46
      %s50 = sphi 0, %s49
      %s66 = sphi 0, %s50
      %s72 = sphi 0, %s74
      %s75 = sphi 0, %s72
      %s76 = sphi 0, %s75
      %s92 = sphi 0, %s76
      %s96 = sphi 0, %s96
      %s98 = sphi 0, %s96
      %s99 = sphi 0, %s98
      %s113 = sphi 0, %s99
      %s117 = sphi 0, %s117
      %s119 = sphi 0, %s117
      %s120 = sphi 0, %s119
      %s134 = sphi 0, %s120
      %s138 = sphi 0, %s138
      %s140 = sphi 0, %s138
      %s141 = sphi 0, %s140
      %s155 = sphi 0, %s141
      %s159 = sphi 0, %s159
      %s161 = sphi 0, %s159
      %s162 = sphi 0, %s161
      %s176 = sphi 0, %s162
      %s180 = sphi 0, %s180
      %s182 = sphi 0, %s180
      %s183 = sphi 0, %s182
      %s197 = sphi 0, %s183
      %s201 = sphi 0, %s201
      %s203 = sphi 0, %s201
      %s204 = sphi 0, %s203
      %s218 = sphi 0, %s204
      %s222 = sphi 0, %s222
      %s224 = sphi 0, %s222
      %s225 = sphi 0, %s224
      %s239 = sphi 0, %s225
      %s243 = sphi 0, %s243
      %s245 = sphi 0, %s243
      %s246 = sphi 0, %s245
      %s260 = sphi 0, %s246
      %s264 = sphi 0, %s264
      %s266 = sphi 0, %s264
      %s267 = sphi 0, %s266
      %s281 = sphi 0, %s267
      %s289 = sphi 0, %s291
      %s292 = sphi 0, %s289
      %s293 = sphi 0, %s292
      %s309 = sphi 0, %s293
    $region4: #{_forward_impl.1} parent=1 // loop_header_branch
      %25 = sbr.rel (%p23) target = $region8
    $region5: #{_forward_impl.1} parent=1 // loop_body
      %s27 = ssub.s32 %s22, 1
      %s28 = ssub.s32 %s22, 2
      %s35 = sadd.s32 1, %s30
      %p36 = scmp.ge.s32.totalorder %s35, 1
      %s37 = scalar_select %p36, 0, %s35
      %s38 = sadd.s32 1, %s29
      %s39 = scalar_select %p36, %s38, %s29
      %p40 = scmp.ge.s32.totalorder %s39, 2
      %s41 = scalar_select %p40, 0, %s39
      %s42 = ssub.s32 %s29, %s41
      %s43 = ssub.s32 %s30, %s37
      %s44 = sor.u32 %s42, %s43
      %p45 = scmp.eq.s32.totalorder %s44, 0
      %s47 = sadd.s32 %s46, 1
      %s48 = scalar_select %p45, %s46, %s47
      %p51 = pneg %p45
      %p52 = scmp.eq.s32.totalorder %s22, 1
      %p53 = por %p51, %p52
      %p54 = scmp.ne.s32.totalorder %s46, %s49
      %p55 = scmp.eq.s32.totalorder %s22, 0
      %p56 = por %p54, %p55
      %p57 = scmp.ne.s32.totalorder %s46, %s49
      %p58 = scmp.eq.s32.totalorder %s27, 1
      %p59 = por %p57, %p58
      %p60 = scmp.ne.s32.totalorder %s49, %s50
      %p61 = scmp.eq.s32.totalorder %s27, 0
      %p62 = por %p60, %p61
      %p63 = scmp.ne.s32.totalorder %s49, %s50
      %p64 = scmp.eq.s32.totalorder %s28, 1
      %p65 = por %p63, %p64
      %p67 = scmp.ne.s32.totalorder %s50, %s66
      %p68 = scmp.eq.s32.totalorder %s28, 0
      %p69 = por %p67, %p68
      %s70 = ssub.s32 %s29, %s41
      %p71 = scmp.eq.s32.totalorder %s70, 0
      %s73 = sadd.s32 %s72, 1
      %s74 = scalar_select %p71, %s72, %s73
      %p77 = pneg %p71
      %p78 = scmp.eq.s32.totalorder %s22, 1
      %p79 = por %p77, %p78
      %p80 = scmp.ne.s32.totalorder %s72, %s75
      %p81 = scmp.eq.s32.totalorder %s22, 0
      %p82 = por %p80, %p81
      %p83 = scmp.ne.s32.totalorder %s72, %s75
      %p84 = scmp.eq.s32.totalorder %s27, 1
      %p85 = por %p83, %p84
      %p86 = scmp.ne.s32.totalorder %s75, %s76
      %p87 = scmp.eq.s32.totalorder %s27, 0
      %p88 = por %p86, %p87
      %p89 = scmp.ne.s32.totalorder %s75, %s76
      %p90 = scmp.eq.s32.totalorder %s28, 1
      %p91 = por %p89, %p90
      %p93 = scmp.ne.s32.totalorder %s76, %s92
      %p94 = scmp.eq.s32.totalorder %s28, 0
      %p95 = por %p93, %p94
      %s97 = sadd.s32 %s96, 1
      %p100 = scmp.eq.s32.totalorder %s22, 1
      %p101 = scmp.ne.s32.totalorder %s96, %s98
      %p102 = scmp.eq.s32.totalorder %s22, 0
      %p103 = por %p101, %p102
      %p104 = scmp.ne.s32.totalorder %s96, %s98
      %p105 = scmp.eq.s32.totalorder %s27, 1
      %p106 = por %p104, %p105
      %p107 = scmp.ne.s32.totalorder %s98, %s99
      %p108 = scmp.eq.s32.totalorder %s27, 0
      %p109 = por %p107, %p108
      %p110 = scmp.ne.s32.totalorder %s98, %s99
      %p111 = scmp.eq.s32.totalorder %s28, 1
      %p112 = por %p110, %p111
      %p114 = scmp.ne.s32.totalorder %s99, %s113
      %p115 = scmp.eq.s32.totalorder %s28, 0
      %p116 = por %p114, %p115
      %s118 = sadd.s32 %s117, 1
      %p121 = scmp.eq.s32.totalorder %s22, 1
      %p122 = scmp.ne.s32.totalorder %s117, %s119
      %p123 = scmp.eq.s32.totalorder %s22, 0
      %p124 = por %p122, %p123
      %p125 = scmp.ne.s32.totalorder %s117, %s119
      %p126 = scmp.eq.s32.totalorder %s27, 1
      %p127 = por %p125, %p126
      %p128 = scmp.ne.s32.totalorder %s119, %s120
      %p129 = scmp.eq.s32.totalorder %s27, 0
      %p130 = por %p128, %p129
      %p131 = scmp.ne.s32.totalorder %s119, %s120
      %p132 = scmp.eq.s32.totalorder %s28, 1
      %p133 = por %p131, %p132
      %p135 = scmp.ne.s32.totalorder %s120, %s134
      %p136 = scmp.eq.s32.totalorder %s28, 0
      %p137 = por %p135, %p136
      %s139 = sadd.s32 %s138, 1
      %p142 = scmp.eq.s32.totalorder %s22, 1
      %p143 = scmp.ne.s32.totalorder %s138, %s140
      %p144 = scmp.eq.s32.totalorder %s22, 0
      %p145 = por %p143, %p144
      %p146 = scmp.ne.s32.totalorder %s138, %s140
      %p147 = scmp.eq.s32.totalorder %s27, 1
      %p148 = por %p146, %p147
      %p149 = scmp.ne.s32.totalorder %s140, %s141
      %p150 = scmp.eq.s32.totalorder %s27, 0
      %p151 = por %p149, %p150
      %p152 = scmp.ne.s32.totalorder %s140, %s141
      %p153 = scmp.eq.s32.totalorder %s28, 1
      %p154 = por %p152, %p153
      %p156 = scmp.ne.s32.totalorder %s141, %s155
      %p157 = scmp.eq.s32.totalorder %s28, 0
      %p158 = por %p156, %p157
      %s160 = sadd.s32 %s159, 1
      %p163 = scmp.eq.s32.totalorder %s22, 1
      %p164 = scmp.ne.s32.totalorder %s159, %s161
      %p165 = scmp.eq.s32.totalorder %s22, 0
      %p166 = por %p164, %p165
      %p167 = scmp.ne.s32.totalorder %s159, %s161
      %p168 = scmp.eq.s32.totalorder %s27, 1
      %p169 = por %p167, %p168
      %p170 = scmp.ne.s32.totalorder %s161, %s162
      %p171 = scmp.eq.s32.totalorder %s27, 0
      %p172 = por %p170, %p171
      %p173 = scmp.ne.s32.totalorder %s161, %s162
      %p174 = scmp.eq.s32.totalorder %s28, 1
      %p175 = por %p173, %p174
      %p177 = scmp.ne.s32.totalorder %s162, %s176
      %p178 = scmp.eq.s32.totalorder %s28, 0
      %p179 = por %p177, %p178
      %s181 = sadd.s32 %s180, 1
      %p184 = scmp.eq.s32.totalorder %s22, 1
      %p185 = scmp.ne.s32.totalorder %s180, %s182
      %p186 = scmp.eq.s32.totalorder %s22, 0
      %p187 = por %p185, %p186
      %p188 = scmp.ne.s32.totalorder %s180, %s182
      %p189 = scmp.eq.s32.totalorder %s27, 1
      %p190 = por %p188, %p189
      %p191 = scmp.ne.s32.totalorder %s182, %s183
      %p192 = scmp.eq.s32.totalorder %s27, 0
      %p193 = por %p191, %p192
      %p194 = scmp.ne.s32.totalorder %s182, %s183
      %p195 = scmp.eq.s32.totalorder %s28, 1
      %p196 = por %p194, %p195
      %p198 = scmp.ne.s32.totalorder %s183, %s197
      %p199 = scmp.eq.s32.totalorder %s28, 0
      %p200 = por %p198, %p199
      %s202 = sadd.s32 %s201, 1
      %p205 = scmp.eq.s32.totalorder %s22, 1
      %p206 = scmp.ne.s32.totalorder %s201, %s203
      %p207 = scmp.eq.s32.totalorder %s22, 0
      %p208 = por %p206, %p207
      %p209 = scmp.ne.s32.totalorder %s201, %s203
      %p210 = scmp.eq.s32.totalorder %s27, 1
      %p211 = por %p209, %p210
      %p212 = scmp.ne.s32.totalorder %s203, %s204
      %p213 = scmp.eq.s32.totalorder %s27, 0
      %p214 = por %p212, %p213
      %p215 = scmp.ne.s32.totalorder %s203, %s204
      %p216 = scmp.eq.s32.totalorder %s28, 1
      %p217 = por %p215, %p216
      %p219 = scmp.ne.s32.totalorder %s204, %s218
      %p220 = scmp.eq.s32.totalorder %s28, 0
      %p221 = por %p219, %p220
      %s223 = sadd.s32 %s222, 1
      %p226 = scmp.eq.s32.totalorder %s22, 1
      %p227 = scmp.ne.s32.totalorder %s222, %s224
      %p228 = scmp.eq.s32.totalorder %s22, 0
      %p229 = por %p227, %p228
      %p230 = scmp.ne.s32.totalorder %s222, %s224
      %p231 = scmp.eq.s32.totalorder %s27, 1
      %p232 = por %p230, %p231
      %p233 = scmp.ne.s32.totalorder %s224, %s225
      %p234 = scmp.eq.s32.totalorder %s27, 0
      %p235 = por %p233, %p234
      %p236 = scmp.ne.s32.totalorder %s224, %s225
      %p237 = scmp.eq.s32.totalorder %s28, 1
      %p238 = por %p236, %p237
      %p240 = scmp.ne.s32.totalorder %s225, %s239
      %p241 = scmp.eq.s32.totalorder %s28, 0
      %p242 = por %p240, %p241
      %s244 = sadd.s32 %s243, 1
      %p247 = scmp.eq.s32.totalorder %s22, 1
      %p248 = scmp.ne.s32.totalorder %s243, %s245
      %p249 = scmp.eq.s32.totalorder %s22, 0
      %p250 = por %p248, %p249
      %p251 = scmp.ne.s32.totalorder %s243, %s245
      %p252 = scmp.eq.s32.totalorder %s27, 1
      %p253 = por %p251, %p252
      %p254 = scmp.ne.s32.totalorder %s245, %s246
      %p255 = scmp.eq.s32.totalorder %s27, 0
      %p256 = por %p254, %p255
      %p257 = scmp.ne.s32.totalorder %s245, %s246
      %p258 = scmp.eq.s32.totalorder %s28, 1
      %p259 = por %p257, %p258
      %p261 = scmp.ne.s32.totalorder %s246, %s260
      %p262 = scmp.eq.s32.totalorder %s28, 0
      %p263 = por %p261, %p262
      %s265 = sadd.s32 %s264, 1
      %p268 = scmp.eq.s32.totalorder %s22, 1
      %p269 = scmp.ne.s32.totalorder %s264, %s266
      %p270 = scmp.eq.s32.totalorder %s22, 0
      %p271 = por %p269, %p270
      %p272 = scmp.ne.s32.totalorder %s264, %s266
      %p273 = scmp.eq.s32.totalorder %s27, 1
      %p274 = por %p272, %p273
      %p275 = scmp.ne.s32.totalorder %s266, %s267
      %p276 = scmp.eq.s32.totalorder %s27, 0
      %p277 = por %p275, %p276
      %p278 = scmp.ne.s32.totalorder %s266, %s267
      %p279 = scmp.eq.s32.totalorder %s28, 1
      %p280 = por %p278, %p279
      %p282 = scmp.ne.s32.totalorder %s267, %s281
      %p283 = scmp.eq.s32.totalorder %s28, 0
      %p284 = por %p282, %p283
      %s285 = ssub.s32 %s29, %s41
      %s286 = ssub.s32 %s30, %s37
      %s287 = sor.u32 %s285, %s286
      %p288 = scmp.eq.s32.totalorder %s287, 0
      %s290 = sadd.s32 %s289, 1
      %s291 = scalar_select %p288, %s289, %s290
      %p294 = pneg %p288
      %p295 = scmp.eq.s32.totalorder %s22, 1
      %p296 = por %p294, %p295
      %p297 = scmp.ne.s32.totalorder %s289, %s292
      %p298 = scmp.eq.s32.totalorder %s22, 0
      %p299 = por %p297, %p298
      %p300 = scmp.ne.s32.totalorder %s289, %s292
      %p301 = scmp.eq.s32.totalorder %s27, 1
      %p302 = por %p300, %p301
      %p303 = scmp.ne.s32.totalorder %s292, %s293
      %p304 = scmp.eq.s32.totalorder %s27, 0
      %p305 = por %p303, %p304
      %p306 = scmp.ne.s32.totalorder %s292, %s293
      %p307 = scmp.eq.s32.totalorder %s28, 1
      %p308 = por %p306, %p307
      %p310 = scmp.ne.s32.totalorder %s293, %s309
      %p311 = scmp.eq.s32.totalorder %s28, 0
      %p312 = por %p310, %p311
      %p313 = scmp.le.s32.totalorder 1, %s22
      %p314 = scmp.lt.s32.totalorder %s22, 3
      %p315 = pnand %p313, %p314
      %p316 = pneg %p315
      // Predicated region
      $region9: #{_forward_impl.1} parent=5 // pred_check
        _
      $region10: #{_forward_impl.1} parent=5 // pred_check_branch
        %318 = sbr.rel (%p315) target = $region12
      $region11: #{_forward_impl.1} parent=5 // pred_region
        %s319 = ssub.s32 %s22, 1
        // Predicated region
        $region13: #{_forward_impl.1} parent=11 // pred_check
          %p320 = pneg %p109
        $region14: #{_forward_impl.1} parent=11 // pred_check_branch
          %322 = sbr.rel (%p320) target = $region16
        $region15: #{_forward_impl.1} parent=11 // pred_region
          _
        $region16: #{_forward_impl.1} parent=11 // pred_fallthru
          _
        // Predicated region
        $region17: #{_forward_impl.1} parent=11 // pred_check
          %p323 = pneg %p130
        $region18: #{_forward_impl.1} parent=11 // pred_check_branch
          %325 = sbr.rel (%p323) target = $region20
        $region19: #{_forward_impl.1} parent=11 // pred_region
          _
        $region20: #{_forward_impl.1} parent=11 // pred_fallthru
          _
        // Predicated region
        $region21: #{_forward_impl.1} parent=11 // pred_check
          %p326 = pneg %p151
        $region22: #{_forward_impl.1} parent=11 // pred_check_branch
          %328 = sbr.rel (%p326) target = $region24
        $region23: #{_forward_impl.1} parent=11 // pred_region
          _
        $region24: #{_forward_impl.1} parent=11 // pred_fallthru
          _
        // Predicated region
        $region25: #{_forward_impl.1} parent=11 // pred_check
          %p329 = pneg %p172
        $region26: #{_forward_impl.1} parent=11 // pred_check_branch
          %331 = sbr.rel (%p329) target = $region28
        $region27: #{_forward_impl.1} parent=11 // pred_region
          _
        $region28: #{_forward_impl.1} parent=11 // pred_fallthru
          _
        // Predicated region
        $region29: #{_forward_impl.1} parent=11 // pred_check
          %p332 = pneg %p193
        $region30: #{_forward_impl.1} parent=11 // pred_check_branch
          %334 = sbr.rel (%p332) target = $region32
        $region31: #{_forward_impl.1} parent=11 // pred_region
          _
        $region32: #{_forward_impl.1} parent=11 // pred_fallthru
          _
        // Predicated region
        $region33: #{_forward_impl.1} parent=11 // pred_check
          %p335 = pneg %p214
        $region34: #{_forward_impl.1} parent=11 // pred_check_branch
          %337 = sbr.rel (%p335) target = $region36
        $region35: #{_forward_impl.1} parent=11 // pred_region
          _
        $region36: #{_forward_impl.1} parent=11 // pred_fallthru
          _
        // Predicated region
        $region37: #{_forward_impl.1} parent=11 // pred_check
          %p338 = pneg %p235
        $region38: #{_forward_impl.1} parent=11 // pred_check_branch
          %340 = sbr.rel (%p338) target = $region40
        $region39: #{_forward_impl.1} parent=11 // pred_region
          _
        $region40: #{_forward_impl.1} parent=11 // pred_fallthru
          _
        // Predicated region
        $region41: #{_forward_impl.1} parent=11 // pred_check
          %p341 = pneg %p256
        $region42: #{_forward_impl.1} parent=11 // pred_check_branch
          %343 = sbr.rel (%p341) target = $region44
        $region43: #{_forward_impl.1} parent=11 // pred_region
          _
        $region44: #{_forward_impl.1} parent=11 // pred_fallthru
          _
        // Predicated region
        $region45: #{_forward_impl.1} parent=11 // pred_check
          %p344 = pneg %p277
        $region46: #{_forward_impl.1} parent=11 // pred_check_branch
          %346 = sbr.rel (%p344) target = $region48
        $region47: #{_forward_impl.1} parent=11 // pred_region
          _
        $region48: #{_forward_impl.1} parent=11 // pred_fallthru
          _
      $region12: #{_forward_impl.1} parent=5 // pred_fallthru
        _
      %p347 = scmp.lt.s32.totalorder %s22, 2
      // Predicated region
      $region49: #{_forward_impl.1} parent=5 // pred_check
        %p348 = pneg %p347
      $region50: #{_forward_impl.1} parent=5 // pred_check_branch
        %350 = sbr.rel (%p348) target = $region52
      $region51: #{_forward_impl.1} parent=5 // pred_region
        // Predicated region
        $region53: #{_forward_impl.1} parent=51 // pred_check
          %p351 = pneg %p56
        $region54: #{_forward_impl.1} parent=51 // pred_check_branch
          %353 = sbr.rel (%p351) target = $region56
        $region55: #{_forward_impl.1} parent=51 // pred_region
          %p354 = scmp.lt.s32.totalorder %s29, 1
          %s355 = scalar_select %p354, %s29, 1
          %p356 = scmp.lt.s32.totalorder %s30, 0
          %s357 = scalar_select %p356, %s30, 0
          %s358 = smul.addr %s355, 4
          %s359 = sadd.s32 %s357, %s358
          %s360 = smul.addr %s359, 4
          %s361 = scalar_lea.vmem %s0, %s360
        $region56: #{_forward_impl.1} parent=51 // pred_fallthru
          _
        // Predicated region
        $region57: #{_forward_impl.1} parent=51 // pred_check
          %p362 = pneg %p82
        $region58: #{_forward_impl.1} parent=51 // pred_check_branch
          %364 = sbr.rel (%p362) target = $region60
        $region59: #{_forward_impl.1} parent=51 // pred_region
          %p365 = scmp.lt.s32.totalorder %s29, 1
          %s366 = scalar_select %p365, %s29, 1
          %s367 = smul.addr %s366, 128
          %s368 = smul.addr %s367, 8
          %s369 = scalar_lea.vmem %s1, %s368
        $region60: #{_forward_impl.1} parent=51 // pred_fallthru
          _
      $region52: #{_forward_impl.1} parent=5 // pred_fallthru
        _
      %p370 = scmp.le.s32.totalorder 1, %s22
      %p371 = scmp.lt.s32.totalorder %s22, 3
      %p372 = pnand %p370, %p371
      %p373 = pneg %p372
      // Predicated region
      $region61: #{_forward_impl.1} parent=5 // pred_check
        _
      $region62: #{_forward_impl.1} parent=5 // pred_check_branch
        %375 = sbr.rel (%p372) target = $region64
      $region63: #{_forward_impl.1} parent=5 // pred_region
        %s376 = ssub.s32 %s22, 1
        %p377 = scmp.lt.s32.totalorder %s31, 1
        %s378 = scalar_select %p377, %s31, 1
        %p379 = scmp.lt.s32.totalorder %s32, 0
        %s380 = scalar_select %p379, %s32, 0
        %s381 = smul.addr %s378, 4
        %s382 = sadd.s32 %s380, %s381
        %s383 = smul.addr %s382, 4
        %s384 = scalar_lea.vmem %s0, %s383
        %p385 = pneg %p62
        %p386 = pneg %p59
        %p387 = scmp.lt.s32.totalorder %s31, 1
        %s388 = scalar_select %p387, %s31, 1
        %s389 = smul.addr %s388, 128
        %s390 = smul.addr %s389, 8
        %s391 = scalar_lea.vmem %s1, %s390
        %p392 = pneg %p88
        %p393 = pneg %p85
        %p394 = pneg %p109
        %p395 = pneg %p106
        %p396 = pneg %p130
        %p397 = pneg %p127
        %p398 = pneg %p151
        %p399 = pneg %p148
        %p400 = pneg %p172
        %p401 = pneg %p169
        %p402 = pneg %p193
        %p403 = pneg %p190
        %p404 = pneg %p214
        %p405 = pneg %p211
        %p406 = pneg %p235
        %p407 = pneg %p232
        %p408 = pneg %p256
        %p409 = pneg %p253
        %p410 = pneg %p277
        %p411 = pneg %p274
        %p412 = pneg %p305
        %p413 = pneg %p302
        %s414 = sand.u32 %s292, 1
        %s415 = scalar_lea.sflag [#allocation4], %s414
        %s416 = sand.u32 %s292, 1
        %s417 = scalar_lea.vmem [#allocation3], %s416
        %p418 = scmp.lt.s32.totalorder %s31, 1
        %s419 = scalar_select %p418, %s31, 1
        %p420 = scmp.lt.s32.totalorder %s32, 0
        %s421 = scalar_select %p420, %s32, 0
        %s422 = smul.addr %s419, 4
        %s423 = sadd.s32 %s421, %s422
        %s424 = smul.addr %s423, 4
        %s425 = scalar_lea.vmem %s0, %s424
        %p426 = scmp.lt.s32.totalorder %s31, 1
        %s427 = scalar_select %p426, %s31, 1
        %s428 = smul.addr %s427, 128
        %s429 = smul.addr %s428, 8
        %s430 = scalar_lea.vmem %s1, %s429
        %v432 = vld [vmem:[%s425] sm:$0xf]
        %v433 = vld [vmem:[%s425 + $0x4] sm:$0xf]
        %v434 = vld [vmem:[%s425 + $0x8] sm:$0xf]
        %v435 = vld [vmem:[%s425 + $0xc] sm:$0xf]
        %v436 = vld [vmem:[%s430] sm:$0xff]
        %v437 = vld [vmem:[%s430 + $0x8] sm:$0xff]
        %v438 = vld [vmem:[%s430 + $0x10] sm:$0xff]
        %v439 = vld [vmem:[%s430 + $0x18] sm:$0xff]
        %v440 = vld [vmem:[%s430 + $0x20] sm:$0xff]
        %v441 = vld [vmem:[%s430 + $0x28] sm:$0xff]
        %v442 = vld [vmem:[%s430 + $0x30] sm:$0xff]
        %v443 = vld [vmem:[%s430 + $0x38] sm:$0xff]
        %v444 = vld [vmem:[%s430 + $0x40] sm:$0xff]
        %v445 = vld [vmem:[%s430 + $0x48] sm:$0xff]
        %v446 = vld [vmem:[%s430 + $0x50] sm:$0xff]
        %v447 = vld [vmem:[%s430 + $0x58] sm:$0xff]
        %v448 = vld [vmem:[%s430 + $0x60] sm:$0xff]
        %v449 = vld [vmem:[%s430 + $0x68] sm:$0xff]
        %v450 = vld [vmem:[%s430 + $0x70] sm:$0xff]
        %v451 = vld [vmem:[%s430 + $0x78] sm:$0xff]
        %v452 = vld [vmem:[%s430 + $0x80] sm:$0xff]
        %v453 = vld [vmem:[%s430 + $0x88] sm:$0xff]
        %v454 = vld [vmem:[%s430 + $0x90] sm:$0xff]
        %v455 = vld [vmem:[%s430 + $0x98] sm:$0xff]
        %v456 = vld [vmem:[%s430 + $0xa0] sm:$0xff]
        %v457 = vld [vmem:[%s430 + $0xa8] sm:$0xff]
        %v458 = vld [vmem:[%s430 + $0xb0] sm:$0xff]
        %v459 = vld [vmem:[%s430 + $0xb8] sm:$0xff]
        %v460 = vld [vmem:[%s430 + $0xc0] sm:$0xff]
        %v461 = vld [vmem:[%s430 + $0xc8] sm:$0xff]
        %v462 = vld [vmem:[%s430 + $0xd0] sm:$0xff]
        %v463 = vld [vmem:[%s430 + $0xd8] sm:$0xff]
        %v464 = vld [vmem:[%s430 + $0xe0] sm:$0xff]
        %v465 = vld [vmem:[%s430 + $0xe8] sm:$0xff]
        %v466 = vld [vmem:[%s430 + $0xf0] sm:$0xff]
        %v467 = vld [vmem:[%s430 + $0xf8] sm:$0xff]
        %v468 = vld [vmem:[%s430 + $0x100] sm:$0xff]
        %v469 = vld [vmem:[%s430 + $0x108] sm:$0xff]
        %v470 = vld [vmem:[%s430 + $0x110] sm:$0xff]
        %v471 = vld [vmem:[%s430 + $0x118] sm:$0xff]
        %v472 = vld [vmem:[%s430 + $0x120] sm:$0xff]
        %v473 = vld [vmem:[%s430 + $0x128] sm:$0xff]
        %v474 = vld [vmem:[%s430 + $0x130] sm:$0xff]
        %v475 = vld [vmem:[%s430 + $0x138] sm:$0xff]
        %v476 = vld [vmem:[%s430 + $0x140] sm:$0xff]
        %v477 = vld [vmem:[%s430 + $0x148] sm:$0xff]
        %v478 = vld [vmem:[%s430 + $0x150] sm:$0xff]
        %v479 = vld [vmem:[%s430 + $0x158] sm:$0xff]
        %v480 = vld [vmem:[%s430 + $0x160] sm:$0xff]
        %v481 = vld [vmem:[%s430 + $0x168] sm:$0xff]
        %v482 = vld [vmem:[%s430 + $0x170] sm:$0xff]
        %v483 = vld [vmem:[%s430 + $0x178] sm:$0xff]
        %v484 = vld [vmem:[%s430 + $0x180] sm:$0xff]
        %v485 = vld [vmem:[%s430 + $0x188] sm:$0xff]
        %v486 = vld [vmem:[%s430 + $0x190] sm:$0xff]
        %v487 = vld [vmem:[%s430 + $0x198] sm:$0xff]
        %v488 = vld [vmem:[%s430 + $0x1a0] sm:$0xff]
        %v489 = vld [vmem:[%s430 + $0x1a8] sm:$0xff]
        %v490 = vld [vmem:[%s430 + $0x1b0] sm:$0xff]
        %v491 = vld [vmem:[%s430 + $0x1b8] sm:$0xff]
        %v492 = vld [vmem:[%s430 + $0x1c0] sm:$0xff]
        %v493 = vld [vmem:[%s430 + $0x1c8] sm:$0xff]
        %v494 = vld [vmem:[%s430 + $0x1d0] sm:$0xff]
        %v495 = vld [vmem:[%s430 + $0x1d8] sm:$0xff]
        %v496 = vld [vmem:[%s430 + $0x1e0] sm:$0xff]
        %v497 = vld [vmem:[%s430 + $0x1e8] sm:$0xff]
        %v498 = vld [vmem:[%s430 + $0x1f0] sm:$0xff]
        %v499 = vld [vmem:[%s430 + $0x1f8] sm:$0xff]
        %v500 = vld [vmem:[%s430 + $0x200] sm:$0xff]
        %v501 = vld [vmem:[%s430 + $0x208] sm:$0xff]
        %v502 = vld [vmem:[%s430 + $0x210] sm:$0xff]
        %v503 = vld [vmem:[%s430 + $0x218] sm:$0xff]
        %v504 = vld [vmem:[%s430 + $0x220] sm:$0xff]
        %v505 = vld [vmem:[%s430 + $0x228] sm:$0xff]
        %v506 = vld [vmem:[%s430 + $0x230] sm:$0xff]
        %v507 = vld [vmem:[%s430 + $0x238] sm:$0xff]
        %v508 = vld [vmem:[%s430 + $0x240] sm:$0xff]
        %v509 = vld [vmem:[%s430 + $0x248] sm:$0xff]
        %v510 = vld [vmem:[%s430 + $0x250] sm:$0xff]
        %v511 = vld [vmem:[%s430 + $0x258] sm:$0xff]
        %v512 = vld [vmem:[%s430 + $0x260] sm:$0xff]
        %v513 = vld [vmem:[%s430 + $0x268] sm:$0xff]
        %v514 = vld [vmem:[%s430 + $0x270] sm:$0xff]
        %v515 = vld [vmem:[%s430 + $0x278] sm:$0xff]
        %v516 = vld [vmem:[%s430 + $0x280] sm:$0xff]
        %v517 = vld [vmem:[%s430 + $0x288] sm:$0xff]
        %v518 = vld [vmem:[%s430 + $0x290] sm:$0xff]
        %v519 = vld [vmem:[%s430 + $0x298] sm:$0xff]
        %v520 = vld [vmem:[%s430 + $0x2a0] sm:$0xff]
        %v521 = vld [vmem:[%s430 + $0x2a8] sm:$0xff]
        %v522 = vld [vmem:[%s430 + $0x2b0] sm:$0xff]
        %v523 = vld [vmem:[%s430 + $0x2b8] sm:$0xff]
        %v524 = vld [vmem:[%s430 + $0x2c0] sm:$0xff]
        %v525 = vld [vmem:[%s430 + $0x2c8] sm:$0xff]
        %v526 = vld [vmem:[%s430 + $0x2d0] sm:$0xff]
        %v527 = vld [vmem:[%s430 + $0x2d8] sm:$0xff]
        %v528 = vld [vmem:[%s430 + $0x2e0] sm:$0xff]
        %v529 = vld [vmem:[%s430 + $0x2e8] sm:$0xff]
        %v530 = vld [vmem:[%s430 + $0x2f0] sm:$0xff]
        %v531 = vld [vmem:[%s430 + $0x2f8] sm:$0xff]
        %v532 = vld [vmem:[%s430 + $0x300] sm:$0xff]
        %v533 = vld [vmem:[%s430 + $0x308] sm:$0xff]
        %v534 = vld [vmem:[%s430 + $0x310] sm:$0xff]
        %v535 = vld [vmem:[%s430 + $0x318] sm:$0xff]
        %v536 = vld [vmem:[%s430 + $0x320] sm:$0xff]
        %v537 = vld [vmem:[%s430 + $0x328] sm:$0xff]
        %v538 = vld [vmem:[%s430 + $0x330] sm:$0xff]
        %v539 = vld [vmem:[%s430 + $0x338] sm:$0xff]
        %v540 = vld [vmem:[%s430 + $0x340] sm:$0xff]
        %v541 = vld [vmem:[%s430 + $0x348] sm:$0xff]
        %v542 = vld [vmem:[%s430 + $0x350] sm:$0xff]
        %v543 = vld [vmem:[%s430 + $0x358] sm:$0xff]
        %v544 = vld [vmem:[%s430 + $0x360] sm:$0xff]
        %v545 = vld [vmem:[%s430 + $0x368] sm:$0xff]
        %v546 = vld [vmem:[%s430 + $0x370] sm:$0xff]
        %v547 = vld [vmem:[%s430 + $0x378] sm:$0xff]
        %v548 = vld [vmem:[%s430 + $0x380] sm:$0xff]
        %v549 = vld [vmem:[%s430 + $0x388] sm:$0xff]
        %v550 = vld [vmem:[%s430 + $0x390] sm:$0xff]
        %v551 = vld [vmem:[%s430 + $0x398] sm:$0xff]
        %v552 = vld [vmem:[%s430 + $0x3a0] sm:$0xff]
        %v553 = vld [vmem:[%s430 + $0x3a8] sm:$0xff]
        %v554 = vld [vmem:[%s430 + $0x3b0] sm:$0xff]
        %v555 = vld [vmem:[%s430 + $0x3b8] sm:$0xff]
        %v556 = vld [vmem:[%s430 + $0x3c0] sm:$0xff]
        %v557 = vld [vmem:[%s430 + $0x3c8] sm:$0xff]
        %v558 = vld [vmem:[%s430 + $0x3d0] sm:$0xff]
        %v559 = vld [vmem:[%s430 + $0x3d8] sm:$0xff]
        %v560 = vld [vmem:[%s430 + $0x3e0] sm:$0xff]
        %v561 = vld [vmem:[%s430 + $0x3e8] sm:$0xff]
        %v562 = vld [vmem:[%s430 + $0x3f0] sm:$0xff]
        %v563 = vld [vmem:[%s430 + $0x3f8] sm:$0xff]
        %v564 = vld [vmem:[%s2] sm:$0xf]
        %v565 = vld [vmem:[%s2 + $0x4] sm:$0xf]
        %v566 = vld [vmem:[%s2 + $0x8] sm:$0xf]
        %v567 = vld [vmem:[%s2 + $0xc] sm:$0xf]
        %v568 = vld [vmem:[%s2 + $0x10] sm:$0xf]
        %v569 = vld [vmem:[%s2 + $0x14] sm:$0xf]
        %v570 = vld [vmem:[%s2 + $0x18] sm:$0xf]
        %v571 = vld [vmem:[%s2 + $0x1c] sm:$0xf]
        %v572 = vld [vmem:[%s2 + $0x20] sm:$0xf]
        %v573 = vld [vmem:[%s2 + $0x24] sm:$0xf]
        %v574 = vld [vmem:[%s2 + $0x28] sm:$0xf]
        %v575 = vld [vmem:[%s2 + $0x2c] sm:$0xf]
        %v576 = vld [vmem:[%s2 + $0x30] sm:$0xf]
        %v577 = vld [vmem:[%s2 + $0x34] sm:$0xf]
        %v578 = vld [vmem:[%s2 + $0x38] sm:$0xf]
        %v579 = vld [vmem:[%s2 + $0x3c] sm:$0xf]
        %v580 = vld [vmem:[%s2 + $0x40] sm:$0xf]
        %v581 = vld [vmem:[%s2 + $0x44] sm:$0xf]
        %v582 = vld [vmem:[%s2 + $0x48] sm:$0xf]
        %v583 = vld [vmem:[%s2 + $0x4c] sm:$0xf]
        %v584 = vld [vmem:[%s2 + $0x50] sm:$0xf]
        %v585 = vld [vmem:[%s2 + $0x54] sm:$0xf]
        %v586 = vld [vmem:[%s2 + $0x58] sm:$0xf]
        %v587 = vld [vmem:[%s2 + $0x5c] sm:$0xf]
        %v588 = vld [vmem:[%s2 + $0x60] sm:$0xf]
        %v589 = vld [vmem:[%s2 + $0x64] sm:$0xf]
        %v590 = vld [vmem:[%s2 + $0x68] sm:$0xf]
        %v591 = vld [vmem:[%s2 + $0x6c] sm:$0xf]
        %v592 = vld [vmem:[%s2 + $0x70] sm:$0xf]
        %v593 = vld [vmem:[%s2 + $0x74] sm:$0xf]
        %v594 = vld [vmem:[%s2 + $0x78] sm:$0xf]
        %v595 = vld [vmem:[%s2 + $0x7c] sm:$0xf]
        %v596 = vld [vmem:[%s2 + $0x80] sm:$0xf]
        %v597 = vld [vmem:[%s2 + $0x84] sm:$0xf]
        %v598 = vld [vmem:[%s2 + $0x88] sm:$0xf]
        %v599 = vld [vmem:[%s2 + $0x8c] sm:$0xf]
        %v600 = vld [vmem:[%s2 + $0x90] sm:$0xf]
        %v601 = vld [vmem:[%s2 + $0x94] sm:$0xf]
        %v602 = vld [vmem:[%s2 + $0x98] sm:$0xf]
        %v603 = vld [vmem:[%s2 + $0x9c] sm:$0xf]
        %v604 = vld [vmem:[%s2 + $0xa0] sm:$0xf]
        %v605 = vld [vmem:[%s2 + $0xa4] sm:$0xf]
        %v606 = vld [vmem:[%s2 + $0xa8] sm:$0xf]
        %v607 = vld [vmem:[%s2 + $0xac] sm:$0xf]
        %v608 = vld [vmem:[%s2 + $0xb0] sm:$0xf]
        %v609 = vld [vmem:[%s2 + $0xb4] sm:$0xf]
        %v610 = vld [vmem:[%s2 + $0xb8] sm:$0xf]
        %v611 = vld [vmem:[%s2 + $0xbc] sm:$0xf]
        %v612 = vld [vmem:[%s2 + $0xc0] sm:$0xf]
        %v613 = vld [vmem:[%s2 + $0xc4] sm:$0xf]
        %v614 = vld [vmem:[%s2 + $0xc8] sm:$0xf]
        %v615 = vld [vmem:[%s2 + $0xcc] sm:$0xf]
        %v616 = vld [vmem:[%s2 + $0xd0] sm:$0xf]
        %v617 = vld [vmem:[%s2 + $0xd4] sm:$0xf]
        %v618 = vld [vmem:[%s2 + $0xd8] sm:$0xf]
        %v619 = vld [vmem:[%s2 + $0xdc] sm:$0xf]
        %v620 = vld [vmem:[%s2 + $0xe0] sm:$0xf]
        %v621 = vld [vmem:[%s2 + $0xe4] sm:$0xf]
        %v622 = vld [vmem:[%s2 + $0xe8] sm:$0xf]
        %v623 = vld [vmem:[%s2 + $0xec] sm:$0xf]
        %v624 = vld [vmem:[%s2 + $0xf0] sm:$0xf]
        %v625 = vld [vmem:[%s2 + $0xf4] sm:$0xf]
        %v626 = vld [vmem:[%s2 + $0xf8] sm:$0xf]
        %v627 = vld [vmem:[%s2 + $0xfc] sm:$0xf]
        %v628 = vld [vmem:[%s2 + $0x100] sm:$0xf]
        %v629 = vld [vmem:[%s2 + $0x104] sm:$0xf]
        %v630 = vld [vmem:[%s2 + $0x108] sm:$0xf]
        %v631 = vld [vmem:[%s2 + $0x10c] sm:$0xf]
        %v632 = vld [vmem:[%s2 + $0x110] sm:$0xf]
        %v633 = vld [vmem:[%s2 + $0x114] sm:$0xf]
        %v634 = vld [vmem:[%s2 + $0x118] sm:$0xf]
        %v635 = vld [vmem:[%s2 + $0x11c] sm:$0xf]
        %v636 = vld [vmem:[%s2 + $0x120] sm:$0xf]
        %v637 = vld [vmem:[%s2 + $0x124] sm:$0xf]
        %v638 = vld [vmem:[%s2 + $0x128] sm:$0xf]
        %v639 = vld [vmem:[%s2 + $0x12c] sm:$0xf]
        %v640 = vld [vmem:[%s2 + $0x130] sm:$0xf]
        %v641 = vld [vmem:[%s2 + $0x134] sm:$0xf]
        %v642 = vld [vmem:[%s2 + $0x138] sm:$0xf]
        %v643 = vld [vmem:[%s2 + $0x13c] sm:$0xf]
        %v644 = vld [vmem:[%s2 + $0x140] sm:$0xf]
        %v645 = vld [vmem:[%s2 + $0x144] sm:$0xf]
        %v646 = vld [vmem:[%s2 + $0x148] sm:$0xf]
        %v647 = vld [vmem:[%s2 + $0x14c] sm:$0xf]
        %v648 = vld [vmem:[%s2 + $0x150] sm:$0xf]
        %v649 = vld [vmem:[%s2 + $0x154] sm:$0xf]
        %v650 = vld [vmem:[%s2 + $0x158] sm:$0xf]
        %v651 = vld [vmem:[%s2 + $0x15c] sm:$0xf]
        %v652 = vld [vmem:[%s2 + $0x160] sm:$0xf]
        %v653 = vld [vmem:[%s2 + $0x164] sm:$0xf]
        %v654 = vld [vmem:[%s2 + $0x168] sm:$0xf]
        %v655 = vld [vmem:[%s2 + $0x16c] sm:$0xf]
        %v656 = vld [vmem:[%s2 + $0x170] sm:$0xf]
        %v657 = vld [vmem:[%s2 + $0x174] sm:$0xf]
        %v658 = vld [vmem:[%s2 + $0x178] sm:$0xf]
        %v659 = vld [vmem:[%s2 + $0x17c] sm:$0xf]
        %v660 = vld [vmem:[%s2 + $0x180] sm:$0xf]
        %v661 = vld [vmem:[%s2 + $0x184] sm:$0xf]
        %v662 = vld [vmem:[%s2 + $0x188] sm:$0xf]
        %v663 = vld [vmem:[%s2 + $0x18c] sm:$0xf]
        %v664 = vld [vmem:[%s2 + $0x190] sm:$0xf]
        %v665 = vld [vmem:[%s2 + $0x194] sm:$0xf]
        %v666 = vld [vmem:[%s2 + $0x198] sm:$0xf]
        %v667 = vld [vmem:[%s2 + $0x19c] sm:$0xf]
        %v668 = vld [vmem:[%s2 + $0x1a0] sm:$0xf]
        %v669 = vld [vmem:[%s2 + $0x1a4] sm:$0xf]
        %v670 = vld [vmem:[%s2 + $0x1a8] sm:$0xf]
        %v671 = vld [vmem:[%s2 + $0x1ac] sm:$0xf]
        %v672 = vld [vmem:[%s2 + $0x1b0] sm:$0xf]
        %v673 = vld [vmem:[%s2 + $0x1b4] sm:$0xf]
        %v674 = vld [vmem:[%s2 + $0x1b8] sm:$0xf]
        %v675 = vld [vmem:[%s2 + $0x1bc] sm:$0xf]
        %v676 = vld [vmem:[%s2 + $0x1c0] sm:$0xf]
        %v677 = vld [vmem:[%s2 + $0x1c4] sm:$0xf]
        %v678 = vld [vmem:[%s2 + $0x1c8] sm:$0xf]
        %v679 = vld [vmem:[%s2 + $0x1cc] sm:$0xf]
        %v680 = vld [vmem:[%s2 + $0x1d0] sm:$0xf]
        %v681 = vld [vmem:[%s2 + $0x1d4] sm:$0xf]
        %v682 = vld [vmem:[%s2 + $0x1d8] sm:$0xf]
        %v683 = vld [vmem:[%s2 + $0x1dc] sm:$0xf]
        %v684 = vld [vmem:[%s2 + $0x1e0] sm:$0xf]
        %v685 = vld [vmem:[%s2 + $0x1e4] sm:$0xf]
        %v686 = vld [vmem:[%s2 + $0x1e8] sm:$0xf]
        %v687 = vld [vmem:[%s2 + $0x1ec] sm:$0xf]
        %v688 = vld [vmem:[%s2 + $0x1f0] sm:$0xf]
        %v689 = vld [vmem:[%s2 + $0x1f4] sm:$0xf]
        %v690 = vld [vmem:[%s2 + $0x1f8] sm:$0xf]
        %v691 = vld [vmem:[%s2 + $0x1fc] sm:$0xf]
        %693 = vset.pattern.permute.xlu0 0
        %694 = vperm.xlu0 %693, %v436
        %v695 = vpop.permute.xlu0 %694
        %698 = vset.pattern.permute.xlu0 0
        %699 = vperm.xlu0 %698, %v437
        %v700 = vpop.permute.xlu0 %699
        %703 = vset.pattern.permute.xlu0 0
        %704 = vperm.xlu0 %703, %v438
        %v705 = vpop.permute.xlu0 %704
        %708 = vset.pattern.permute.xlu0 0
        %709 = vperm.xlu0 %708, %v439
        %v710 = vpop.permute.xlu0 %709
        %713 = vset.pattern.permute.xlu0 0
        %714 = vperm.xlu0 %713, %v440
        %v715 = vpop.permute.xlu0 %714
        %718 = vset.pattern.permute.xlu0 0
        %719 = vperm.xlu0 %718, %v441
        %v720 = vpop.permute.xlu0 %719
        %723 = vset.pattern.permute.xlu0 0
        %724 = vperm.xlu0 %723, %v442
        %v725 = vpop.permute.xlu0 %724
        %728 = vset.pattern.permute.xlu0 0
        %729 = vperm.xlu0 %728, %v443
        %v730 = vpop.permute.xlu0 %729
        %733 = vset.pattern.permute.xlu0 0
        %734 = vperm.xlu0 %733, %v444
        %v735 = vpop.permute.xlu0 %734
        %738 = vset.pattern.permute.xlu0 0
        %739 = vperm.xlu0 %738, %v445
        %v740 = vpop.permute.xlu0 %739
        %743 = vset.pattern.permute.xlu0 0
        %744 = vperm.xlu0 %743, %v446
        %v745 = vpop.permute.xlu0 %744
        %748 = vset.pattern.permute.xlu0 0
        %749 = vperm.xlu0 %748, %v447
        %v750 = vpop.permute.xlu0 %749
        %753 = vset.pattern.permute.xlu0 0
        %754 = vperm.xlu0 %753, %v448
        %v755 = vpop.permute.xlu0 %754
        %758 = vset.pattern.permute.xlu0 0
        %759 = vperm.xlu0 %758, %v449
        %v760 = vpop.permute.xlu0 %759
        %763 = vset.pattern.permute.xlu0 0
        %764 = vperm.xlu0 %763, %v450
        %v765 = vpop.permute.xlu0 %764
        %768 = vset.pattern.permute.xlu0 0
        %769 = vperm.xlu0 %768, %v451
        %v770 = vpop.permute.xlu0 %769
        %773 = vset.pattern.permute.xlu0 0
        %774 = vperm.xlu0 %773, %v452
        %v775 = vpop.permute.xlu0 %774
        %778 = vset.pattern.permute.xlu0 0
        %779 = vperm.xlu0 %778, %v453
        %v780 = vpop.permute.xlu0 %779
        %783 = vset.pattern.permute.xlu0 0
        %784 = vperm.xlu0 %783, %v454
        %v785 = vpop.permute.xlu0 %784
        %788 = vset.pattern.permute.xlu0 0
        %789 = vperm.xlu0 %788, %v455
        %v790 = vpop.permute.xlu0 %789
        %793 = vset.pattern.permute.xlu0 0
        %794 = vperm.xlu0 %793, %v456
        %v795 = vpop.permute.xlu0 %794
        %798 = vset.pattern.permute.xlu0 0
        %799 = vperm.xlu0 %798, %v457
        %v800 = vpop.permute.xlu0 %799
        %803 = vset.pattern.permute.xlu0 0
        %804 = vperm.xlu0 %803, %v458
        %v805 = vpop.permute.xlu0 %804
        %808 = vset.pattern.permute.xlu0 0
        %809 = vperm.xlu0 %808, %v459
        %v810 = vpop.permute.xlu0 %809
        %813 = vset.pattern.permute.xlu0 0
        %814 = vperm.xlu0 %813, %v460
        %v815 = vpop.permute.xlu0 %814
        %818 = vset.pattern.permute.xlu0 0
        %819 = vperm.xlu0 %818, %v461
        %v820 = vpop.permute.xlu0 %819
        %823 = vset.pattern.permute.xlu0 0
        %824 = vperm.xlu0 %823, %v462
        %v825 = vpop.permute.xlu0 %824
        %828 = vset.pattern.permute.xlu0 0
        %829 = vperm.xlu0 %828, %v463
        %v830 = vpop.permute.xlu0 %829
        %833 = vset.pattern.permute.xlu0 0
        %834 = vperm.xlu0 %833, %v464
        %v835 = vpop.permute.xlu0 %834
        %838 = vset.pattern.permute.xlu0 0
        %839 = vperm.xlu0 %838, %v465
        %v840 = vpop.permute.xlu0 %839
        %843 = vset.pattern.permute.xlu0 0
        %844 = vperm.xlu0 %843, %v466
        %v845 = vpop.permute.xlu0 %844
        %848 = vset.pattern.permute.xlu0 0
        %849 = vperm.xlu0 %848, %v467
        %v850 = vpop.permute.xlu0 %849
        %853 = vset.pattern.permute.xlu0 0
        %854 = vperm.xlu0 %853, %v468
        %v855 = vpop.permute.xlu0 %854
        %858 = vset.pattern.permute.xlu0 0
        %859 = vperm.xlu0 %858, %v469
        %v860 = vpop.permute.xlu0 %859
        %863 = vset.pattern.permute.xlu0 0
        %864 = vperm.xlu0 %863, %v470
        %v865 = vpop.permute.xlu0 %864
        %868 = vset.pattern.permute.xlu0 0
        %869 = vperm.xlu0 %868, %v471
        %v870 = vpop.permute.xlu0 %869
        %873 = vset.pattern.permute.xlu0 0
        %874 = vperm.xlu0 %873, %v472
        %v875 = vpop.permute.xlu0 %874
        %878 = vset.pattern.permute.xlu0 0
        %879 = vperm.xlu0 %878, %v473
        %v880 = vpop.permute.xlu0 %879
        %883 = vset.pattern.permute.xlu0 0
        %884 = vperm.xlu0 %883, %v474
        %v885 = vpop.permute.xlu0 %884
        %888 = vset.pattern.permute.xlu0 0
        %889 = vperm.xlu0 %888, %v475
        %v890 = vpop.permute.xlu0 %889
        %893 = vset.pattern.permute.xlu0 0
        %894 = vperm.xlu0 %893, %v476
        %v895 = vpop.permute.xlu0 %894
        %898 = vset.pattern.permute.xlu0 0
        %899 = vperm.xlu0 %898, %v477
        %v900 = vpop.permute.xlu0 %899
        %903 = vset.pattern.permute.xlu0 0
        %904 = vperm.xlu0 %903, %v478
        %v905 = vpop.permute.xlu0 %904
        %908 = vset.pattern.permute.xlu0 0
        %909 = vperm.xlu0 %908, %v479
        %v910 = vpop.permute.xlu0 %909
        %913 = vset.pattern.permute.xlu0 0
        %914 = vperm.xlu0 %913, %v480
        %v915 = vpop.permute.xlu0 %914
        %918 = vset.pattern.permute.xlu0 0
        %919 = vperm.xlu0 %918, %v481
        %v920 = vpop.permute.xlu0 %919
        %923 = vset.pattern.permute.xlu0 0
        %924 = vperm.xlu0 %923, %v482
        %v925 = vpop.permute.xlu0 %924
        %928 = vset.pattern.permute.xlu0 0
        %929 = vperm.xlu0 %928, %v483
        %v930 = vpop.permute.xlu0 %929
        %933 = vset.pattern.permute.xlu0 0
        %934 = vperm.xlu0 %933, %v484
        %v935 = vpop.permute.xlu0 %934
        %938 = vset.pattern.permute.xlu0 0
        %939 = vperm.xlu0 %938, %v485
        %v940 = vpop.permute.xlu0 %939
        %943 = vset.pattern.permute.xlu0 0
        %944 = vperm.xlu0 %943, %v486
        %v945 = vpop.permute.xlu0 %944
        %948 = vset.pattern.permute.xlu0 0
        %949 = vperm.xlu0 %948, %v487
        %v950 = vpop.permute.xlu0 %949
        %953 = vset.pattern.permute.xlu0 0
        %954 = vperm.xlu0 %953, %v488
        %v955 = vpop.permute.xlu0 %954
        %958 = vset.pattern.permute.xlu0 0
        %959 = vperm.xlu0 %958, %v489
        %v960 = vpop.permute.xlu0 %959
        %963 = vset.pattern.permute.xlu0 0
        %964 = vperm.xlu0 %963, %v490
        %v965 = vpop.permute.xlu0 %964
        %968 = vset.pattern.permute.xlu0 0
        %969 = vperm.xlu0 %968, %v491
        %v970 = vpop.permute.xlu0 %969
        %973 = vset.pattern.permute.xlu0 0
        %974 = vperm.xlu0 %973, %v492
        %v975 = vpop.permute.xlu0 %974
        %978 = vset.pattern.permute.xlu0 0
        %979 = vperm.xlu0 %978, %v493
        %v980 = vpop.permute.xlu0 %979
        %983 = vset.pattern.permute.xlu0 0
        %984 = vperm.xlu0 %983, %v494
        %v985 = vpop.permute.xlu0 %984
        %988 = vset.pattern.permute.xlu0 0
        %989 = vperm.xlu0 %988, %v495
        %v990 = vpop.permute.xlu0 %989
        %993 = vset.pattern.permute.xlu0 0
        %994 = vperm.xlu0 %993, %v496
        %v995 = vpop.permute.xlu0 %994
        %998 = vset.pattern.permute.xlu0 0
        %999 = vperm.xlu0 %998, %v497
        %v1000 = vpop.permute.xlu0 %999
        %1003 = vset.pattern.permute.xlu0 0
        %1004 = vperm.xlu0 %1003, %v498
        %v1005 = vpop.permute.xlu0 %1004
        %1008 = vset.pattern.permute.xlu0 0
        %1009 = vperm.xlu0 %1008, %v499
        %v1010 = vpop.permute.xlu0 %1009
        %1013 = vset.pattern.permute.xlu0 0
        %1014 = vperm.xlu0 %1013, %v500
        %v1015 = vpop.permute.xlu0 %1014
        %1018 = vset.pattern.permute.xlu0 0
        %1019 = vperm.xlu0 %1018, %v501
        %v1020 = vpop.permute.xlu0 %1019
        %1023 = vset.pattern.permute.xlu0 0
        %1024 = vperm.xlu0 %1023, %v502
        %v1025 = vpop.permute.xlu0 %1024
        %1028 = vset.pattern.permute.xlu0 0
        %1029 = vperm.xlu0 %1028, %v503
        %v1030 = vpop.permute.xlu0 %1029
        %1033 = vset.pattern.permute.xlu0 0
        %1034 = vperm.xlu0 %1033, %v504
        %v1035 = vpop.permute.xlu0 %1034
        %1038 = vset.pattern.permute.xlu0 0
        %1039 = vperm.xlu0 %1038, %v505
        %v1040 = vpop.permute.xlu0 %1039
        %1043 = vset.pattern.permute.xlu0 0
        %1044 = vperm.xlu0 %1043, %v506
        %v1045 = vpop.permute.xlu0 %1044
        %1048 = vset.pattern.permute.xlu0 0
        %1049 = vperm.xlu0 %1048, %v507
        %v1050 = vpop.permute.xlu0 %1049
        %1053 = vset.pattern.permute.xlu0 0
        %1054 = vperm.xlu0 %1053, %v508
        %v1055 = vpop.permute.xlu0 %1054
        %1058 = vset.pattern.permute.xlu0 0
        %1059 = vperm.xlu0 %1058, %v509
        %v1060 = vpop.permute.xlu0 %1059
        %1063 = vset.pattern.permute.xlu0 0
        %1064 = vperm.xlu0 %1063, %v510
        %v1065 = vpop.permute.xlu0 %1064
        %1068 = vset.pattern.permute.xlu0 0
        %1069 = vperm.xlu0 %1068, %v511
        %v1070 = vpop.permute.xlu0 %1069
        %1073 = vset.pattern.permute.xlu0 0
        %1074 = vperm.xlu0 %1073, %v512
        %v1075 = vpop.permute.xlu0 %1074
        %1078 = vset.pattern.permute.xlu0 0
        %1079 = vperm.xlu0 %1078, %v513
        %v1080 = vpop.permute.xlu0 %1079
        %1083 = vset.pattern.permute.xlu0 0
        %1084 = vperm.xlu0 %1083, %v514
        %v1085 = vpop.permute.xlu0 %1084
        %1088 = vset.pattern.permute.xlu0 0
        %1089 = vperm.xlu0 %1088, %v515
        %v1090 = vpop.permute.xlu0 %1089
        %1093 = vset.pattern.permute.xlu0 0
        %1094 = vperm.xlu0 %1093, %v516
        %v1095 = vpop.permute.xlu0 %1094
        %1098 = vset.pattern.permute.xlu0 0
        %1099 = vperm.xlu0 %1098, %v517
        %v1100 = vpop.permute.xlu0 %1099
        %1103 = vset.pattern.permute.xlu0 0
        %1104 = vperm.xlu0 %1103, %v518
        %v1105 = vpop.permute.xlu0 %1104
        %1108 = vset.pattern.permute.xlu0 0
        %1109 = vperm.xlu0 %1108, %v519
        %v1110 = vpop.permute.xlu0 %1109
        %1113 = vset.pattern.permute.xlu0 0
        %1114 = vperm.xlu0 %1113, %v520
        %v1115 = vpop.permute.xlu0 %1114
        %1118 = vset.pattern.permute.xlu0 0
        %1119 = vperm.xlu0 %1118, %v521
        %v1120 = vpop.permute.xlu0 %1119
        %1123 = vset.pattern.permute.xlu0 0
        %1124 = vperm.xlu0 %1123, %v522
        %v1125 = vpop.permute.xlu0 %1124
        %1128 = vset.pattern.permute.xlu0 0
        %1129 = vperm.xlu0 %1128, %v523
        %v1130 = vpop.permute.xlu0 %1129
        %1133 = vset.pattern.permute.xlu0 0
        %1134 = vperm.xlu0 %1133, %v524
        %v1135 = vpop.permute.xlu0 %1134
        %1138 = vset.pattern.permute.xlu0 0
        %1139 = vperm.xlu0 %1138, %v525
        %v1140 = vpop.permute.xlu0 %1139
        %1143 = vset.pattern.permute.xlu0 0
        %1144 = vperm.xlu0 %1143, %v526
        %v1145 = vpop.permute.xlu0 %1144
        %1148 = vset.pattern.permute.xlu0 0
        %1149 = vperm.xlu0 %1148, %v527
        %v1150 = vpop.permute.xlu0 %1149
        %1153 = vset.pattern.permute.xlu0 0
        %1154 = vperm.xlu0 %1153, %v528
        %v1155 = vpop.permute.xlu0 %1154
        %1158 = vset.pattern.permute.xlu0 0
        %1159 = vperm.xlu0 %1158, %v529
        %v1160 = vpop.permute.xlu0 %1159
        %1163 = vset.pattern.permute.xlu0 0
        %1164 = vperm.xlu0 %1163, %v530
        %v1165 = vpop.permute.xlu0 %1164
        %1168 = vset.pattern.permute.xlu0 0
        %1169 = vperm.xlu0 %1168, %v531
        %v1170 = vpop.permute.xlu0 %1169
        %1173 = vset.pattern.permute.xlu0 0
        %1174 = vperm.xlu0 %1173, %v532
        %v1175 = vpop.permute.xlu0 %1174
        %1178 = vset.pattern.permute.xlu0 0
        %1179 = vperm.xlu0 %1178, %v533
        %v1180 = vpop.permute.xlu0 %1179
        %1183 = vset.pattern.permute.xlu0 0
        %1184 = vperm.xlu0 %1183, %v534
        %v1185 = vpop.permute.xlu0 %1184
        %1188 = vset.pattern.permute.xlu0 0
        %1189 = vperm.xlu0 %1188, %v535
        %v1190 = vpop.permute.xlu0 %1189
        %1193 = vset.pattern.permute.xlu0 0
        %1194 = vperm.xlu0 %1193, %v536
        %v1195 = vpop.permute.xlu0 %1194
        %1198 = vset.pattern.permute.xlu0 0
        %1199 = vperm.xlu0 %1198, %v537
        %v1200 = vpop.permute.xlu0 %1199
        %1203 = vset.pattern.permute.xlu0 0
        %1204 = vperm.xlu0 %1203, %v538
        %v1205 = vpop.permute.xlu0 %1204
        %1208 = vset.pattern.permute.xlu0 0
        %1209 = vperm.xlu0 %1208, %v539
        %v1210 = vpop.permute.xlu0 %1209
        %1213 = vset.pattern.permute.xlu0 0
        %1214 = vperm.xlu0 %1213, %v540
        %v1215 = vpop.permute.xlu0 %1214
        %1218 = vset.pattern.permute.xlu0 0
        %1219 = vperm.xlu0 %1218, %v541
        %v1220 = vpop.permute.xlu0 %1219
        %1223 = vset.pattern.permute.xlu0 0
        %1224 = vperm.xlu0 %1223, %v542
        %v1225 = vpop.permute.xlu0 %1224
        %1228 = vset.pattern.permute.xlu0 0
        %1229 = vperm.xlu0 %1228, %v543
        %v1230 = vpop.permute.xlu0 %1229
        %1233 = vset.pattern.permute.xlu0 0
        %1234 = vperm.xlu0 %1233, %v544
        %v1235 = vpop.permute.xlu0 %1234
        %1238 = vset.pattern.permute.xlu0 0
        %1239 = vperm.xlu0 %1238, %v545
        %v1240 = vpop.permute.xlu0 %1239
        %1243 = vset.pattern.permute.xlu0 0
        %1244 = vperm.xlu0 %1243, %v546
        %v1245 = vpop.permute.xlu0 %1244
        %1248 = vset.pattern.permute.xlu0 0
        %1249 = vperm.xlu0 %1248, %v547
        %v1250 = vpop.permute.xlu0 %1249
        %1253 = vset.pattern.permute.xlu0 0
        %1254 = vperm.xlu0 %1253, %v548
        %v1255 = vpop.permute.xlu0 %1254
        %1258 = vset.pattern.permute.xlu0 0
        %1259 = vperm.xlu0 %1258, %v549
        %v1260 = vpop.permute.xlu0 %1259
        %1263 = vset.pattern.permute.xlu0 0
        %1264 = vperm.xlu0 %1263, %v550
        %v1265 = vpop.permute.xlu0 %1264
        %1268 = vset.pattern.permute.xlu0 0
        %1269 = vperm.xlu0 %1268, %v551
        %v1270 = vpop.permute.xlu0 %1269
        %1273 = vset.pattern.permute.xlu0 0
        %1274 = vperm.xlu0 %1273, %v552
        %v1275 = vpop.permute.xlu0 %1274
        %1278 = vset.pattern.permute.xlu0 0
        %1279 = vperm.xlu0 %1278, %v553
        %v1280 = vpop.permute.xlu0 %1279
        %1283 = vset.pattern.permute.xlu0 0
        %1284 = vperm.xlu0 %1283, %v554
        %v1285 = vpop.permute.xlu0 %1284
        %1288 = vset.pattern.permute.xlu0 0
        %1289 = vperm.xlu0 %1288, %v555
        %v1290 = vpop.permute.xlu0 %1289
        %1293 = vset.pattern.permute.xlu0 0
        %1294 = vperm.xlu0 %1293, %v556
        %v1295 = vpop.permute.xlu0 %1294
        %1298 = vset.pattern.permute.xlu0 0
        %1299 = vperm.xlu0 %1298, %v557
        %v1300 = vpop.permute.xlu0 %1299
        %1303 = vset.pattern.permute.xlu0 0
        %1304 = vperm.xlu0 %1303, %v558
        %v1305 = vpop.permute.xlu0 %1304
        %1308 = vset.pattern.permute.xlu0 0
        %1309 = vperm.xlu0 %1308, %v559
        %v1310 = vpop.permute.xlu0 %1309
        %1313 = vset.pattern.permute.xlu0 0
        %1314 = vperm.xlu0 %1313, %v560
        %v1315 = vpop.permute.xlu0 %1314
        %1318 = vset.pattern.permute.xlu0 0
        %1319 = vperm.xlu0 %1318, %v561
        %v1320 = vpop.permute.xlu0 %1319
        %1323 = vset.pattern.permute.xlu0 0
        %1324 = vperm.xlu0 %1323, %v562
        %v1325 = vpop.permute.xlu0 %1324
        %1328 = vset.pattern.permute.xlu0 0
        %1329 = vperm.xlu0 %1328, %v563
        %v1330 = vpop.permute.xlu0 %1329
        %v1460 = vunpack.c.l.b16 %v564
        %v1461 = vunpack.c.l.b16 %v565
        %v1462 = vunpack.c.l.b16 %v566
        %v1463 = vunpack.c.l.b16 %v567
        %v1464 = vunpack.c.l.b16 %v568
        %v1465 = vunpack.c.l.b16 %v569
        %v1466 = vunpack.c.l.b16 %v570
        %v1467 = vunpack.c.l.b16 %v571
        %v1468 = vunpack.c.l.b16 %v572
        %v1469 = vunpack.c.l.b16 %v573
        %v1470 = vunpack.c.l.b16 %v574
        %v1471 = vunpack.c.l.b16 %v575
        %v1472 = vunpack.c.l.b16 %v576
        %v1473 = vunpack.c.l.b16 %v577
        %v1474 = vunpack.c.l.b16 %v578
        %v1475 = vunpack.c.l.b16 %v579
        %v1476 = vunpack.c.l.b16 %v580
        %v1477 = vunpack.c.l.b16 %v581
        %v1478 = vunpack.c.l.b16 %v582
        %v1479 = vunpack.c.l.b16 %v583
        %v1480 = vunpack.c.l.b16 %v584
        %v1481 = vunpack.c.l.b16 %v585
        %v1482 = vunpack.c.l.b16 %v586
        %v1483 = vunpack.c.l.b16 %v587
        %v1484 = vunpack.c.l.b16 %v588
        %v1485 = vunpack.c.l.b16 %v589
        %v1486 = vunpack.c.l.b16 %v590
        %v1487 = vunpack.c.l.b16 %v591
        %v1488 = vunpack.c.l.b16 %v592
        %v1489 = vunpack.c.l.b16 %v593
        %v1490 = vunpack.c.l.b16 %v594
        %v1491 = vunpack.c.l.b16 %v595
        %v1492 = vunpack.c.l.b16 %v596
        %v1493 = vunpack.c.l.b16 %v597
        %v1494 = vunpack.c.l.b16 %v598
        %v1495 = vunpack.c.l.b16 %v599
        %v1496 = vunpack.c.l.b16 %v600
        %v1497 = vunpack.c.l.b16 %v601
        %v1498 = vunpack.c.l.b16 %v602
        %v1499 = vunpack.c.l.b16 %v603
        %v1500 = vunpack.c.l.b16 %v604
        %v1501 = vunpack.c.l.b16 %v605
        %v1502 = vunpack.c.l.b16 %v606
        %v1503 = vunpack.c.l.b16 %v607
        %v1504 = vunpack.c.l.b16 %v608
        %v1505 = vunpack.c.l.b16 %v609
        %v1506 = vunpack.c.l.b16 %v610
        %v1507 = vunpack.c.l.b16 %v611
        %v1508 = vunpack.c.l.b16 %v612
        %v1509 = vunpack.c.l.b16 %v613
        %v1510 = vunpack.c.l.b16 %v614
        %v1511 = vunpack.c.l.b16 %v615
        %v1512 = vunpack.c.l.b16 %v616
        %v1513 = vunpack.c.l.b16 %v617
        %v1514 = vunpack.c.l.b16 %v618
        %v1515 = vunpack.c.l.b16 %v619
        %v1516 = vunpack.c.l.b16 %v620
        %v1517 = vunpack.c.l.b16 %v621
        %v1518 = vunpack.c.l.b16 %v622
        %v1519 = vunpack.c.l.b16 %v623
        %v1520 = vunpack.c.l.b16 %v624
        %v1521 = vunpack.c.l.b16 %v625
        %v1522 = vunpack.c.l.b16 %v626
        %v1523 = vunpack.c.l.b16 %v627
        %v1524 = vunpack.c.l.b16 %v628
        %v1525 = vunpack.c.l.b16 %v629
        %v1526 = vunpack.c.l.b16 %v630
        %v1527 = vunpack.c.l.b16 %v631
        %v1528 = vunpack.c.l.b16 %v632
        %v1529 = vunpack.c.l.b16 %v633
        %v1530 = vunpack.c.l.b16 %v634
        %v1531 = vunpack.c.l.b16 %v635
        %v1532 = vunpack.c.l.b16 %v636
        %v1533 = vunpack.c.l.b16 %v637
        %v1534 = vunpack.c.l.b16 %v638
        %v1535 = vunpack.c.l.b16 %v639
        %v1536 = vunpack.c.l.b16 %v640
        %v1537 = vunpack.c.l.b16 %v641
        %v1538 = vunpack.c.l.b16 %v642
        %v1539 = vunpack.c.l.b16 %v643
        %v1540 = vunpack.c.l.b16 %v644
        %v1541 = vunpack.c.l.b16 %v645
        %v1542 = vunpack.c.l.b16 %v646
        %v1543 = vunpack.c.l.b16 %v647
        %v1544 = vunpack.c.l.b16 %v648
        %v1545 = vunpack.c.l.b16 %v649
        %v1546 = vunpack.c.l.b16 %v650
        %v1547 = vunpack.c.l.b16 %v651
        %v1548 = vunpack.c.l.b16 %v652
        %v1549 = vunpack.c.l.b16 %v653
        %v1550 = vunpack.c.l.b16 %v654
        %v1551 = vunpack.c.l.b16 %v655
        %v1552 = vunpack.c.l.b16 %v656
        %v1553 = vunpack.c.l.b16 %v657
        %v1554 = vunpack.c.l.b16 %v658
        %v1555 = vunpack.c.l.b16 %v659
        %v1556 = vunpack.c.l.b16 %v660
        %v1557 = vunpack.c.l.b16 %v661
        %v1558 = vunpack.c.l.b16 %v662
        %v1559 = vunpack.c.l.b16 %v663
        %v1560 = vunpack.c.l.b16 %v664
        %v1561 = vunpack.c.l.b16 %v665
        %v1562 = vunpack.c.l.b16 %v666
        %v1563 = vunpack.c.l.b16 %v667
        %v1564 = vunpack.c.l.b16 %v668
        %v1565 = vunpack.c.l.b16 %v669
        %v1566 = vunpack.c.l.b16 %v670
        %v1567 = vunpack.c.l.b16 %v671
        %v1568 = vunpack.c.l.b16 %v672
        %v1569 = vunpack.c.l.b16 %v673
        %v1570 = vunpack.c.l.b16 %v674
        %v1571 = vunpack.c.l.b16 %v675
        %v1572 = vunpack.c.l.b16 %v676
        %v1573 = vunpack.c.l.b16 %v677
        %v1574 = vunpack.c.l.b16 %v678
        %v1575 = vunpack.c.l.b16 %v679
        %v1576 = vunpack.c.l.b16 %v680
        %v1577 = vunpack.c.l.b16 %v681
        %v1578 = vunpack.c.l.b16 %v682
        %v1579 = vunpack.c.l.b16 %v683
        %v1580 = vunpack.c.l.b16 %v684
        %v1581 = vunpack.c.l.b16 %v685
        %v1582 = vunpack.c.l.b16 %v686
        %v1583 = vunpack.c.l.b16 %v687
        %v1584 = vunpack.c.l.b16 %v688
        %v1585 = vunpack.c.l.b16 %v689
        %v1586 = vunpack.c.l.b16 %v690
        %v1587 = vunpack.c.l.b16 %v691
        %v1588 = vpack.c.b16 %v1461, %v1460
        %v1589 = vpack.c.b16 %v1463, %v1462
        %v1590 = vpack.c.b16 %v1465, %v1464
        %v1591 = vpack.c.b16 %v1467, %v1466
        %v1592 = vpack.c.b16 %v1469, %v1468
        %v1593 = vpack.c.b16 %v1471, %v1470
        %v1594 = vpack.c.b16 %v1473, %v1472
        %v1595 = vpack.c.b16 %v1475, %v1474
        %v1596 = vpack.c.b16 %v1477, %v1476
        %v1597 = vpack.c.b16 %v1479, %v1478
        %v1598 = vpack.c.b16 %v1481, %v1480
        %v1599 = vpack.c.b16 %v1483, %v1482
        %v1600 = vpack.c.b16 %v1485, %v1484
        %v1601 = vpack.c.b16 %v1487, %v1486
        %v1602 = vpack.c.b16 %v1489, %v1488
        %v1603 = vpack.c.b16 %v1491, %v1490
        %v1604 = vpack.c.b16 %v1493, %v1492
        %v1605 = vpack.c.b16 %v1495, %v1494
        %v1606 = vpack.c.b16 %v1497, %v1496
        %v1607 = vpack.c.b16 %v1499, %v1498
        %v1608 = vpack.c.b16 %v1501, %v1500
        %v1609 = vpack.c.b16 %v1503, %v1502
        %v1610 = vpack.c.b16 %v1505, %v1504
        %v1611 = vpack.c.b16 %v1507, %v1506
        %v1612 = vpack.c.b16 %v1509, %v1508
        %v1613 = vpack.c.b16 %v1511, %v1510
        %v1614 = vpack.c.b16 %v1513, %v1512
        %v1615 = vpack.c.b16 %v1515, %v1514
        %v1616 = vpack.c.b16 %v1517, %v1516
        %v1617 = vpack.c.b16 %v1519, %v1518
        %v1618 = vpack.c.b16 %v1521, %v1520
        %v1619 = vpack.c.b16 %v1523, %v1522
        %v1620 = vpack.c.b16 %v1525, %v1524
        %v1621 = vpack.c.b16 %v1527, %v1526
        %v1622 = vpack.c.b16 %v1529, %v1528
        %v1623 = vpack.c.b16 %v1531, %v1530
        %v1624 = vpack.c.b16 %v1533, %v1532
        %v1625 = vpack.c.b16 %v1535, %v1534
        %v1626 = vpack.c.b16 %v1537, %v1536
        %v1627 = vpack.c.b16 %v1539, %v1538
        %v1628 = vpack.c.b16 %v1541, %v1540
        %v1629 = vpack.c.b16 %v1543, %v1542
        %v1630 = vpack.c.b16 %v1545, %v1544
        %v1631 = vpack.c.b16 %v1547, %v1546
        %v1632 = vpack.c.b16 %v1549, %v1548
        %v1633 = vpack.c.b16 %v1551, %v1550
        %v1634 = vpack.c.b16 %v1553, %v1552
        %v1635 = vpack.c.b16 %v1555, %v1554
        %v1636 = vpack.c.b16 %v1557, %v1556
        %v1637 = vpack.c.b16 %v1559, %v1558
        %v1638 = vpack.c.b16 %v1561, %v1560
        %v1639 = vpack.c.b16 %v1563, %v1562
        %v1640 = vpack.c.b16 %v1565, %v1564
        %v1641 = vpack.c.b16 %v1567, %v1566
        %v1642 = vpack.c.b16 %v1569, %v1568
        %v1643 = vpack.c.b16 %v1571, %v1570
        %v1644 = vpack.c.b16 %v1573, %v1572
        %v1645 = vpack.c.b16 %v1575, %v1574
        %v1646 = vpack.c.b16 %v1577, %v1576
        %v1647 = vpack.c.b16 %v1579, %v1578
        %v1648 = vpack.c.b16 %v1581, %v1580
        %v1649 = vpack.c.b16 %v1583, %v1582
        %v1650 = vpack.c.b16 %v1585, %v1584
        %v1651 = vpack.c.b16 %v1587, %v1586
        %v1656 = vunpack.c.l.b16 %v432
        %v1657 = vunpack.c.l.b16 %v433
        %v1658 = vunpack.c.l.b16 %v434
        %v1659 = vunpack.c.l.b16 %v435
        %v1660 = vpack.c.b16 %v1657, %v1656
        %v1661 = vpack.c.b16 %v1659, %v1658
        %vm1664 = vcmask 261120
        %v1666 = vsel %vm1664, %v1588, 0
        %v1669 = vsel %vm1664, %v1589, 0
        %v1672 = vsel %vm1664, %v1590, 0
        %v1675 = vsel %vm1664, %v1591, 0
        %v1678 = vsel %vm1664, %v1592, 0
        %v1681 = vsel %vm1664, %v1593, 0
        %v1684 = vsel %vm1664, %v1594, 0
        %v1687 = vsel %vm1664, %v1595, 0
        %v1690 = vsel %vm1664, %v1596, 0
        %v1693 = vsel %vm1664, %v1597, 0
        %v1696 = vsel %vm1664, %v1598, 0
        %v1699 = vsel %vm1664, %v1599, 0
        %v1702 = vsel %vm1664, %v1600, 0
        %v1705 = vsel %vm1664, %v1601, 0
        %v1708 = vsel %vm1664, %v1602, 0
        %v1711 = vsel %vm1664, %v1603, 0
        %v1714 = vsel %vm1664, %v1604, 0
        %v1717 = vsel %vm1664, %v1605, 0
        %v1720 = vsel %vm1664, %v1606, 0
        %v1723 = vsel %vm1664, %v1607, 0
        %v1726 = vsel %vm1664, %v1608, 0
        %v1729 = vsel %vm1664, %v1609, 0
        %v1732 = vsel %vm1664, %v1610, 0
        %v1735 = vsel %vm1664, %v1611, 0
        %v1738 = vsel %vm1664, %v1612, 0
        %v1741 = vsel %vm1664, %v1613, 0
        %v1744 = vsel %vm1664, %v1614, 0
        %v1747 = vsel %vm1664, %v1615, 0
        %v1750 = vsel %vm1664, %v1616, 0
        %v1753 = vsel %vm1664, %v1617, 0
        %v1756 = vsel %vm1664, %v1618, 0
        %v1759 = vsel %vm1664, %v1619, 0
        %v1762 = vsel %vm1664, %v1620, 0
        %v1765 = vsel %vm1664, %v1621, 0
        %v1768 = vsel %vm1664, %v1622, 0
        %v1771 = vsel %vm1664, %v1623, 0
        %v1774 = vsel %vm1664, %v1624, 0
        %v1777 = vsel %vm1664, %v1625, 0
        %v1780 = vsel %vm1664, %v1626, 0
        %v1783 = vsel %vm1664, %v1627, 0
        %v1786 = vsel %vm1664, %v1628, 0
        %v1789 = vsel %vm1664, %v1629, 0
        %v1792 = vsel %vm1664, %v1630, 0
        %v1795 = vsel %vm1664, %v1631, 0
        %v1798 = vsel %vm1664, %v1632, 0
        %v1801 = vsel %vm1664, %v1633, 0
        %v1804 = vsel %vm1664, %v1634, 0
        %v1807 = vsel %vm1664, %v1635, 0
        %v1810 = vsel %vm1664, %v1636, 0
        %v1813 = vsel %vm1664, %v1637, 0
        %v1816 = vsel %vm1664, %v1638, 0
        %v1819 = vsel %vm1664, %v1639, 0
        %v1822 = vsel %vm1664, %v1640, 0
        %v1825 = vsel %vm1664, %v1641, 0
        %v1828 = vsel %vm1664, %v1642, 0
        %v1831 = vsel %vm1664, %v1643, 0
        %v1834 = vsel %vm1664, %v1644, 0
        %v1837 = vsel %vm1664, %v1645, 0
        %v1840 = vsel %vm1664, %v1646, 0
        %v1843 = vsel %vm1664, %v1647, 0
        %v1846 = vsel %vm1664, %v1648, 0
        %v1849 = vsel %vm1664, %v1649, 0
        %v1852 = vsel %vm1664, %v1650, 0
        %v1855 = vsel %vm1664, %v1651, 0
        %1857 = vmatprep.subr.bf16.mxu0 0
        %1858 = vmatpush1.bf16.msra.mxu0 %v1660
        %1859 = vmatprep.subr.bf16.mxu0 0
        %1860 = vmatpush1.bf16.msra.mxu0 %v1661
        %1861 = vmatprep.subr.bf16.mxu0 0
        %1862 = vmatpush1.bf16.msra.mxu0 0
        %1863 = vmatprep.subr.bf16.mxu0 0
        %1864 = vmatpush1.bf16.msra.mxu0 0
        %1865 = vmatprep.subr.bf16.mxu0 0
        %1866 = vmatpush1.bf16.msra.mxu0 0
        %1867 = vmatprep.subr.bf16.mxu0 0
        %1868 = vmatpush1.bf16.msra.mxu0 0
        %1869 = vmatprep.subr.bf16.mxu0 0
        %1870 = vmatpush1.bf16.msra.mxu0 0
        %1871 = vmatprep.subr.bf16.mxu0 0
        %1872 = vmatpush1.bf16.msra.mxu0 0
        %1873 = vmatprep.subr.bf16.mxu0 0
        %1874 = vmatpush1.bf16.msra.mxu0 0
        %1875 = vmatprep.subr.bf16.mxu0 0
        %1876 = vmatpush1.bf16.msra.mxu0 0
        %1877 = vmatprep.subr.bf16.mxu0 0
        %1878 = vmatpush1.bf16.msra.mxu0 0
        %1879 = vmatprep.subr.bf16.mxu0 0
        %1880 = vmatpush1.bf16.msra.mxu0 0
        %1881 = vmatprep.subr.bf16.mxu0 0
        %1882 = vmatpush1.bf16.msra.mxu0 0
        %1883 = vmatprep.subr.bf16.mxu0 0
        %1884 = vmatpush1.bf16.msra.mxu0 0
        %1885 = vmatprep.subr.bf16.mxu0 0
        %1886 = vmatpush1.bf16.msra.mxu0 0
        %1887 = vmatprep.subr.bf16.mxu0 0
        %1888 = vmatpush1.bf16.msra.mxu0 0
        %1889 = vmatprep.mubr.bf16.mxu0 0
        %1890 = vmatmul.mubr.bf16.gmra.mrb[0].mxu0 %v1666
        %v1891 = vpop.f32.mrb[0].mxu0
        %v1892 = vadd.f32 %v695, %v1891
        %v1893 = vpop.f32.mrb[0].mxu0
        %v1894 = vpop.f32.mrb[0].mxu0
        %v1895 = vadd.f32 %v700, %v1894
        %v1896 = vpop.f32.mrb[0].mxu0
        %1897 = vmatprep.mubr.bf16.mxu0 0
        %1898 = vmatmul.mubr.bf16.gmra.mrb[0].mxu0 %v1669
        %v1899 = vpop.f32.mrb[0].mxu0
        %v1900 = vadd.f32 %v705, %v1899
        %v1901 = vpop.f32.mrb[0].mxu0
        %v1902 = vpop.f32.mrb[0].mxu0
        %v1903 = vadd.f32 %v710, %v1902
        %v1904 = vpop.f32.mrb[0].mxu0
        %1905 = vmatprep.mubr.bf16.mxu0 0
        %1906 = vmatmul.mubr.bf16.gmra.mrb[0].mxu0 %v1672
        %v1907 = vpop.f32.mrb[0].mxu0
        %v1908 = vadd.f32 %v715, %v1907
        %v1909 = vpop.f32.mrb[0].mxu0
        %v1910 = vpop.f32.mrb[0].mxu0
        %v1911 = vadd.f32 %v720, %v1910
        %v1912 = vpop.f32.mrb[0].mxu0
        %1913 = vmatprep.mubr.bf16.mxu0 0
        %1914 = vmatmul.mubr.bf16.gmra.mrb[0].mxu0 %v1675
        %v1915 = vpop.f32.mrb[0].mxu0
        %v1916 = vadd.f32 %v725, %v1915
        %v1917 = vpop.f32.mrb[0].mxu0
        %v1918 = vpop.f32.mrb[0].mxu0
        %v1919 = vadd.f32 %v730, %v1918
        %v1920 = vpop.f32.mrb[0].mxu0
        %1921 = vmatprep.mubr.bf16.mxu0 0
        %1922 = vmatmul.mubr.bf16.gmra.mrb[0].mxu0 %v1678
        %v1923 = vpop.f32.mrb[0].mxu0
        %v1924 = vadd.f32 %v735, %v1923
        %v1925 = vpop.f32.mrb[0].mxu0
        %v1926 = vpop.f32.mrb[0].mxu0
        %v1927 = vadd.f32 %v740, %v1926
        %v1928 = vpop.f32.mrb[0].mxu0
        %1929 = vmatprep.mubr.bf16.mxu0 0
        %1930 = vmatmul.mubr.bf16.gmra.mrb[0].mxu0 %v1681
        %v1931 = vpop.f32.mrb[0].mxu0
        %v1932 = vadd.f32 %v745, %v1931
        %v1933 = vpop.f32.mrb[0].mxu0
        %v1934 = vpop.f32.mrb[0].mxu0
        %v1935 = vadd.f32 %v750, %v1934
        %v1936 = vpop.f32.mrb[0].mxu0
        %1937 = vmatprep.mubr.bf16.mxu0 0
        %1938 = vmatmul.mubr.bf16.gmra.mrb[0].mxu0 %v1684
        %v1939 = vpop.f32.mrb[0].mxu0
        %v1940 = vadd.f32 %v755, %v1939
        %v1941 = vpop.f32.mrb[0].mxu0
        %v1942 = vpop.f32.mrb[0].mxu0
        %v1943 = vadd.f32 %v760, %v1942
        %v1944 = vpop.f32.mrb[0].mxu0
        %1945 = vmatprep.mubr.bf16.mxu0 0
        %1946 = vmatmul.mubr.bf16.gmra.mrb[0].mxu0 %v1687
        %v1947 = vpop.f32.mrb[0].mxu0
        %v1948 = vadd.f32 %v765, %v1947
        %v1949 = vpop.f32.mrb[0].mxu0
        %v1950 = vpop.f32.mrb[0].mxu0
        %v1951 = vadd.f32 %v770, %v1950
        %v1952 = vpop.f32.mrb[0].mxu0
        %1953 = vmatprep.mubr.bf16.mxu0 0
        %1954 = vmatmul.mubr.bf16.gmra.mrb[0].mxu0 %v1690
        %v1955 = vpop.f32.mrb[0].mxu0
        %v1956 = vadd.f32 %v775, %v1955
        %v1957 = vpop.f32.mrb[0].mxu0
        %v1958 = vpop.f32.mrb[0].mxu0
        %v1959 = vadd.f32 %v780, %v1958
        %v1960 = vpop.f32.mrb[0].mxu0
        %1961 = vmatprep.mubr.bf16.mxu0 0
        %1962 = vmatmul.mubr.bf16.gmra.mrb[0].mxu0 %v1693
        %v1963 = vpop.f32.mrb[0].mxu0
        %v1964 = vadd.f32 %v785, %v1963
        %v1965 = vpop.f32.mrb[0].mxu0
        %v1966 = vpop.f32.mrb[0].mxu0
        %v1967 = vadd.f32 %v790, %v1966
        %v1968 = vpop.f32.mrb[0].mxu0
        %1969 = vmatprep.mubr.bf16.mxu0 0
        %1970 = vmatmul.mubr.bf16.gmra.mrb[0].mxu0 %v1696
        %v1971 = vpop.f32.mrb[0].mxu0
        %v1972 = vadd.f32 %v795, %v1971
        %v1973 = vpop.f32.mrb[0].mxu0
        %v1974 = vpop.f32.mrb[0].mxu0
        %v1975 = vadd.f32 %v800, %v1974
        %v1976 = vpop.f32.mrb[0].mxu0
        %1977 = vmatprep.mubr.bf16.mxu0 0
        %1978 = vmatmul.mubr.bf16.gmra.mrb[0].mxu0 %v1699
        %v1979 = vpop.f32.mrb[0].mxu0
        %v1980 = vadd.f32 %v805, %v1979
        %v1981 = vpop.f32.mrb[0].mxu0
        %v1982 = vpop.f32.mrb[0].mxu0
        %v1983 = vadd.f32 %v810, %v1982
        %v1984 = vpop.f32.mrb[0].mxu0
        %1985 = vmatprep.mubr.bf16.mxu0 0
        %1986 = vmatmul.mubr.bf16.gmra.mrb[0].mxu0 %v1702
        %v1987 = vpop.f32.mrb[0].mxu0
        %v1988 = vadd.f32 %v815, %v1987
        %v1989 = vpop.f32.mrb[0].mxu0
        %v1990 = vpop.f32.mrb[0].mxu0
        %v1991 = vadd.f32 %v820, %v1990
        %v1992 = vpop.f32.mrb[0].mxu0
        %1993 = vmatprep.mubr.bf16.mxu0 0
        %1994 = vmatmul.mubr.bf16.gmra.mrb[0].mxu0 %v1705
        %v1995 = vpop.f32.mrb[0].mxu0
        %v1996 = vadd.f32 %v825, %v1995
        %v1997 = vpop.f32.mrb[0].mxu0
        %v1998 = vpop.f32.mrb[0].mxu0
        %v1999 = vadd.f32 %v830, %v1998
        %v2000 = vpop.f32.mrb[0].mxu0
        %2001 = vmatprep.mubr.bf16.mxu0 0
        %2002 = vmatmul.mubr.bf16.gmra.mrb[0].mxu0 %v1708
        %v2003 = vpop.f32.mrb[0].mxu0
        %v2004 = vadd.f32 %v835, %v2003
        %v2005 = vpop.f32.mrb[0].mxu0
        %v2006 = vpop.f32.mrb[0].mxu0
        %v2007 = vadd.f32 %v840, %v2006
        %v2008 = vpop.f32.mrb[0].mxu0
        %2009 = vmatprep.mubr.bf16.mxu0 0
        %2010 = vmatmul.mubr.bf16.gmra.mrb[0].mxu0 %v1711
        %v2011 = vpop.f32.mrb[0].mxu0
        %v2012 = vadd.f32 %v845, %v2011
        %v2013 = vpop.f32.mrb[0].mxu0
        %v2014 = vpop.f32.mrb[0].mxu0
        %v2015 = vadd.f32 %v850, %v2014
        %v2016 = vpop.f32.mrb[0].mxu0
        %2017 = vmatprep.mubr.bf16.mxu0 0
        %2018 = vmatmul.mubr.bf16.gmra.mrb[0].mxu0 %v1714
        %v2019 = vpop.f32.mrb[0].mxu0
        %v2020 = vadd.f32 %v855, %v2019
        %v2021 = vpop.f32.mrb[0].mxu0
        %v2022 = vpop.f32.mrb[0].mxu0
        %v2023 = vadd.f32 %v860, %v2022
        %v2024 = vpop.f32.mrb[0].mxu0
        %2025 = vmatprep.mubr.bf16.mxu0 0
        %2026 = vmatmul.mubr.bf16.gmra.mrb[0].mxu0 %v1717
        %v2027 = vpop.f32.mrb[0].mxu0
        %v2028 = vadd.f32 %v865, %v2027
        %v2029 = vpop.f32.mrb[0].mxu0
        %v2030 = vpop.f32.mrb[0].mxu0
        %v2031 = vadd.f32 %v870, %v2030
        %v2032 = vpop.f32.mrb[0].mxu0
        %2033 = vmatprep.mubr.bf16.mxu0 0
        %2034 = vmatmul.mubr.bf16.gmra.mrb[0].mxu0 %v1720
        %v2035 = vpop.f32.mrb[0].mxu0
        %v2036 = vadd.f32 %v875, %v2035
        %v2037 = vpop.f32.mrb[0].mxu0
        %v2038 = vpop.f32.mrb[0].mxu0
        %v2039 = vadd.f32 %v880, %v2038
        %v2040 = vpop.f32.mrb[0].mxu0
        %2041 = vmatprep.mubr.bf16.mxu0 0
        %2042 = vmatmul.mubr.bf16.gmra.mrb[0].mxu0 %v1723
        %v2043 = vpop.f32.mrb[0].mxu0
        %v2044 = vadd.f32 %v885, %v2043
        %v2045 = vpop.f32.mrb[0].mxu0
        %v2046 = vpop.f32.mrb[0].mxu0
        %v2047 = vadd.f32 %v890, %v2046
        %v2048 = vpop.f32.mrb[0].mxu0
        %2049 = vmatprep.mubr.bf16.mxu0 0
        %2050 = vmatmul.mubr.bf16.gmra.mrb[0].mxu0 %v1726
        %v2051 = vpop.f32.mrb[0].mxu0
        %v2052 = vadd.f32 %v895, %v2051
        %v2053 = vpop.f32.mrb[0].mxu0
        %v2054 = vpop.f32.mrb[0].mxu0
        %v2055 = vadd.f32 %v900, %v2054
        %v2056 = vpop.f32.mrb[0].mxu0
        %2057 = vmatprep.mubr.bf16.mxu0 0
        %2058 = vmatmul.mubr.bf16.gmra.mrb[0].mxu0 %v1729
        %v2059 = vpop.f32.mrb[0].mxu0
        %v2060 = vadd.f32 %v905, %v2059
        %v2061 = vpop.f32.mrb[0].mxu0
        %v2062 = vpop.f32.mrb[0].mxu0
        %v2063 = vadd.f32 %v910, %v2062
        %v2064 = vpop.f32.mrb[0].mxu0
        %2065 = vmatprep.mubr.bf16.mxu0 0
        %2066 = vmatmul.mubr.bf16.gmra.mrb[0].mxu0 %v1732
        %v2067 = vpop.f32.mrb[0].mxu0
        %v2068 = vadd.f32 %v915, %v2067
        %v2069 = vpop.f32.mrb[0].mxu0
        %v2070 = vpop.f32.mrb[0].mxu0
        %v2071 = vadd.f32 %v920, %v2070
        %v2072 = vpop.f32.mrb[0].mxu0
        %2073 = vmatprep.mubr.bf16.mxu0 0
        %2074 = vmatmul.mubr.bf16.gmra.mrb[0].mxu0 %v1735
        %v2075 = vpop.f32.mrb[0].mxu0
        %v2076 = vadd.f32 %v925, %v2075
        %v2077 = vpop.f32.mrb[0].mxu0
        %v2078 = vpop.f32.mrb[0].mxu0
        %v2079 = vadd.f32 %v930, %v2078
        %v2080 = vpop.f32.mrb[0].mxu0
        %2081 = vmatprep.mubr.bf16.mxu0 0
        %2082 = vmatmul.mubr.bf16.gmra.mrb[0].mxu0 %v1738
        %v2083 = vpop.f32.mrb[0].mxu0
        %v2084 = vadd.f32 %v935, %v2083
        %v2085 = vpop.f32.mrb[0].mxu0
        %v2086 = vpop.f32.mrb[0].mxu0
        %v2087 = vadd.f32 %v940, %v2086
        %v2088 = vpop.f32.mrb[0].mxu0
        %2089 = vmatprep.mubr.bf16.mxu0 0
        %2090 = vmatmul.mubr.bf16.gmra.mrb[0].mxu0 %v1741
        %v2091 = vpop.f32.mrb[0].mxu0
        %v2092 = vadd.f32 %v945, %v2091
        %v2093 = vpop.f32.mrb[0].mxu0
        %v2094 = vpop.f32.mrb[0].mxu0
        %v2095 = vadd.f32 %v950, %v2094
        %v2096 = vpop.f32.mrb[0].mxu0
        %2097 = vmatprep.mubr.bf16.mxu0 0
        %2098 = vmatmul.mubr.bf16.gmra.mrb[0].mxu0 %v1744
        %v2099 = vpop.f32.mrb[0].mxu0
        %v2100 = vadd.f32 %v955, %v2099
        %v2101 = vpop.f32.mrb[0].mxu0
        %v2102 = vpop.f32.mrb[0].mxu0
        %v2103 = vadd.f32 %v960, %v2102
        %v2104 = vpop.f32.mrb[0].mxu0
        %2105 = vmatprep.mubr.bf16.mxu0 0
        %2106 = vmatmul.mubr.bf16.gmra.mrb[0].mxu0 %v1747
        %v2107 = vpop.f32.mrb[0].mxu0
        %v2108 = vadd.f32 %v965, %v2107
        %v2109 = vpop.f32.mrb[0].mxu0
        %v2110 = vpop.f32.mrb[0].mxu0
        %v2111 = vadd.f32 %v970, %v2110
        %v2112 = vpop.f32.mrb[0].mxu0
        %2113 = vmatprep.mubr.bf16.mxu0 0
        %2114 = vmatmul.mubr.bf16.gmra.mrb[0].mxu0 %v1750
        %v2115 = vpop.f32.mrb[0].mxu0
        %v2116 = vadd.f32 %v975, %v2115
        %v2117 = vpop.f32.mrb[0].mxu0
        %v2118 = vpop.f32.mrb[0].mxu0
        %v2119 = vadd.f32 %v980, %v2118
        %v2120 = vpop.f32.mrb[0].mxu0
        %2121 = vmatprep.mubr.bf16.mxu0 0
        %2122 = vmatmul.mubr.bf16.gmra.mrb[0].mxu0 %v1753
        %v2123 = vpop.f32.mrb[0].mxu0
        %v2124 = vadd.f32 %v985, %v2123
        %v2125 = vpop.f32.mrb[0].mxu0
        %v2126 = vpop.f32.mrb[0].mxu0
        %v2127 = vadd.f32 %v990, %v2126
        %v2128 = vpop.f32.mrb[0].mxu0
        %2129 = vmatprep.mubr.bf16.mxu0 0
        %2130 = vmatmul.mubr.bf16.gmra.mrb[0].mxu0 %v1756
        %v2131 = vpop.f32.mrb[0].mxu0
        %v2132 = vadd.f32 %v995, %v2131
        %v2133 = vpop.f32.mrb[0].mxu0
        %v2134 = vpop.f32.mrb[0].mxu0
        %v2135 = vadd.f32 %v1000, %v2134
        %v2136 = vpop.f32.mrb[0].mxu0
        %2137 = vmatprep.mubr.bf16.mxu0 0
        %2138 = vmatmul.mubr.bf16.gmra.mrb[0].mxu0 %v1759
        %v2139 = vpop.f32.mrb[0].mxu0
        %v2140 = vadd.f32 %v1005, %v2139
        %v2141 = vpop.f32.mrb[0].mxu0
        %v2142 = vpop.f32.mrb[0].mxu0
        %v2143 = vadd.f32 %v1010, %v2142
        %v2144 = vpop.f32.mrb[0].mxu0
        %2145 = vmatprep.mubr.bf16.mxu0 0
        %2146 = vmatmul.mubr.bf16.gmra.mrb[0].mxu0 %v1762
        %v2147 = vpop.f32.mrb[0].mxu0
        %v2148 = vadd.f32 %v1015, %v2147
        %v2149 = vpop.f32.mrb[0].mxu0
        %v2150 = vpop.f32.mrb[0].mxu0
        %v2151 = vadd.f32 %v1020, %v2150
        %v2152 = vpop.f32.mrb[0].mxu0
        %2153 = vmatprep.mubr.bf16.mxu0 0
        %2154 = vmatmul.mubr.bf16.gmra.mrb[0].mxu0 %v1765
        %v2155 = vpop.f32.mrb[0].mxu0
        %v2156 = vadd.f32 %v1025, %v2155
        %v2157 = vpop.f32.mrb[0].mxu0
        %v2158 = vpop.f32.mrb[0].mxu0
        %v2159 = vadd.f32 %v1030, %v2158
        %v2160 = vpop.f32.mrb[0].mxu0
        %2161 = vmatprep.mubr.bf16.mxu0 0
        %2162 = vmatmul.mubr.bf16.gmra.mrb[0].mxu0 %v1768
        %v2163 = vpop.f32.mrb[0].mxu0
        %v2164 = vadd.f32 %v1035, %v2163
        %v2165 = vpop.f32.mrb[0].mxu0
        %v2166 = vpop.f32.mrb[0].mxu0
        %v2167 = vadd.f32 %v1040, %v2166
        %v2168 = vpop.f32.mrb[0].mxu0
        %2169 = vmatprep.mubr.bf16.mxu0 0
        %2170 = vmatmul.mubr.bf16.gmra.mrb[0].mxu0 %v1771
        %v2171 = vpop.f32.mrb[0].mxu0
        %v2172 = vadd.f32 %v1045, %v2171
        %v2173 = vpop.f32.mrb[0].mxu0
        %v2174 = vpop.f32.mrb[0].mxu0
        %v2175 = vadd.f32 %v1050, %v2174
        %v2176 = vpop.f32.mrb[0].mxu0
        %2177 = vmatprep.mubr.bf16.mxu0 0
        %2178 = vmatmul.mubr.bf16.gmra.mrb[0].mxu0 %v1774
        %v2179 = vpop.f32.mrb[0].mxu0
        %v2180 = vadd.f32 %v1055, %v2179
        %v2181 = vpop.f32.mrb[0].mxu0
        %v2182 = vpop.f32.mrb[0].mxu0
        %v2183 = vadd.f32 %v1060, %v2182
        %v2184 = vpop.f32.mrb[0].mxu0
        %2185 = vmatprep.mubr.bf16.mxu0 0
        %2186 = vmatmul.mubr.bf16.gmra.mrb[0].mxu0 %v1777
        %v2187 = vpop.f32.mrb[0].mxu0
        %v2188 = vadd.f32 %v1065, %v2187
        %v2189 = vpop.f32.mrb[0].mxu0
        %v2190 = vpop.f32.mrb[0].mxu0
        %v2191 = vadd.f32 %v1070, %v2190
        %v2192 = vpop.f32.mrb[0].mxu0
        %2193 = vmatprep.mubr.bf16.mxu0 0
        %2194 = vmatmul.mubr.bf16.gmra.mrb[0].mxu0 %v1780
        %v2195 = vpop.f32.mrb[0].mxu0
        %v2196 = vadd.f32 %v1075, %v2195
        %v2197 = vpop.f32.mrb[0].mxu0
        %v2198 = vpop.f32.mrb[0].mxu0
        %v2199 = vadd.f32 %v1080, %v2198
        %v2200 = vpop.f32.mrb[0].mxu0
        %2201 = vmatprep.mubr.bf16.mxu0 0
        %2202 = vmatmul.mubr.bf16.gmra.mrb[0].mxu0 %v1783
        %v2203 = vpop.f32.mrb[0].mxu0
        %v2204 = vadd.f32 %v1085, %v2203
        %v2205 = vpop.f32.mrb[0].mxu0
        %v2206 = vpop.f32.mrb[0].mxu0
        %v2207 = vadd.f32 %v1090, %v2206
        %v2208 = vpop.f32.mrb[0].mxu0
        %2209 = vmatprep.mubr.bf16.mxu0 0
        %2210 = vmatmul.mubr.bf16.gmra.mrb[0].mxu0 %v1786
        %v2211 = vpop.f32.mrb[0].mxu0
        %v2212 = vadd.f32 %v1095, %v2211
        %v2213 = vpop.f32.mrb[0].mxu0
        %v2214 = vpop.f32.mrb[0].mxu0
        %v2215 = vadd.f32 %v1100, %v2214
        %v2216 = vpop.f32.mrb[0].mxu0
        %2217 = vmatprep.mubr.bf16.mxu0 0
        %2218 = vmatmul.mubr.bf16.gmra.mrb[0].mxu0 %v1789
        %v2219 = vpop.f32.mrb[0].mxu0
        %v2220 = vadd.f32 %v1105, %v2219
        %v2221 = vpop.f32.mrb[0].mxu0
        %v2222 = vpop.f32.mrb[0].mxu0
        %v2223 = vadd.f32 %v1110, %v2222
        %v2224 = vpop.f32.mrb[0].mxu0
        %2225 = vmatprep.mubr.bf16.mxu0 0
        %2226 = vmatmul.mubr.bf16.gmra.mrb[0].mxu0 %v1792
        %v2227 = vpop.f32.mrb[0].mxu0
        %v2228 = vadd.f32 %v1115, %v2227
        %v2229 = vpop.f32.mrb[0].mxu0
        %v2230 = vpop.f32.mrb[0].mxu0
        %v2231 = vadd.f32 %v1120, %v2230
        %v2232 = vpop.f32.mrb[0].mxu0
        %2233 = vmatprep.mubr.bf16.mxu0 0
        %2234 = vmatmul.mubr.bf16.gmra.mrb[0].mxu0 %v1795
        %v2235 = vpop.f32.mrb[0].mxu0
        %v2236 = vadd.f32 %v1125, %v2235
        %v2237 = vpop.f32.mrb[0].mxu0
        %v2238 = vpop.f32.mrb[0].mxu0
        %v2239 = vadd.f32 %v1130, %v2238
        %v2240 = vpop.f32.mrb[0].mxu0
        %2241 = vmatprep.mubr.bf16.mxu0 0
        %2242 = vmatmul.mubr.bf16.gmra.mrb[0].mxu0 %v1798
        %v2243 = vpop.f32.mrb[0].mxu0
        %v2244 = vadd.f32 %v1135, %v2243
        %v2245 = vpop.f32.mrb[0].mxu0
        %v2246 = vpop.f32.mrb[0].mxu0
        %v2247 = vadd.f32 %v1140, %v2246
        %v2248 = vpop.f32.mrb[0].mxu0
        %2249 = vmatprep.mubr.bf16.mxu0 0
        %2250 = vmatmul.mubr.bf16.gmra.mrb[0].mxu0 %v1801
        %v2251 = vpop.f32.mrb[0].mxu0
        %v2252 = vadd.f32 %v1145, %v2251
        %v2253 = vpop.f32.mrb[0].mxu0
        %v2254 = vpop.f32.mrb[0].mxu0
        %v2255 = vadd.f32 %v1150, %v2254
        %v2256 = vpop.f32.mrb[0].mxu0
        %2257 = vmatprep.mubr.bf16.mxu0 0
        %2258 = vmatmul.mubr.bf16.gmra.mrb[0].mxu0 %v1804
        %v2259 = vpop.f32.mrb[0].mxu0
        %v2260 = vadd.f32 %v1155, %v2259
        %v2261 = vpop.f32.mrb[0].mxu0
        %v2262 = vpop.f32.mrb[0].mxu0
        %v2263 = vadd.f32 %v1160, %v2262
        %v2264 = vpop.f32.mrb[0].mxu0
        %2265 = vmatprep.mubr.bf16.mxu0 0
        %2266 = vmatmul.mubr.bf16.gmra.mrb[0].mxu0 %v1807
        %v2267 = vpop.f32.mrb[0].mxu0
        %v2268 = vadd.f32 %v1165, %v2267
        %v2269 = vpop.f32.mrb[0].mxu0
        %v2270 = vpop.f32.mrb[0].mxu0
        %v2271 = vadd.f32 %v1170, %v2270
        %v2272 = vpop.f32.mrb[0].mxu0
        %2273 = vmatprep.mubr.bf16.mxu0 0
        %2274 = vmatmul.mubr.bf16.gmra.mrb[0].mxu0 %v1810
        %v2275 = vpop.f32.mrb[0].mxu0
        %v2276 = vadd.f32 %v1175, %v2275
        %v2277 = vpop.f32.mrb[0].mxu0
        %v2278 = vpop.f32.mrb[0].mxu0
        %v2279 = vadd.f32 %v1180, %v2278
        %v2280 = vpop.f32.mrb[0].mxu0
        %2281 = vmatprep.mubr.bf16.mxu0 0
        %2282 = vmatmul.mubr.bf16.gmra.mrb[0].mxu0 %v1813
        %v2283 = vpop.f32.mrb[0].mxu0
        %v2284 = vadd.f32 %v1185, %v2283
        %v2285 = vpop.f32.mrb[0].mxu0
        %v2286 = vpop.f32.mrb[0].mxu0
        %v2287 = vadd.f32 %v1190, %v2286
        %v2288 = vpop.f32.mrb[0].mxu0
        %2289 = vmatprep.mubr.bf16.mxu0 0
        %2290 = vmatmul.mubr.bf16.gmra.mrb[0].mxu0 %v1816
        %v2291 = vpop.f32.mrb[0].mxu0
        %v2292 = vadd.f32 %v1195, %v2291
        %v2293 = vpop.f32.mrb[0].mxu0
        %v2294 = vpop.f32.mrb[0].mxu0
        %v2295 = vadd.f32 %v1200, %v2294
        %v2296 = vpop.f32.mrb[0].mxu0
        %2297 = vmatprep.mubr.bf16.mxu0 0
        %2298 = vmatmul.mubr.bf16.gmra.mrb[0].mxu0 %v1819
        %v2299 = vpop.f32.mrb[0].mxu0
        %v2300 = vadd.f32 %v1205, %v2299
        %v2301 = vpop.f32.mrb[0].mxu0
        %v2302 = vpop.f32.mrb[0].mxu0
        %v2303 = vadd.f32 %v1210, %v2302
        %v2304 = vpop.f32.mrb[0].mxu0
        %2305 = vmatprep.mubr.bf16.mxu0 0
        %2306 = vmatmul.mubr.bf16.gmra.mrb[0].mxu0 %v1822
        %v2307 = vpop.f32.mrb[0].mxu0
        %v2308 = vadd.f32 %v1215, %v2307
        %v2309 = vpop.f32.mrb[0].mxu0
        %v2310 = vpop.f32.mrb[0].mxu0
        %v2311 = vadd.f32 %v1220, %v2310
        %v2312 = vpop.f32.mrb[0].mxu0
        %2313 = vmatprep.mubr.bf16.mxu0 0
        %2314 = vmatmul.mubr.bf16.gmra.mrb[0].mxu0 %v1825
        %v2315 = vpop.f32.mrb[0].mxu0
        %v2316 = vadd.f32 %v1225, %v2315
        %v2317 = vpop.f32.mrb[0].mxu0
        %v2318 = vpop.f32.mrb[0].mxu0
        %v2319 = vadd.f32 %v1230, %v2318
        %v2320 = vpop.f32.mrb[0].mxu0
        %2321 = vmatprep.mubr.bf16.mxu0 0
        %2322 = vmatmul.mubr.bf16.gmra.mrb[0].mxu0 %v1828
        %v2323 = vpop.f32.mrb[0].mxu0
        %v2324 = vadd.f32 %v1235, %v2323
        %v2325 = vpop.f32.mrb[0].mxu0
        %v2326 = vpop.f32.mrb[0].mxu0
        %v2327 = vadd.f32 %v1240, %v2326
        %v2328 = vpop.f32.mrb[0].mxu0
        %2329 = vmatprep.mubr.bf16.mxu0 0
        %2330 = vmatmul.mubr.bf16.gmra.mrb[0].mxu0 %v1831
        %v2331 = vpop.f32.mrb[0].mxu0
        %v2332 = vadd.f32 %v1245, %v2331
        %v2333 = vpop.f32.mrb[0].mxu0
        %v2334 = vpop.f32.mrb[0].mxu0
        %v2335 = vadd.f32 %v1250, %v2334
        %v2336 = vpop.f32.mrb[0].mxu0
        %2337 = vmatprep.mubr.bf16.mxu0 0
        %2338 = vmatmul.mubr.bf16.gmra.mrb[0].mxu0 %v1834
        %v2339 = vpop.f32.mrb[0].mxu0
        %v2340 = vadd.f32 %v1255, %v2339
        %v2341 = vpop.f32.mrb[0].mxu0
        %v2342 = vpop.f32.mrb[0].mxu0
        %v2343 = vadd.f32 %v1260, %v2342
        %v2344 = vpop.f32.mrb[0].mxu0
        %2345 = vmatprep.mubr.bf16.mxu0 0
        %2346 = vmatmul.mubr.bf16.gmra.mrb[0].mxu0 %v1837
        %v2347 = vpop.f32.mrb[0].mxu0
        %v2348 = vadd.f32 %v1265, %v2347
        %v2349 = vpop.f32.mrb[0].mxu0
        %v2350 = vpop.f32.mrb[0].mxu0
        %v2351 = vadd.f32 %v1270, %v2350
        %v2352 = vpop.f32.mrb[0].mxu0
        %2353 = vmatprep.mubr.bf16.mxu0 0
        %2354 = vmatmul.mubr.bf16.gmra.mrb[0].mxu0 %v1840
        %v2355 = vpop.f32.mrb[0].mxu0
        %v2356 = vadd.f32 %v1275, %v2355
        %v2357 = vpop.f32.mrb[0].mxu0
        %v2358 = vpop.f32.mrb[0].mxu0
        %v2359 = vadd.f32 %v1280, %v2358
        %v2360 = vpop.f32.mrb[0].mxu0
        %2361 = vmatprep.mubr.bf16.mxu0 0
        %2362 = vmatmul.mubr.bf16.gmra.mrb[0].mxu0 %v1843
        %v2363 = vpop.f32.mrb[0].mxu0
        %v2364 = vadd.f32 %v1285, %v2363
        %v2365 = vpop.f32.mrb[0].mxu0
        %v2366 = vpop.f32.mrb[0].mxu0
        %v2367 = vadd.f32 %v1290, %v2366
        %v2368 = vpop.f32.mrb[0].mxu0
        %2369 = vmatprep.mubr.bf16.mxu0 0
        %2370 = vmatmul.mubr.bf16.gmra.mrb[0].mxu0 %v1846
        %v2371 = vpop.f32.mrb[0].mxu0
        %v2372 = vadd.f32 %v1295, %v2371
        %v2373 = vpop.f32.mrb[0].mxu0
        %v2374 = vpop.f32.mrb[0].mxu0
        %v2375 = vadd.f32 %v1300, %v2374
        %v2376 = vpop.f32.mrb[0].mxu0
        %2377 = vmatprep.mubr.bf16.mxu0 0
        %2378 = vmatmul.mubr.bf16.gmra.mrb[0].mxu0 %v1849
        %v2379 = vpop.f32.mrb[0].mxu0
        %v2380 = vadd.f32 %v1305, %v2379
        %v2381 = vpop.f32.mrb[0].mxu0
        %v2382 = vpop.f32.mrb[0].mxu0
        %v2383 = vadd.f32 %v1310, %v2382
        %v2384 = vpop.f32.mrb[0].mxu0
        %2385 = vmatprep.mubr.bf16.mxu0 0
        %2386 = vmatmul.mubr.bf16.gmra.mrb[0].mxu0 %v1852
        %v2387 = vpop.f32.mrb[0].mxu0
        %v2388 = vadd.f32 %v1315, %v2387
        %v2389 = vpop.f32.mrb[0].mxu0
        %v2390 = vpop.f32.mrb[0].mxu0
        %v2391 = vadd.f32 %v1320, %v2390
        %v2392 = vpop.f32.mrb[0].mxu0
        %2393 = vmatprep.mubr.bf16.mxu0 0
        %2394 = vmatmul.mubr.bf16.gmra.mrb[0].mxu0 %v1855
        %v2395 = vpop.f32.mrb[0].mxu0
        %v2396 = vadd.f32 %v1325, %v2395
        %v2397 = vpop.f32.mrb[0].mxu0
        %v2398 = vpop.f32.mrb[0].mxu0
        %v2399 = vadd.f32 %v1330, %v2398
        %v2400 = vpop.f32.mrb[0].mxu0
        %2401 = vdwg.mxu0
        %v2402 = vmax.f32 %v1892, 0.0
        %v2403 = vmax.f32 %v1895, 0.0
        %v2404 = vmax.f32 %v1900, 0.0
        %v2405 = vmax.f32 %v1903, 0.0
        %v2406 = vmax.f32 %v1908, 0.0
        %v2407 = vmax.f32 %v1911, 0.0
        %v2408 = vmax.f32 %v1916, 0.0
        %v2409 = vmax.f32 %v1919, 0.0
        %v2410 = vmax.f32 %v1924, 0.0
        %v2411 = vmax.f32 %v1927, 0.0
        %v2412 = vmax.f32 %v1932, 0.0
        %v2413 = vmax.f32 %v1935, 0.0
        %v2414 = vmax.f32 %v1940, 0.0
        %v2415 = vmax.f32 %v1943, 0.0
        %v2416 = vmax.f32 %v1948, 0.0
        %v2417 = vmax.f32 %v1951, 0.0
        %v2418 = vmax.f32 %v1956, 0.0
        %v2419 = vmax.f32 %v1959, 0.0
        %v2420 = vmax.f32 %v1964, 0.0
        %v2421 = vmax.f32 %v1967, 0.0
        %v2422 = vmax.f32 %v1972, 0.0
        %v2423 = vmax.f32 %v1975, 0.0
        %v2424 = vmax.f32 %v1980, 0.0
        %v2425 = vmax.f32 %v1983, 0.0
        %v2426 = vmax.f32 %v1988, 0.0
        %v2427 = vmax.f32 %v1991, 0.0
        %v2428 = vmax.f32 %v1996, 0.0
        %v2429 = vmax.f32 %v1999, 0.0
        %v2430 = vmax.f32 %v2004, 0.0
        %v2431 = vmax.f32 %v2007, 0.0
        %v2432 = vmax.f32 %v2012, 0.0
        %v2433 = vmax.f32 %v2015, 0.0
        %v2434 = vmax.f32 %v2020, 0.0
        %v2435 = vmax.f32 %v2023, 0.0
        %v2436 = vmax.f32 %v2028, 0.0
        %v2437 = vmax.f32 %v2031, 0.0
        %v2438 = vmax.f32 %v2036, 0.0
        %v2439 = vmax.f32 %v2039, 0.0
        %v2440 = vmax.f32 %v2044, 0.0
        %v2441 = vmax.f32 %v2047, 0.0
        %v2442 = vmax.f32 %v2052, 0.0
        %v2443 = vmax.f32 %v2055, 0.0
        %v2444 = vmax.f32 %v2060, 0.0
        %v2445 = vmax.f32 %v2063, 0.0
        %v2446 = vmax.f32 %v2068, 0.0
        %v2447 = vmax.f32 %v2071, 0.0
        %v2448 = vmax.f32 %v2076, 0.0
        %v2449 = vmax.f32 %v2079, 0.0
        %v2450 = vmax.f32 %v2084, 0.0
        %v2451 = vmax.f32 %v2087, 0.0
        %v2452 = vmax.f32 %v2092, 0.0
        %v2453 = vmax.f32 %v2095, 0.0
        %v2454 = vmax.f32 %v2100, 0.0
        %v2455 = vmax.f32 %v2103, 0.0
        %v2456 = vmax.f32 %v2108, 0.0
        %v2457 = vmax.f32 %v2111, 0.0
        %v2458 = vmax.f32 %v2116, 0.0
        %v2459 = vmax.f32 %v2119, 0.0
        %v2460 = vmax.f32 %v2124, 0.0
        %v2461 = vmax.f32 %v2127, 0.0
        %v2462 = vmax.f32 %v2132, 0.0
        %v2463 = vmax.f32 %v2135, 0.0
        %v2464 = vmax.f32 %v2140, 0.0
        %v2465 = vmax.f32 %v2143, 0.0
        %v2466 = vmax.f32 %v2148, 0.0
        %v2467 = vmax.f32 %v2151, 0.0
        %v2468 = vmax.f32 %v2156, 0.0
        %v2469 = vmax.f32 %v2159, 0.0
        %v2470 = vmax.f32 %v2164, 0.0
        %v2471 = vmax.f32 %v2167, 0.0
        %v2472 = vmax.f32 %v2172, 0.0
        %v2473 = vmax.f32 %v2175, 0.0
        %v2474 = vmax.f32 %v2180, 0.0
        %v2475 = vmax.f32 %v2183, 0.0
        %v2476 = vmax.f32 %v2188, 0.0
        %v2477 = vmax.f32 %v2191, 0.0
        %v2478 = vmax.f32 %v2196, 0.0
        %v2479 = vmax.f32 %v2199, 0.0
        %v2480 = vmax.f32 %v2204, 0.0
        %v2481 = vmax.f32 %v2207, 0.0
        %v2482 = vmax.f32 %v2212, 0.0
        %v2483 = vmax.f32 %v2215, 0.0
        %v2484 = vmax.f32 %v2220, 0.0
        %v2485 = vmax.f32 %v2223, 0.0
        %v2486 = vmax.f32 %v2228, 0.0
        %v2487 = vmax.f32 %v2231, 0.0
        %v2488 = vmax.f32 %v2236, 0.0
        %v2489 = vmax.f32 %v2239, 0.0
        %v2490 = vmax.f32 %v2244, 0.0
        %v2491 = vmax.f32 %v2247, 0.0
        %v2492 = vmax.f32 %v2252, 0.0
        %v2493 = vmax.f32 %v2255, 0.0
        %v2494 = vmax.f32 %v2260, 0.0
        %v2495 = vmax.f32 %v2263, 0.0
        %v2496 = vmax.f32 %v2268, 0.0
        %v2497 = vmax.f32 %v2271, 0.0
        %v2498 = vmax.f32 %v2276, 0.0
        %v2499 = vmax.f32 %v2279, 0.0
        %v2500 = vmax.f32 %v2284, 0.0
        %v2501 = vmax.f32 %v2287, 0.0
        %v2502 = vmax.f32 %v2292, 0.0
        %v2503 = vmax.f32 %v2295, 0.0
        %v2504 = vmax.f32 %v2300, 0.0
        %v2505 = vmax.f32 %v2303, 0.0
        %v2506 = vmax.f32 %v2308, 0.0
        %v2507 = vmax.f32 %v2311, 0.0
        %v2508 = vmax.f32 %v2316, 0.0
        %v2509 = vmax.f32 %v2319, 0.0
        %v2510 = vmax.f32 %v2324, 0.0
        %v2511 = vmax.f32 %v2327, 0.0
        %v2512 = vmax.f32 %v2332, 0.0
        %v2513 = vmax.f32 %v2335, 0.0
        %v2514 = vmax.f32 %v2340, 0.0
        %v2515 = vmax.f32 %v2343, 0.0
        %v2516 = vmax.f32 %v2348, 0.0
        %v2517 = vmax.f32 %v2351, 0.0
        %v2518 = vmax.f32 %v2356, 0.0
        %v2519 = vmax.f32 %v2359, 0.0
        %v2520 = vmax.f32 %v2364, 0.0
        %v2521 = vmax.f32 %v2367, 0.0
        %v2522 = vmax.f32 %v2372, 0.0
        %v2523 = vmax.f32 %v2375, 0.0
        %v2524 = vmax.f32 %v2380, 0.0
        %v2525 = vmax.f32 %v2383, 0.0
        %v2526 = vmax.f32 %v2388, 0.0
        %v2527 = vmax.f32 %v2391, 0.0
        %v2528 = vmax.f32 %v2396, 0.0
        %v2529 = vmax.f32 %v2399, 0.0
        %v2530 = vpack.c.bf16 %v2403, %v2402
        %v2531 = vpack.c.bf16 %v2405, %v2404
        %v2532 = vpack.c.bf16 %v2407, %v2406
        %v2533 = vpack.c.bf16 %v2409, %v2408
        %v2534 = vpack.c.bf16 %v2411, %v2410
        %v2535 = vpack.c.bf16 %v2413, %v2412
        %v2536 = vpack.c.bf16 %v2415, %v2414
        %v2537 = vpack.c.bf16 %v2417, %v2416
        %v2538 = vpack.c.bf16 %v2419, %v2418
        %v2539 = vpack.c.bf16 %v2421, %v2420
        %v2540 = vpack.c.bf16 %v2423, %v2422
        %v2541 = vpack.c.bf16 %v2425, %v2424
        %v2542 = vpack.c.bf16 %v2427, %v2426
        %v2543 = vpack.c.bf16 %v2429, %v2428
        %v2544 = vpack.c.bf16 %v2431, %v2430
        %v2545 = vpack.c.bf16 %v2433, %v2432
        %v2546 = vpack.c.bf16 %v2435, %v2434
        %v2547 = vpack.c.bf16 %v2437, %v2436
        %v2548 = vpack.c.bf16 %v2439, %v2438
        %v2549 = vpack.c.bf16 %v2441, %v2440
        %v2550 = vpack.c.bf16 %v2443, %v2442
        %v2551 = vpack.c.bf16 %v2445, %v2444
        %v2552 = vpack.c.bf16 %v2447, %v2446
        %v2553 = vpack.c.bf16 %v2449, %v2448
        %v2554 = vpack.c.bf16 %v2451, %v2450
        %v2555 = vpack.c.bf16 %v2453, %v2452
        %v2556 = vpack.c.bf16 %v2455, %v2454
        %v2557 = vpack.c.bf16 %v2457, %v2456
        %v2558 = vpack.c.bf16 %v2459, %v2458
        %v2559 = vpack.c.bf16 %v2461, %v2460
        %v2560 = vpack.c.bf16 %v2463, %v2462
        %v2561 = vpack.c.bf16 %v2465, %v2464
        %v2562 = vpack.c.bf16 %v2467, %v2466
        %v2563 = vpack.c.bf16 %v2469, %v2468
        %v2564 = vpack.c.bf16 %v2471, %v2470
        %v2565 = vpack.c.bf16 %v2473, %v2472
        %v2566 = vpack.c.bf16 %v2475, %v2474
        %v2567 = vpack.c.bf16 %v2477, %v2476
        %v2568 = vpack.c.bf16 %v2479, %v2478
        %v2569 = vpack.c.bf16 %v2481, %v2480
        %v2570 = vpack.c.bf16 %v2483, %v2482
        %v2571 = vpack.c.bf16 %v2485, %v2484
        %v2572 = vpack.c.bf16 %v2487, %v2486
        %v2573 = vpack.c.bf16 %v2489, %v2488
        %v2574 = vpack.c.bf16 %v2491, %v2490
        %v2575 = vpack.c.bf16 %v2493, %v2492
        %v2576 = vpack.c.bf16 %v2495, %v2494
        %v2577 = vpack.c.bf16 %v2497, %v2496
        %v2578 = vpack.c.bf16 %v2499, %v2498
        %v2579 = vpack.c.bf16 %v2501, %v2500
        %v2580 = vpack.c.bf16 %v2503, %v2502
        %v2581 = vpack.c.bf16 %v2505, %v2504
        %v2582 = vpack.c.bf16 %v2507, %v2506
        %v2583 = vpack.c.bf16 %v2509, %v2508
        %v2584 = vpack.c.bf16 %v2511, %v2510
        %v2585 = vpack.c.bf16 %v2513, %v2512
        %v2586 = vpack.c.bf16 %v2515, %v2514
        %v2587 = vpack.c.bf16 %v2517, %v2516
        %v2588 = vpack.c.bf16 %v2519, %v2518
        %v2589 = vpack.c.bf16 %v2521, %v2520
        %v2590 = vpack.c.bf16 %v2523, %v2522
        %v2591 = vpack.c.bf16 %v2525, %v2524
        %v2592 = vpack.c.bf16 %v2527, %v2526
        %v2593 = vpack.c.bf16 %v2529, %v2528
        %v2594 = vld [vmem:[%s3] sm:$0xff]
        %v2595 = vld [vmem:[%s3 + $0x8] sm:$0xff]
        %v2596 = vld [vmem:[%s3 + $0x10] sm:$0xff]
        %v2597 = vld [vmem:[%s3 + $0x18] sm:$0xff]
        %v2598 = vld [vmem:[%s3 + $0x20] sm:$0xff]
        %v2599 = vld [vmem:[%s3 + $0x28] sm:$0xff]
        %v2600 = vld [vmem:[%s3 + $0x30] sm:$0xff]
        %v2601 = vld [vmem:[%s3 + $0x38] sm:$0xff]
        %v2602 = vld [vmem:[%s3 + $0x40] sm:$0xff]
        %v2603 = vld [vmem:[%s3 + $0x48] sm:$0xff]
        %v2604 = vld [vmem:[%s3 + $0x50] sm:$0xff]
        %v2605 = vld [vmem:[%s3 + $0x58] sm:$0xff]
        %v2606 = vld [vmem:[%s3 + $0x60] sm:$0xff]
        %v2607 = vld [vmem:[%s3 + $0x68] sm:$0xff]
        %v2608 = vld [vmem:[%s3 + $0x70] sm:$0xff]
        %v2609 = vld [vmem:[%s3 + $0x78] sm:$0xff]
        %v2610 = vld [vmem:[%s3 + $0x80] sm:$0xff]
        %v2611 = vld [vmem:[%s3 + $0x88] sm:$0xff]
        %v2612 = vld [vmem:[%s3 + $0x90] sm:$0xff]
        %v2613 = vld [vmem:[%s3 + $0x98] sm:$0xff]
        %v2614 = vld [vmem:[%s3 + $0xa0] sm:$0xff]
        %v2615 = vld [vmem:[%s3 + $0xa8] sm:$0xff]
        %v2616 = vld [vmem:[%s3 + $0xb0] sm:$0xff]
        %v2617 = vld [vmem:[%s3 + $0xb8] sm:$0xff]
        %v2618 = vld [vmem:[%s3 + $0xc0] sm:$0xff]
        %v2619 = vld [vmem:[%s3 + $0xc8] sm:$0xff]
        %v2620 = vld [vmem:[%s3 + $0xd0] sm:$0xff]
        %v2621 = vld [vmem:[%s3 + $0xd8] sm:$0xff]
        %v2622 = vld [vmem:[%s3 + $0xe0] sm:$0xff]
        %v2623 = vld [vmem:[%s3 + $0xe8] sm:$0xff]
        %v2624 = vld [vmem:[%s3 + $0xf0] sm:$0xff]
        %v2625 = vld [vmem:[%s3 + $0xf8] sm:$0xff]
        %v2626 = vld [vmem:[%s3 + $0x100] sm:$0xff]
        %v2627 = vld [vmem:[%s3 + $0x108] sm:$0xff]
        %v2628 = vld [vmem:[%s3 + $0x110] sm:$0xff]
        %v2629 = vld [vmem:[%s3 + $0x118] sm:$0xff]
        %v2630 = vld [vmem:[%s3 + $0x120] sm:$0xff]
        %v2631 = vld [vmem:[%s3 + $0x128] sm:$0xff]
        %v2632 = vld [vmem:[%s3 + $0x130] sm:$0xff]
        %v2633 = vld [vmem:[%s3 + $0x138] sm:$0xff]
        %v2634 = vld [vmem:[%s3 + $0x140] sm:$0xff]
        %v2635 = vld [vmem:[%s3 + $0x148] sm:$0xff]
        %v2636 = vld [vmem:[%s3 + $0x150] sm:$0xff]
        %v2637 = vld [vmem:[%s3 + $0x158] sm:$0xff]
        %v2638 = vld [vmem:[%s3 + $0x160] sm:$0xff]
        %v2639 = vld [vmem:[%s3 + $0x168] sm:$0xff]
        %v2640 = vld [vmem:[%s3 + $0x170] sm:$0xff]
        %v2641 = vld [vmem:[%s3 + $0x178] sm:$0xff]
        %v2642 = vld [vmem:[%s3 + $0x180] sm:$0xff]
        %v2643 = vld [vmem:[%s3 + $0x188] sm:$0xff]
        %v2644 = vld [vmem:[%s3 + $0x190] sm:$0xff]
        %v2645 = vld [vmem:[%s3 + $0x198] sm:$0xff]
        %v2646 = vld [vmem:[%s3 + $0x1a0] sm:$0xff]
        %v2647 = vld [vmem:[%s3 + $0x1a8] sm:$0xff]
        %v2648 = vld [vmem:[%s3 + $0x1b0] sm:$0xff]
        %v2649 = vld [vmem:[%s3 + $0x1b8] sm:$0xff]
        %v2650 = vld [vmem:[%s3 + $0x1c0] sm:$0xff]
        %v2651 = vld [vmem:[%s3 + $0x1c8] sm:$0xff]
        %v2652 = vld [vmem:[%s3 + $0x1d0] sm:$0xff]
        %v2653 = vld [vmem:[%s3 + $0x1d8] sm:$0xff]
        %v2654 = vld [vmem:[%s3 + $0x1e0] sm:$0xff]
        %v2655 = vld [vmem:[%s3 + $0x1e8] sm:$0xff]
        %v2656 = vld [vmem:[%s3 + $0x1f0] sm:$0xff]
        %v2657 = vld [vmem:[%s3 + $0x1f8] sm:$0xff]
        %v2658 = vld [vmem:[%s3 + $0x200] sm:$0xff]
        %v2659 = vld [vmem:[%s3 + $0x208] sm:$0xff]
        %v2660 = vld [vmem:[%s3 + $0x210] sm:$0xff]
        %v2661 = vld [vmem:[%s3 + $0x218] sm:$0xff]
        %v2662 = vld [vmem:[%s3 + $0x220] sm:$0xff]
        %v2663 = vld [vmem:[%s3 + $0x228] sm:$0xff]
        %v2664 = vld [vmem:[%s3 + $0x230] sm:$0xff]
        %v2665 = vld [vmem:[%s3 + $0x238] sm:$0xff]
        %v2666 = vld [vmem:[%s3 + $0x240] sm:$0xff]
        %v2667 = vld [vmem:[%s3 + $0x248] sm:$0xff]
        %v2668 = vld [vmem:[%s3 + $0x250] sm:$0xff]
        %v2669 = vld [vmem:[%s3 + $0x258] sm:$0xff]
        %v2670 = vld [vmem:[%s3 + $0x260] sm:$0xff]
        %v2671 = vld [vmem:[%s3 + $0x268] sm:$0xff]
        %v2672 = vld [vmem:[%s3 + $0x270] sm:$0xff]
        %v2673 = vld [vmem:[%s3 + $0x278] sm:$0xff]
        %v2674 = vld [vmem:[%s3 + $0x280] sm:$0xff]
        %v2675 = vld [vmem:[%s3 + $0x288] sm:$0xff]
        %v2676 = vld [vmem:[%s3 + $0x290] sm:$0xff]
        %v2677 = vld [vmem:[%s3 + $0x298] sm:$0xff]
        %v2678 = vld [vmem:[%s3 + $0x2a0] sm:$0xff]
        %v2679 = vld [vmem:[%s3 + $0x2a8] sm:$0xff]
        %v2680 = vld [vmem:[%s3 + $0x2b0] sm:$0xff]
        %v2681 = vld [vmem:[%s3 + $0x2b8] sm:$0xff]
        %v2682 = vld [vmem:[%s3 + $0x2c0] sm:$0xff]
        %v2683 = vld [vmem:[%s3 + $0x2c8] sm:$0xff]
        %v2684 = vld [vmem:[%s3 + $0x2d0] sm:$0xff]
        %v2685 = vld [vmem:[%s3 + $0x2d8] sm:$0xff]
        %v2686 = vld [vmem:[%s3 + $0x2e0] sm:$0xff]
        %v2687 = vld [vmem:[%s3 + $0x2e8] sm:$0xff]
        %v2688 = vld [vmem:[%s3 + $0x2f0] sm:$0xff]
        %v2689 = vld [vmem:[%s3 + $0x2f8] sm:$0xff]
        %v2690 = vld [vmem:[%s3 + $0x300] sm:$0xff]
        %v2691 = vld [vmem:[%s3 + $0x308] sm:$0xff]
        %v2692 = vld [vmem:[%s3 + $0x310] sm:$0xff]
        %v2693 = vld [vmem:[%s3 + $0x318] sm:$0xff]
        %v2694 = vld [vmem:[%s3 + $0x320] sm:$0xff]
        %v2695 = vld [vmem:[%s3 + $0x328] sm:$0xff]
        %v2696 = vld [vmem:[%s3 + $0x330] sm:$0xff]
        %v2697 = vld [vmem:[%s3 + $0x338] sm:$0xff]
        %v2698 = vld [vmem:[%s3 + $0x340] sm:$0xff]
        %v2699 = vld [vmem:[%s3 + $0x348] sm:$0xff]
        %v2700 = vld [vmem:[%s3 + $0x350] sm:$0xff]
        %v2701 = vld [vmem:[%s3 + $0x358] sm:$0xff]
        %v2702 = vld [vmem:[%s3 + $0x360] sm:$0xff]
        %v2703 = vld [vmem:[%s3 + $0x368] sm:$0xff]
        %v2704 = vld [vmem:[%s3 + $0x370] sm:$0xff]
        %v2705 = vld [vmem:[%s3 + $0x378] sm:$0xff]
        %v2706 = vld [vmem:[%s3 + $0x380] sm:$0xff]
        %v2707 = vld [vmem:[%s3 + $0x388] sm:$0xff]
        %v2708 = vld [vmem:[%s3 + $0x390] sm:$0xff]
        %v2709 = vld [vmem:[%s3 + $0x398] sm:$0xff]
        %v2710 = vld [vmem:[%s3 + $0x3a0] sm:$0xff]
        %v2711 = vld [vmem:[%s3 + $0x3a8] sm:$0xff]
        %v2712 = vld [vmem:[%s3 + $0x3b0] sm:$0xff]
        %v2713 = vld [vmem:[%s3 + $0x3b8] sm:$0xff]
        %v2714 = vld [vmem:[%s3 + $0x3c0] sm:$0xff]
        %v2715 = vld [vmem:[%s3 + $0x3c8] sm:$0xff]
        %v2716 = vld [vmem:[%s3 + $0x3d0] sm:$0xff]
        %v2717 = vld [vmem:[%s3 + $0x3d8] sm:$0xff]
        %v2718 = vld [vmem:[%s3 + $0x3e0] sm:$0xff]
        %v2719 = vld [vmem:[%s3 + $0x3e8] sm:$0xff]
        %v2720 = vld [vmem:[%s3 + $0x3f0] sm:$0xff]
        %v2721 = vld [vmem:[%s3 + $0x3f8] sm:$0xff]
        %v2722 = vld [vmem:[%s3 + $0x400] sm:$0xff]
        %v2723 = vld [vmem:[%s3 + $0x408] sm:$0xff]
        %v2724 = vld [vmem:[%s3 + $0x410] sm:$0xff]
        %v2725 = vld [vmem:[%s3 + $0x418] sm:$0xff]
        %v2726 = vld [vmem:[%s3 + $0x420] sm:$0xff]
        %v2727 = vld [vmem:[%s3 + $0x428] sm:$0xff]
        %v2728 = vld [vmem:[%s3 + $0x430] sm:$0xff]
        %v2729 = vld [vmem:[%s3 + $0x438] sm:$0xff]
        %v2730 = vld [vmem:[%s3 + $0x440] sm:$0xff]
        %v2731 = vld [vmem:[%s3 + $0x448] sm:$0xff]
        %v2732 = vld [vmem:[%s3 + $0x450] sm:$0xff]
        %v2733 = vld [vmem:[%s3 + $0x458] sm:$0xff]
        %v2734 = vld [vmem:[%s3 + $0x460] sm:$0xff]
        %v2735 = vld [vmem:[%s3 + $0x468] sm:$0xff]
        %v2736 = vld [vmem:[%s3 + $0x470] sm:$0xff]
        %v2737 = vld [vmem:[%s3 + $0x478] sm:$0xff]
        %v2738 = vld [vmem:[%s3 + $0x480] sm:$0xff]
        %v2739 = vld [vmem:[%s3 + $0x488] sm:$0xff]
        %v2740 = vld [vmem:[%s3 + $0x490] sm:$0xff]
        %v2741 = vld [vmem:[%s3 + $0x498] sm:$0xff]
        %v2742 = vld [vmem:[%s3 + $0x4a0] sm:$0xff]
        %v2743 = vld [vmem:[%s3 + $0x4a8] sm:$0xff]
        %v2744 = vld [vmem:[%s3 + $0x4b0] sm:$0xff]
        %v2745 = vld [vmem:[%s3 + $0x4b8] sm:$0xff]
        %v2746 = vld [vmem:[%s3 + $0x4c0] sm:$0xff]
        %v2747 = vld [vmem:[%s3 + $0x4c8] sm:$0xff]
        %v2748 = vld [vmem:[%s3 + $0x4d0] sm:$0xff]
        %v2749 = vld [vmem:[%s3 + $0x4d8] sm:$0xff]
        %v2750 = vld [vmem:[%s3 + $0x4e0] sm:$0xff]
        %v2751 = vld [vmem:[%s3 + $0x4e8] sm:$0xff]
        %v2752 = vld [vmem:[%s3 + $0x4f0] sm:$0xff]
        %v2753 = vld [vmem:[%s3 + $0x4f8] sm:$0xff]
        %v2754 = vld [vmem:[%s3 + $0x500] sm:$0xff]
        %v2755 = vld [vmem:[%s3 + $0x508] sm:$0xff]
        %v2756 = vld [vmem:[%s3 + $0x510] sm:$0xff]
        %v2757 = vld [vmem:[%s3 + $0x518] sm:$0xff]
        %v2758 = vld [vmem:[%s3 + $0x520] sm:$0xff]
        %v2759 = vld [vmem:[%s3 + $0x528] sm:$0xff]
        %v2760 = vld [vmem:[%s3 + $0x530] sm:$0xff]
        %v2761 = vld [vmem:[%s3 + $0x538] sm:$0xff]
        %v2762 = vld [vmem:[%s3 + $0x540] sm:$0xff]
        %v2763 = vld [vmem:[%s3 + $0x548] sm:$0xff]
        %v2764 = vld [vmem:[%s3 + $0x550] sm:$0xff]
        %v2765 = vld [vmem:[%s3 + $0x558] sm:$0xff]
        %v2766 = vld [vmem:[%s3 + $0x560] sm:$0xff]
        %v2767 = vld [vmem:[%s3 + $0x568] sm:$0xff]
        %v2768 = vld [vmem:[%s3 + $0x570] sm:$0xff]
        %v2769 = vld [vmem:[%s3 + $0x578] sm:$0xff]
        %v2770 = vld [vmem:[%s3 + $0x580] sm:$0xff]
        %v2771 = vld [vmem:[%s3 + $0x588] sm:$0xff]
        %v2772 = vld [vmem:[%s3 + $0x590] sm:$0xff]
        %v2773 = vld [vmem:[%s3 + $0x598] sm:$0xff]
        %v2774 = vld [vmem:[%s3 + $0x5a0] sm:$0xff]
        %v2775 = vld [vmem:[%s3 + $0x5a8] sm:$0xff]
        %v2776 = vld [vmem:[%s3 + $0x5b0] sm:$0xff]
        %v2777 = vld [vmem:[%s3 + $0x5b8] sm:$0xff]
        %v2778 = vld [vmem:[%s3 + $0x5c0] sm:$0xff]
        %v2779 = vld [vmem:[%s3 + $0x5c8] sm:$0xff]
        %v2780 = vld [vmem:[%s3 + $0x5d0] sm:$0xff]
        %v2781 = vld [vmem:[%s3 + $0x5d8] sm:$0xff]
        %v2782 = vld [vmem:[%s3 + $0x5e0] sm:$0xff]
        %v2783 = vld [vmem:[%s3 + $0x5e8] sm:$0xff]
        %v2784 = vld [vmem:[%s3 + $0x5f0] sm:$0xff]
        %v2785 = vld [vmem:[%s3 + $0x5f8] sm:$0xff]
        %v2786 = vld [vmem:[%s3 + $0x600] sm:$0xff]
        %v2787 = vld [vmem:[%s3 + $0x608] sm:$0xff]
        %v2788 = vld [vmem:[%s3 + $0x610] sm:$0xff]
        %v2789 = vld [vmem:[%s3 + $0x618] sm:$0xff]
        %v2790 = vld [vmem:[%s3 + $0x620] sm:$0xff]
        %v2791 = vld [vmem:[%s3 + $0x628] sm:$0xff]
        %v2792 = vld [vmem:[%s3 + $0x630] sm:$0xff]
        %v2793 = vld [vmem:[%s3 + $0x638] sm:$0xff]
        %v2794 = vld [vmem:[%s3 + $0x640] sm:$0xff]
        %v2795 = vld [vmem:[%s3 + $0x648] sm:$0xff]
        %v2796 = vld [vmem:[%s3 + $0x650] sm:$0xff]
        %v2797 = vld [vmem:[%s3 + $0x658] sm:$0xff]
        %v2798 = vld [vmem:[%s3 + $0x660] sm:$0xff]
        %v2799 = vld [vmem:[%s3 + $0x668] sm:$0xff]
        %v2800 = vld [vmem:[%s3 + $0x670] sm:$0xff]
        %v2801 = vld [vmem:[%s3 + $0x678] sm:$0xff]
        %v2802 = vld [vmem:[%s3 + $0x680] sm:$0xff]
        %v2803 = vld [vmem:[%s3 + $0x688] sm:$0xff]
        %v2804 = vld [vmem:[%s3 + $0x690] sm:$0xff]
        %v2805 = vld [vmem:[%s3 + $0x698] sm:$0xff]
        %v2806 = vld [vmem:[%s3 + $0x6a0] sm:$0xff]
        %v2807 = vld [vmem:[%s3 + $0x6a8] sm:$0xff]
        %v2808 = vld [vmem:[%s3 + $0x6b0] sm:$0xff]
        %v2809 = vld [vmem:[%s3 + $0x6b8] sm:$0xff]
        %v2810 = vld [vmem:[%s3 + $0x6c0] sm:$0xff]
        %v2811 = vld [vmem:[%s3 + $0x6c8] sm:$0xff]
        %v2812 = vld [vmem:[%s3 + $0x6d0] sm:$0xff]
        %v2813 = vld [vmem:[%s3 + $0x6d8] sm:$0xff]
        %v2814 = vld [vmem:[%s3 + $0x6e0] sm:$0xff]
        %v2815 = vld [vmem:[%s3 + $0x6e8] sm:$0xff]
        %v2816 = vld [vmem:[%s3 + $0x6f0] sm:$0xff]
        %v2817 = vld [vmem:[%s3 + $0x6f8] sm:$0xff]
        %v2818 = vld [vmem:[%s3 + $0x700] sm:$0xff]
        %v2819 = vld [vmem:[%s3 + $0x708] sm:$0xff]
        %v2820 = vld [vmem:[%s3 + $0x710] sm:$0xff]
        %v2821 = vld [vmem:[%s3 + $0x718] sm:$0xff]
        %v2822 = vld [vmem:[%s3 + $0x720] sm:$0xff]
        %v2823 = vld [vmem:[%s3 + $0x728] sm:$0xff]
        %v2824 = vld [vmem:[%s3 + $0x730] sm:$0xff]
        %v2825 = vld [vmem:[%s3 + $0x738] sm:$0xff]
        %v2826 = vld [vmem:[%s3 + $0x740] sm:$0xff]
        %v2827 = vld [vmem:[%s3 + $0x748] sm:$0xff]
        %v2828 = vld [vmem:[%s3 + $0x750] sm:$0xff]
        %v2829 = vld [vmem:[%s3 + $0x758] sm:$0xff]
        %v2830 = vld [vmem:[%s3 + $0x760] sm:$0xff]
        %v2831 = vld [vmem:[%s3 + $0x768] sm:$0xff]
        %v2832 = vld [vmem:[%s3 + $0x770] sm:$0xff]
        %v2833 = vld [vmem:[%s3 + $0x778] sm:$0xff]
        %v2834 = vld [vmem:[%s3 + $0x780] sm:$0xff]
        %v2835 = vld [vmem:[%s3 + $0x788] sm:$0xff]
        %v2836 = vld [vmem:[%s3 + $0x790] sm:$0xff]
        %v2837 = vld [vmem:[%s3 + $0x798] sm:$0xff]
        %v2838 = vld [vmem:[%s3 + $0x7a0] sm:$0xff]
        %v2839 = vld [vmem:[%s3 + $0x7a8] sm:$0xff]
        %v2840 = vld [vmem:[%s3 + $0x7b0] sm:$0xff]
        %v2841 = vld [vmem:[%s3 + $0x7b8] sm:$0xff]
        %v2842 = vld [vmem:[%s3 + $0x7c0] sm:$0xff]
        %v2843 = vld [vmem:[%s3 + $0x7c8] sm:$0xff]
        %v2844 = vld [vmem:[%s3 + $0x7d0] sm:$0xff]
        %v2845 = vld [vmem:[%s3 + $0x7d8] sm:$0xff]
        %v2846 = vld [vmem:[%s3 + $0x7e0] sm:$0xff]
        %v2847 = vld [vmem:[%s3 + $0x7e8] sm:$0xff]
        %v2848 = vld [vmem:[%s3 + $0x7f0] sm:$0xff]
        %v2849 = vld [vmem:[%s3 + $0x7f8] sm:$0xff]
        %v2850 = vld [vmem:[%s4] sm:$0xff]
        %v2851 = vld [vmem:[%s4 + $0x8] sm:$0xff]
        %v2852 = vld [vmem:[%s4 + $0x10] sm:$0xff]
        %v2853 = vld [vmem:[%s4 + $0x18] sm:$0xff]
        %v2854 = vld [vmem:[%s4 + $0x20] sm:$0xff]
        %v2855 = vld [vmem:[%s4 + $0x28] sm:$0xff]
        %v2856 = vld [vmem:[%s4 + $0x30] sm:$0xff]
        %v2857 = vld [vmem:[%s4 + $0x38] sm:$0xff]
        %v2858 = vld [vmem:[%s4 + $0x40] sm:$0xff]
        %v2859 = vld [vmem:[%s4 + $0x48] sm:$0xff]
        %v2860 = vld [vmem:[%s4 + $0x50] sm:$0xff]
        %v2861 = vld [vmem:[%s4 + $0x58] sm:$0xff]
        %v2862 = vld [vmem:[%s4 + $0x60] sm:$0xff]
        %v2863 = vld [vmem:[%s4 + $0x68] sm:$0xff]
        %v2864 = vld [vmem:[%s4 + $0x70] sm:$0xff]
        %v2865 = vld [vmem:[%s4 + $0x78] sm:$0xff]
        %v2866 = vld [vmem:[%s4 + $0x80] sm:$0xff]
        %v2867 = vld [vmem:[%s4 + $0x88] sm:$0xff]
        %v2868 = vld [vmem:[%s4 + $0x90] sm:$0xff]
        %v2869 = vld [vmem:[%s4 + $0x98] sm:$0xff]
        %v2870 = vld [vmem:[%s4 + $0xa0] sm:$0xff]
        %v2871 = vld [vmem:[%s4 + $0xa8] sm:$0xff]
        %v2872 = vld [vmem:[%s4 + $0xb0] sm:$0xff]
        %v2873 = vld [vmem:[%s4 + $0xb8] sm:$0xff]
        %v2874 = vld [vmem:[%s4 + $0xc0] sm:$0xff]
        %v2875 = vld [vmem:[%s4 + $0xc8] sm:$0xff]
        %v2876 = vld [vmem:[%s4 + $0xd0] sm:$0xff]
        %v2877 = vld [vmem:[%s4 + $0xd8] sm:$0xff]
        %v2878 = vld [vmem:[%s4 + $0xe0] sm:$0xff]
        %v2879 = vld [vmem:[%s4 + $0xe8] sm:$0xff]
        %v2880 = vld [vmem:[%s4 + $0xf0] sm:$0xff]
        %v2881 = vld [vmem:[%s4 + $0xf8] sm:$0xff]
        %v2882 = vld [vmem:[%s4 + $0x100] sm:$0xff]
        %v2883 = vld [vmem:[%s4 + $0x108] sm:$0xff]
        %v2884 = vld [vmem:[%s4 + $0x110] sm:$0xff]
        %v2885 = vld [vmem:[%s4 + $0x118] sm:$0xff]
        %v2886 = vld [vmem:[%s4 + $0x120] sm:$0xff]
        %v2887 = vld [vmem:[%s4 + $0x128] sm:$0xff]
        %v2888 = vld [vmem:[%s4 + $0x130] sm:$0xff]
        %v2889 = vld [vmem:[%s4 + $0x138] sm:$0xff]
        %v2890 = vld [vmem:[%s4 + $0x140] sm:$0xff]
        %v2891 = vld [vmem:[%s4 + $0x148] sm:$0xff]
        %v2892 = vld [vmem:[%s4 + $0x150] sm:$0xff]
        %v2893 = vld [vmem:[%s4 + $0x158] sm:$0xff]
        %v2894 = vld [vmem:[%s4 + $0x160] sm:$0xff]
        %v2895 = vld [vmem:[%s4 + $0x168] sm:$0xff]
        %v2896 = vld [vmem:[%s4 + $0x170] sm:$0xff]
        %v2897 = vld [vmem:[%s4 + $0x178] sm:$0xff]
        %v2898 = vld [vmem:[%s4 + $0x180] sm:$0xff]
        %v2899 = vld [vmem:[%s4 + $0x188] sm:$0xff]
        %v2900 = vld [vmem:[%s4 + $0x190] sm:$0xff]
        %v2901 = vld [vmem:[%s4 + $0x198] sm:$0xff]
        %v2902 = vld [vmem:[%s4 + $0x1a0] sm:$0xff]
        %v2903 = vld [vmem:[%s4 + $0x1a8] sm:$0xff]
        %v2904 = vld [vmem:[%s4 + $0x1b0] sm:$0xff]
        %v2905 = vld [vmem:[%s4 + $0x1b8] sm:$0xff]
        %v2906 = vld [vmem:[%s4 + $0x1c0] sm:$0xff]
        %v2907 = vld [vmem:[%s4 + $0x1c8] sm:$0xff]
        %v2908 = vld [vmem:[%s4 + $0x1d0] sm:$0xff]
        %v2909 = vld [vmem:[%s4 + $0x1d8] sm:$0xff]
        %v2910 = vld [vmem:[%s4 + $0x1e0] sm:$0xff]
        %v2911 = vld [vmem:[%s4 + $0x1e8] sm:$0xff]
        %v2912 = vld [vmem:[%s4 + $0x1f0] sm:$0xff]
        %v2913 = vld [vmem:[%s4 + $0x1f8] sm:$0xff]
        %2915 = vset.pattern.permute.xlu0 0
        %2916 = vperm.xlu0 %2915, %v2850
        %v2917 = vpop.permute.xlu0 %2916
        %2920 = vset.pattern.permute.xlu0 0
        %2921 = vperm.xlu0 %2920, %v2851
        %v2922 = vpop.permute.xlu0 %2921
        %2925 = vset.pattern.permute.xlu0 0
        %2926 = vperm.xlu0 %2925, %v2852
        %v2927 = vpop.permute.xlu0 %2926
        %2930 = vset.pattern.permute.xlu0 0
        %2931 = vperm.xlu0 %2930, %v2853
        %v2932 = vpop.permute.xlu0 %2931
        %2935 = vset.pattern.permute.xlu0 0
        %2936 = vperm.xlu0 %2935, %v2854
        %v2937 = vpop.permute.xlu0 %2936
        %2940 = vset.pattern.permute.xlu0 0
        %2941 = vperm.xlu0 %2940, %v2855
        %v2942 = vpop.permute.xlu0 %2941
        %2945 = vset.pattern.permute.xlu0 0
        %2946 = vperm.xlu0 %2945, %v2856
        %v2947 = vpop.permute.xlu0 %2946
        %2950 = vset.pattern.permute.xlu0 0
        %2951 = vperm.xlu0 %2950, %v2857
        %v2952 = vpop.permute.xlu0 %2951
        %2955 = vset.pattern.permute.xlu0 0
        %2956 = vperm.xlu0 %2955, %v2858
        %v2957 = vpop.permute.xlu0 %2956
        %2960 = vset.pattern.permute.xlu0 0
        %2961 = vperm.xlu0 %2960, %v2859
        %v2962 = vpop.permute.xlu0 %2961
        %2965 = vset.pattern.permute.xlu0 0
        %2966 = vperm.xlu0 %2965, %v2860
        %v2967 = vpop.permute.xlu0 %2966
        %2970 = vset.pattern.permute.xlu0 0
        %2971 = vperm.xlu0 %2970, %v2861
        %v2972 = vpop.permute.xlu0 %2971
        %2975 = vset.pattern.permute.xlu0 0
        %2976 = vperm.xlu0 %2975, %v2862
        %v2977 = vpop.permute.xlu0 %2976
        %2980 = vset.pattern.permute.xlu0 0
        %2981 = vperm.xlu0 %2980, %v2863
        %v2982 = vpop.permute.xlu0 %2981
        %2985 = vset.pattern.permute.xlu0 0
        %2986 = vperm.xlu0 %2985, %v2864
        %v2987 = vpop.permute.xlu0 %2986
        %2990 = vset.pattern.permute.xlu0 0
        %2991 = vperm.xlu0 %2990, %v2865
        %v2992 = vpop.permute.xlu0 %2991
        %2995 = vset.pattern.permute.xlu0 0
        %2996 = vperm.xlu0 %2995, %v2866
        %v2997 = vpop.permute.xlu0 %2996
        %3000 = vset.pattern.permute.xlu0 0
        %3001 = vperm.xlu0 %3000, %v2867
        %v3002 = vpop.permute.xlu0 %3001
        %3005 = vset.pattern.permute.xlu0 0
        %3006 = vperm.xlu0 %3005, %v2868
        %v3007 = vpop.permute.xlu0 %3006
        %3010 = vset.pattern.permute.xlu0 0
        %3011 = vperm.xlu0 %3010, %v2869
        %v3012 = vpop.permute.xlu0 %3011
        %3015 = vset.pattern.permute.xlu0 0
        %3016 = vperm.xlu0 %3015, %v2870
        %v3017 = vpop.permute.xlu0 %3016
        %3020 = vset.pattern.permute.xlu0 0
        %3021 = vperm.xlu0 %3020, %v2871
        %v3022 = vpop.permute.xlu0 %3021
        %3025 = vset.pattern.permute.xlu0 0
        %3026 = vperm.xlu0 %3025, %v2872
        %v3027 = vpop.permute.xlu0 %3026
        %3030 = vset.pattern.permute.xlu0 0
        %3031 = vperm.xlu0 %3030, %v2873
        %v3032 = vpop.permute.xlu0 %3031
        %3035 = vset.pattern.permute.xlu0 0
        %3036 = vperm.xlu0 %3035, %v2874
        %v3037 = vpop.permute.xlu0 %3036
        %3040 = vset.pattern.permute.xlu0 0
        %3041 = vperm.xlu0 %3040, %v2875
        %v3042 = vpop.permute.xlu0 %3041
        %3045 = vset.pattern.permute.xlu0 0
        %3046 = vperm.xlu0 %3045, %v2876
        %v3047 = vpop.permute.xlu0 %3046
        %3050 = vset.pattern.permute.xlu0 0
        %3051 = vperm.xlu0 %3050, %v2877
        %v3052 = vpop.permute.xlu0 %3051
        %3055 = vset.pattern.permute.xlu0 0
        %3056 = vperm.xlu0 %3055, %v2878
        %v3057 = vpop.permute.xlu0 %3056
        %3060 = vset.pattern.permute.xlu0 0
        %3061 = vperm.xlu0 %3060, %v2879
        %v3062 = vpop.permute.xlu0 %3061
        %3065 = vset.pattern.permute.xlu0 0
        %3066 = vperm.xlu0 %3065, %v2880
        %v3067 = vpop.permute.xlu0 %3066
        %3070 = vset.pattern.permute.xlu0 0
        %3071 = vperm.xlu0 %3070, %v2881
        %v3072 = vpop.permute.xlu0 %3071
        %3075 = vset.pattern.permute.xlu0 0
        %3076 = vperm.xlu0 %3075, %v2882
        %v3077 = vpop.permute.xlu0 %3076
        %3080 = vset.pattern.permute.xlu0 0
        %3081 = vperm.xlu0 %3080, %v2883
        %v3082 = vpop.permute.xlu0 %3081
        %3085 = vset.pattern.permute.xlu0 0
        %3086 = vperm.xlu0 %3085, %v2884
        %v3087 = vpop.permute.xlu0 %3086
        %3090 = vset.pattern.permute.xlu0 0
        %3091 = vperm.xlu0 %3090, %v2885
        %v3092 = vpop.permute.xlu0 %3091
        %3095 = vset.pattern.permute.xlu0 0
        %3096 = vperm.xlu0 %3095, %v2886
        %v3097 = vpop.permute.xlu0 %3096
        %3100 = vset.pattern.permute.xlu0 0
        %3101 = vperm.xlu0 %3100, %v2887
        %v3102 = vpop.permute.xlu0 %3101
        %3105 = vset.pattern.permute.xlu0 0
        %3106 = vperm.xlu0 %3105, %v2888
        %v3107 = vpop.permute.xlu0 %3106
        %3110 = vset.pattern.permute.xlu0 0
        %3111 = vperm.xlu0 %3110, %v2889
        %v3112 = vpop.permute.xlu0 %3111
        %3115 = vset.pattern.permute.xlu0 0
        %3116 = vperm.xlu0 %3115, %v2890
        %v3117 = vpop.permute.xlu0 %3116
        %3120 = vset.pattern.permute.xlu0 0
        %3121 = vperm.xlu0 %3120, %v2891
        %v3122 = vpop.permute.xlu0 %3121
        %3125 = vset.pattern.permute.xlu0 0
        %3126 = vperm.xlu0 %3125, %v2892
        %v3127 = vpop.permute.xlu0 %3126
        %3130 = vset.pattern.permute.xlu0 0
        %3131 = vperm.xlu0 %3130, %v2893
        %v3132 = vpop.permute.xlu0 %3131
        %3135 = vset.pattern.permute.xlu0 0
        %3136 = vperm.xlu0 %3135, %v2894
        %v3137 = vpop.permute.xlu0 %3136
        %3140 = vset.pattern.permute.xlu0 0
        %3141 = vperm.xlu0 %3140, %v2895
        %v3142 = vpop.permute.xlu0 %3141
        %3145 = vset.pattern.permute.xlu0 0
        %3146 = vperm.xlu0 %3145, %v2896
        %v3147 = vpop.permute.xlu0 %3146
        %3150 = vset.pattern.permute.xlu0 0
        %3151 = vperm.xlu0 %3150, %v2897
        %v3152 = vpop.permute.xlu0 %3151
        %3155 = vset.pattern.permute.xlu0 0
        %3156 = vperm.xlu0 %3155, %v2898
        %v3157 = vpop.permute.xlu0 %3156
        %3160 = vset.pattern.permute.xlu0 0
        %3161 = vperm.xlu0 %3160, %v2899
        %v3162 = vpop.permute.xlu0 %3161
        %3165 = vset.pattern.permute.xlu0 0
        %3166 = vperm.xlu0 %3165, %v2900
        %v3167 = vpop.permute.xlu0 %3166
        %3170 = vset.pattern.permute.xlu0 0
        %3171 = vperm.xlu0 %3170, %v2901
        %v3172 = vpop.permute.xlu0 %3171
        %3175 = vset.pattern.permute.xlu0 0
        %3176 = vperm.xlu0 %3175, %v2902
        %v3177 = vpop.permute.xlu0 %3176
        %3180 = vset.pattern.permute.xlu0 0
        %3181 = vperm.xlu0 %3180, %v2903
        %v3182 = vpop.permute.xlu0 %3181
        %3185 = vset.pattern.permute.xlu0 0
        %3186 = vperm.xlu0 %3185, %v2904
        %v3187 = vpop.permute.xlu0 %3186
        %3190 = vset.pattern.permute.xlu0 0
        %3191 = vperm.xlu0 %3190, %v2905
        %v3192 = vpop.permute.xlu0 %3191
        %3195 = vset.pattern.permute.xlu0 0
        %3196 = vperm.xlu0 %3195, %v2906
        %v3197 = vpop.permute.xlu0 %3196
        %3200 = vset.pattern.permute.xlu0 0
        %3201 = vperm.xlu0 %3200, %v2907
        %v3202 = vpop.permute.xlu0 %3201
        %3205 = vset.pattern.permute.xlu0 0
        %3206 = vperm.xlu0 %3205, %v2908
        %v3207 = vpop.permute.xlu0 %3206
        %3210 = vset.pattern.permute.xlu0 0
        %3211 = vperm.xlu0 %3210, %v2909
        %v3212 = vpop.permute.xlu0 %3211
        %3215 = vset.pattern.permute.xlu0 0
        %3216 = vperm.xlu0 %3215, %v2910
        %v3217 = vpop.permute.xlu0 %3216
        %3220 = vset.pattern.permute.xlu0 0
        %3221 = vperm.xlu0 %3220, %v2911
        %v3222 = vpop.permute.xlu0 %3221
        %3225 = vset.pattern.permute.xlu0 0
        %3226 = vperm.xlu0 %3225, %v2912
        %v3227 = vpop.permute.xlu0 %3226
        %3230 = vset.pattern.permute.xlu0 0
        %3231 = vperm.xlu0 %3230, %v2913
        %v3232 = vpop.permute.xlu0 %3231
        %v3490 = vunpack.c.l.b16 %v2594
        %v3491 = vunpack.c.h.b16 %v2594
        %v3492 = vunpack.c.l.b16 %v2595
        %v3493 = vunpack.c.h.b16 %v2595
        %v3494 = vunpack.c.l.b16 %v2596
        %v3495 = vunpack.c.h.b16 %v2596
        %v3496 = vunpack.c.l.b16 %v2597
        %v3497 = vunpack.c.h.b16 %v2597
        %v3498 = vunpack.c.l.b16 %v2598
        %v3499 = vunpack.c.h.b16 %v2598
        %v3500 = vunpack.c.l.b16 %v2599
        %v3501 = vunpack.c.h.b16 %v2599
        %v3502 = vunpack.c.l.b16 %v2600
        %v3503 = vunpack.c.h.b16 %v2600
        %v3504 = vunpack.c.l.b16 %v2601
        %v3505 = vunpack.c.h.b16 %v2601
        %v3506 = vunpack.c.l.b16 %v2602
        %v3507 = vunpack.c.h.b16 %v2602
        %v3508 = vunpack.c.l.b16 %v2603
        %v3509 = vunpack.c.h.b16 %v2603
        %v3510 = vunpack.c.l.b16 %v2604
        %v3511 = vunpack.c.h.b16 %v2604
        %v3512 = vunpack.c.l.b16 %v2605
        %v3513 = vunpack.c.h.b16 %v2605
        %v3514 = vunpack.c.l.b16 %v2606
        %v3515 = vunpack.c.h.b16 %v2606
        %v3516 = vunpack.c.l.b16 %v2607
        %v3517 = vunpack.c.h.b16 %v2607
        %v3518 = vunpack.c.l.b16 %v2608
        %v3519 = vunpack.c.h.b16 %v2608
        %v3520 = vunpack.c.l.b16 %v2609
        %v3521 = vunpack.c.h.b16 %v2609
        %v3522 = vunpack.c.l.b16 %v2610
        %v3523 = vunpack.c.h.b16 %v2610
        %v3524 = vunpack.c.l.b16 %v2611
        %v3525 = vunpack.c.h.b16 %v2611
        %v3526 = vunpack.c.l.b16 %v2612
        %v3527 = vunpack.c.h.b16 %v2612
        %v3528 = vunpack.c.l.b16 %v2613
        %v3529 = vunpack.c.h.b16 %v2613
        %v3530 = vunpack.c.l.b16 %v2614
        %v3531 = vunpack.c.h.b16 %v2614
        %v3532 = vunpack.c.l.b16 %v2615
        %v3533 = vunpack.c.h.b16 %v2615
        %v3534 = vunpack.c.l.b16 %v2616
        %v3535 = vunpack.c.h.b16 %v2616
        %v3536 = vunpack.c.l.b16 %v2617
        %v3537 = vunpack.c.h.b16 %v2617
        %v3538 = vunpack.c.l.b16 %v2618
        %v3539 = vunpack.c.h.b16 %v2618
        %v3540 = vunpack.c.l.b16 %v2619
        %v3541 = vunpack.c.h.b16 %v2619
        %v3542 = vunpack.c.l.b16 %v2620
        %v3543 = vunpack.c.h.b16 %v2620
        %v3544 = vunpack.c.l.b16 %v2621
        %v3545 = vunpack.c.h.b16 %v2621
        %v3546 = vunpack.c.l.b16 %v2622
        %v3547 = vunpack.c.h.b16 %v2622
        %v3548 = vunpack.c.l.b16 %v2623
        %v3549 = vunpack.c.h.b16 %v2623
        %v3550 = vunpack.c.l.b16 %v2624
        %v3551 = vunpack.c.h.b16 %v2624
        %v3552 = vunpack.c.l.b16 %v2625
        %v3553 = vunpack.c.h.b16 %v2625
        %v3554 = vunpack.c.l.b16 %v2626
        %v3555 = vunpack.c.h.b16 %v2626
        %v3556 = vunpack.c.l.b16 %v2627
        %v3557 = vunpack.c.h.b16 %v2627
        %v3558 = vunpack.c.l.b16 %v2628
        %v3559 = vunpack.c.h.b16 %v2628
        %v3560 = vunpack.c.l.b16 %v2629
        %v3561 = vunpack.c.h.b16 %v2629
        %v3562 = vunpack.c.l.b16 %v2630
        %v3563 = vunpack.c.h.b16 %v2630
        %v3564 = vunpack.c.l.b16 %v2631
        %v3565 = vunpack.c.h.b16 %v2631
        %v3566 = vunpack.c.l.b16 %v2632
        %v3567 = vunpack.c.h.b16 %v2632
        %v3568 = vunpack.c.l.b16 %v2633
        %v3569 = vunpack.c.h.b16 %v2633
        %v3570 = vunpack.c.l.b16 %v2634
        %v3571 = vunpack.c.h.b16 %v2634
        %v3572 = vunpack.c.l.b16 %v2635
        %v3573 = vunpack.c.h.b16 %v2635
        %v3574 = vunpack.c.l.b16 %v2636
        %v3575 = vunpack.c.h.b16 %v2636
        %v3576 = vunpack.c.l.b16 %v2637
        %v3577 = vunpack.c.h.b16 %v2637
        %v3578 = vunpack.c.l.b16 %v2638
        %v3579 = vunpack.c.h.b16 %v2638
        %v3580 = vunpack.c.l.b16 %v2639
        %v3581 = vunpack.c.h.b16 %v2639
        %v3582 = vunpack.c.l.b16 %v2640
        %v3583 = vunpack.c.h.b16 %v2640
        %v3584 = vunpack.c.l.b16 %v2641
        %v3585 = vunpack.c.h.b16 %v2641
        %v3586 = vunpack.c.l.b16 %v2642
        %v3587 = vunpack.c.h.b16 %v2642
        %v3588 = vunpack.c.l.b16 %v2643
        %v3589 = vunpack.c.h.b16 %v2643
        %v3590 = vunpack.c.l.b16 %v2644
        %v3591 = vunpack.c.h.b16 %v2644
        %v3592 = vunpack.c.l.b16 %v2645
        %v3593 = vunpack.c.h.b16 %v2645
        %v3594 = vunpack.c.l.b16 %v2646
        %v3595 = vunpack.c.h.b16 %v2646
        %v3596 = vunpack.c.l.b16 %v2647
        %v3597 = vunpack.c.h.b16 %v2647
        %v3598 = vunpack.c.l.b16 %v2648
        %v3599 = vunpack.c.h.b16 %v2648
        %v3600 = vunpack.c.l.b16 %v2649
        %v3601 = vunpack.c.h.b16 %v2649
        %v3602 = vunpack.c.l.b16 %v2650
        %v3603 = vunpack.c.h.b16 %v2650
        %v3604 = vunpack.c.l.b16 %v2651
        %v3605 = vunpack.c.h.b16 %v2651
        %v3606 = vunpack.c.l.b16 %v2652
        %v3607 = vunpack.c.h.b16 %v2652
        %v3608 = vunpack.c.l.b16 %v2653
        %v3609 = vunpack.c.h.b16 %v2653
        %v3610 = vunpack.c.l.b16 %v2654
        %v3611 = vunpack.c.h.b16 %v2654
        %v3612 = vunpack.c.l.b16 %v2655
        %v3613 = vunpack.c.h.b16 %v2655
        %v3614 = vunpack.c.l.b16 %v2656
        %v3615 = vunpack.c.h.b16 %v2656
        %v3616 = vunpack.c.l.b16 %v2657
        %v3617 = vunpack.c.h.b16 %v2657
        %v3618 = vunpack.c.l.b16 %v2658
        %v3619 = vunpack.c.h.b16 %v2658
        %v3620 = vunpack.c.l.b16 %v2659
        %v3621 = vunpack.c.h.b16 %v2659
        %v3622 = vunpack.c.l.b16 %v2660
        %v3623 = vunpack.c.h.b16 %v2660
        %v3624 = vunpack.c.l.b16 %v2661
        %v3625 = vunpack.c.h.b16 %v2661
        %v3626 = vunpack.c.l.b16 %v2662
        %v3627 = vunpack.c.h.b16 %v2662
        %v3628 = vunpack.c.l.b16 %v2663
        %v3629 = vunpack.c.h.b16 %v2663
        %v3630 = vunpack.c.l.b16 %v2664
        %v3631 = vunpack.c.h.b16 %v2664
        %v3632 = vunpack.c.l.b16 %v2665
        %v3633 = vunpack.c.h.b16 %v2665
        %v3634 = vunpack.c.l.b16 %v2666
        %v3635 = vunpack.c.h.b16 %v2666
        %v3636 = vunpack.c.l.b16 %v2667
        %v3637 = vunpack.c.h.b16 %v2667
        %v3638 = vunpack.c.l.b16 %v2668
        %v3639 = vunpack.c.h.b16 %v2668
        %v3640 = vunpack.c.l.b16 %v2669
        %v3641 = vunpack.c.h.b16 %v2669
        %v3642 = vunpack.c.l.b16 %v2670
        %v3643 = vunpack.c.h.b16 %v2670
        %v3644 = vunpack.c.l.b16 %v2671
        %v3645 = vunpack.c.h.b16 %v2671
        %v3646 = vunpack.c.l.b16 %v2672
        %v3647 = vunpack.c.h.b16 %v2672
        %v3648 = vunpack.c.l.b16 %v2673
        %v3649 = vunpack.c.h.b16 %v2673
        %v3650 = vunpack.c.l.b16 %v2674
        %v3651 = vunpack.c.h.b16 %v2674
        %v3652 = vunpack.c.l.b16 %v2675
        %v3653 = vunpack.c.h.b16 %v2675
        %v3654 = vunpack.c.l.b16 %v2676
        %v3655 = vunpack.c.h.b16 %v2676
        %v3656 = vunpack.c.l.b16 %v2677
        %v3657 = vunpack.c.h.b16 %v2677
        %v3658 = vunpack.c.l.b16 %v2678
        %v3659 = vunpack.c.h.b16 %v2678
        %v3660 = vunpack.c.l.b16 %v2679
        %v3661 = vunpack.c.h.b16 %v2679
        %v3662 = vunpack.c.l.b16 %v2680
        %v3663 = vunpack.c.h.b16 %v2680
        %v3664 = vunpack.c.l.b16 %v2681
        %v3665 = vunpack.c.h.b16 %v2681
        %v3666 = vunpack.c.l.b16 %v2682
        %v3667 = vunpack.c.h.b16 %v2682
        %v3668 = vunpack.c.l.b16 %v2683
        %v3669 = vunpack.c.h.b16 %v2683
        %v3670 = vunpack.c.l.b16 %v2684
        %v3671 = vunpack.c.h.b16 %v2684
        %v3672 = vunpack.c.l.b16 %v2685
        %v3673 = vunpack.c.h.b16 %v2685
        %v3674 = vunpack.c.l.b16 %v2686
        %v3675 = vunpack.c.h.b16 %v2686
        %v3676 = vunpack.c.l.b16 %v2687
        %v3677 = vunpack.c.h.b16 %v2687
        %v3678 = vunpack.c.l.b16 %v2688
        %v3679 = vunpack.c.h.b16 %v2688
        %v3680 = vunpack.c.l.b16 %v2689
        %v3681 = vunpack.c.h.b16 %v2689
        %v3682 = vunpack.c.l.b16 %v2690
        %v3683 = vunpack.c.h.b16 %v2690
        %v3684 = vunpack.c.l.b16 %v2691
        %v3685 = vunpack.c.h.b16 %v2691
        %v3686 = vunpack.c.l.b16 %v2692
        %v3687 = vunpack.c.h.b16 %v2692
        %v3688 = vunpack.c.l.b16 %v2693
        %v3689 = vunpack.c.h.b16 %v2693
        %v3690 = vunpack.c.l.b16 %v2694
        %v3691 = vunpack.c.h.b16 %v2694
        %v3692 = vunpack.c.l.b16 %v2695
        %v3693 = vunpack.c.h.b16 %v2695
        %v3694 = vunpack.c.l.b16 %v2696
        %v3695 = vunpack.c.h.b16 %v2696
        %v3696 = vunpack.c.l.b16 %v2697
        %v3697 = vunpack.c.h.b16 %v2697
        %v3698 = vunpack.c.l.b16 %v2698
        %v3699 = vunpack.c.h.b16 %v2698
        %v3700 = vunpack.c.l.b16 %v2699
        %v3701 = vunpack.c.h.b16 %v2699
        %v3702 = vunpack.c.l.b16 %v2700
        %v3703 = vunpack.c.h.b16 %v2700
        %v3704 = vunpack.c.l.b16 %v2701
        %v3705 = vunpack.c.h.b16 %v2701
        %v3706 = vunpack.c.l.b16 %v2702
        %v3707 = vunpack.c.h.b16 %v2702
        %v3708 = vunpack.c.l.b16 %v2703
        %v3709 = vunpack.c.h.b16 %v2703
        %v3710 = vunpack.c.l.b16 %v2704
        %v3711 = vunpack.c.h.b16 %v2704
        %v3712 = vunpack.c.l.b16 %v2705
        %v3713 = vunpack.c.h.b16 %v2705
        %v3714 = vunpack.c.l.b16 %v2706
        %v3715 = vunpack.c.h.b16 %v2706
        %v3716 = vunpack.c.l.b16 %v2707
        %v3717 = vunpack.c.h.b16 %v2707
        %v3718 = vunpack.c.l.b16 %v2708
        %v3719 = vunpack.c.h.b16 %v2708
        %v3720 = vunpack.c.l.b16 %v2709
        %v3721 = vunpack.c.h.b16 %v2709
        %v3722 = vunpack.c.l.b16 %v2710
        %v3723 = vunpack.c.h.b16 %v2710
        %v3724 = vunpack.c.l.b16 %v2711
        %v3725 = vunpack.c.h.b16 %v2711
        %v3726 = vunpack.c.l.b16 %v2712
        %v3727 = vunpack.c.h.b16 %v2712
        %v3728 = vunpack.c.l.b16 %v2713
        %v3729 = vunpack.c.h.b16 %v2713
        %v3730 = vunpack.c.l.b16 %v2714
        %v3731 = vunpack.c.h.b16 %v2714
        %v3732 = vunpack.c.l.b16 %v2715
        %v3733 = vunpack.c.h.b16 %v2715
        %v3734 = vunpack.c.l.b16 %v2716
        %v3735 = vunpack.c.h.b16 %v2716
        %v3736 = vunpack.c.l.b16 %v2717
        %v3737 = vunpack.c.h.b16 %v2717
        %v3738 = vunpack.c.l.b16 %v2718
        %v3739 = vunpack.c.h.b16 %v2718
        %v3740 = vunpack.c.l.b16 %v2719
        %v3741 = vunpack.c.h.b16 %v2719
        %v3742 = vunpack.c.l.b16 %v2720
        %v3743 = vunpack.c.h.b16 %v2720
        %v3744 = vunpack.c.l.b16 %v2721
        %v3745 = vunpack.c.h.b16 %v2721
        %v3746 = vunpack.c.l.b16 %v2722
        %v3747 = vunpack.c.h.b16 %v2722
        %v3748 = vunpack.c.l.b16 %v2723
        %v3749 = vunpack.c.h.b16 %v2723
        %v3750 = vunpack.c.l.b16 %v2724
        %v3751 = vunpack.c.h.b16 %v2724
        %v3752 = vunpack.c.l.b16 %v2725
        %v3753 = vunpack.c.h.b16 %v2725
        %v3754 = vunpack.c.l.b16 %v2726
        %v3755 = vunpack.c.h.b16 %v2726
        %v3756 = vunpack.c.l.b16 %v2727
        %v3757 = vunpack.c.h.b16 %v2727
        %v3758 = vunpack.c.l.b16 %v2728
        %v3759 = vunpack.c.h.b16 %v2728
        %v3760 = vunpack.c.l.b16 %v2729
        %v3761 = vunpack.c.h.b16 %v2729
        %v3762 = vunpack.c.l.b16 %v2730
        %v3763 = vunpack.c.h.b16 %v2730
        %v3764 = vunpack.c.l.b16 %v2731
        %v3765 = vunpack.c.h.b16 %v2731
        %v3766 = vunpack.c.l.b16 %v2732
        %v3767 = vunpack.c.h.b16 %v2732
        %v3768 = vunpack.c.l.b16 %v2733
        %v3769 = vunpack.c.h.b16 %v2733
        %v3770 = vunpack.c.l.b16 %v2734
        %v3771 = vunpack.c.h.b16 %v2734
        %v3772 = vunpack.c.l.b16 %v2735
        %v3773 = vunpack.c.h.b16 %v2735
        %v3774 = vunpack.c.l.b16 %v2736
        %v3775 = vunpack.c.h.b16 %v2736
        %v3776 = vunpack.c.l.b16 %v2737
        %v3777 = vunpack.c.h.b16 %v2737
        %v3778 = vunpack.c.l.b16 %v2738
        %v3779 = vunpack.c.h.b16 %v2738
        %v3780 = vunpack.c.l.b16 %v2739
        %v3781 = vunpack.c.h.b16 %v2739
        %v3782 = vunpack.c.l.b16 %v2740
        %v3783 = vunpack.c.h.b16 %v2740
        %v3784 = vunpack.c.l.b16 %v2741
        %v3785 = vunpack.c.h.b16 %v2741
        %v3786 = vunpack.c.l.b16 %v2742
        %v3787 = vunpack.c.h.b16 %v2742
        %v3788 = vunpack.c.l.b16 %v2743
        %v3789 = vunpack.c.h.b16 %v2743
        %v3790 = vunpack.c.l.b16 %v2744
        %v3791 = vunpack.c.h.b16 %v2744
        %v3792 = vunpack.c.l.b16 %v2745
        %v3793 = vunpack.c.h.b16 %v2745
        %v3794 = vunpack.c.l.b16 %v2746
        %v3795 = vunpack.c.h.b16 %v2746
        %v3796 = vunpack.c.l.b16 %v2747
        %v3797 = vunpack.c.h.b16 %v2747
        %v3798 = vunpack.c.l.b16 %v2748
        %v3799 = vunpack.c.h.b16 %v2748
        %v3800 = vunpack.c.l.b16 %v2749
        %v3801 = vunpack.c.h.b16 %v2749
        %v3802 = vunpack.c.l.b16 %v2750
        %v3803 = vunpack.c.h.b16 %v2750
        %v3804 = vunpack.c.l.b16 %v2751
        %v3805 = vunpack.c.h.b16 %v2751
        %v3806 = vunpack.c.l.b16 %v2752
        %v3807 = vunpack.c.h.b16 %v2752
        %v3808 = vunpack.c.l.b16 %v2753
        %v3809 = vunpack.c.h.b16 %v2753
        %v3810 = vunpack.c.l.b16 %v2754
        %v3811 = vunpack.c.h.b16 %v2754
        %v3812 = vunpack.c.l.b16 %v2755
        %v3813 = vunpack.c.h.b16 %v2755
        %v3814 = vunpack.c.l.b16 %v2756
        %v3815 = vunpack.c.h.b16 %v2756
        %v3816 = vunpack.c.l.b16 %v2757
        %v3817 = vunpack.c.h.b16 %v2757
        %v3818 = vunpack.c.l.b16 %v2758
        %v3819 = vunpack.c.h.b16 %v2758
        %v3820 = vunpack.c.l.b16 %v2759
        %v3821 = vunpack.c.h.b16 %v2759
        %v3822 = vunpack.c.l.b16 %v2760
        %v3823 = vunpack.c.h.b16 %v2760
        %v3824 = vunpack.c.l.b16 %v2761
        %v3825 = vunpack.c.h.b16 %v2761
        %v3826 = vunpack.c.l.b16 %v2762
        %v3827 = vunpack.c.h.b16 %v2762
        %v3828 = vunpack.c.l.b16 %v2763
        %v3829 = vunpack.c.h.b16 %v2763
        %v3830 = vunpack.c.l.b16 %v2764
        %v3831 = vunpack.c.h.b16 %v2764
        %v3832 = vunpack.c.l.b16 %v2765
        %v3833 = vunpack.c.h.b16 %v2765
        %v3834 = vunpack.c.l.b16 %v2766
        %v3835 = vunpack.c.h.b16 %v2766
        %v3836 = vunpack.c.l.b16 %v2767
        %v3837 = vunpack.c.h.b16 %v2767
        %v3838 = vunpack.c.l.b16 %v2768
        %v3839 = vunpack.c.h.b16 %v2768
        %v3840 = vunpack.c.l.b16 %v2769
        %v3841 = vunpack.c.h.b16 %v2769
        %v3842 = vunpack.c.l.b16 %v2770
        %v3843 = vunpack.c.h.b16 %v2770
        %v3844 = vunpack.c.l.b16 %v2771
        %v3845 = vunpack.c.h.b16 %v2771
        %v3846 = vunpack.c.l.b16 %v2772
        %v3847 = vunpack.c.h.b16 %v2772
        %v3848 = vunpack.c.l.b16 %v2773
        %v3849 = vunpack.c.h.b16 %v2773
        %v3850 = vunpack.c.l.b16 %v2774
        %v3851 = vunpack.c.h.b16 %v2774
        %v3852 = vunpack.c.l.b16 %v2775
        %v3853 = vunpack.c.h.b16 %v2775
        %v3854 = vunpack.c.l.b16 %v2776
        %v3855 = vunpack.c.h.b16 %v2776
        %v3856 = vunpack.c.l.b16 %v2777
        %v3857 = vunpack.c.h.b16 %v2777
        %v3858 = vunpack.c.l.b16 %v2778
        %v3859 = vunpack.c.h.b16 %v2778
        %v3860 = vunpack.c.l.b16 %v2779
        %v3861 = vunpack.c.h.b16 %v2779
        %v3862 = vunpack.c.l.b16 %v2780
        %v3863 = vunpack.c.h.b16 %v2780
        %v3864 = vunpack.c.l.b16 %v2781
        %v3865 = vunpack.c.h.b16 %v2781
        %v3866 = vunpack.c.l.b16 %v2782
        %v3867 = vunpack.c.h.b16 %v2782
        %v3868 = vunpack.c.l.b16 %v2783
        %v3869 = vunpack.c.h.b16 %v2783
        %v3870 = vunpack.c.l.b16 %v2784
        %v3871 = vunpack.c.h.b16 %v2784
        %v3872 = vunpack.c.l.b16 %v2785
        %v3873 = vunpack.c.h.b16 %v2785
        %v3874 = vunpack.c.l.b16 %v2786
        %v3875 = vunpack.c.h.b16 %v2786
        %v3876 = vunpack.c.l.b16 %v2787
        %v3877 = vunpack.c.h.b16 %v2787
        %v3878 = vunpack.c.l.b16 %v2788
        %v3879 = vunpack.c.h.b16 %v2788
        %v3880 = vunpack.c.l.b16 %v2789
        %v3881 = vunpack.c.h.b16 %v2789
        %v3882 = vunpack.c.l.b16 %v2790
        %v3883 = vunpack.c.h.b16 %v2790
        %v3884 = vunpack.c.l.b16 %v2791
        %v3885 = vunpack.c.h.b16 %v2791
        %v3886 = vunpack.c.l.b16 %v2792
        %v3887 = vunpack.c.h.b16 %v2792
        %v3888 = vunpack.c.l.b16 %v2793
        %v3889 = vunpack.c.h.b16 %v2793
        %v3890 = vunpack.c.l.b16 %v2794
        %v3891 = vunpack.c.h.b16 %v2794
        %v3892 = vunpack.c.l.b16 %v2795
        %v3893 = vunpack.c.h.b16 %v2795
        %v3894 = vunpack.c.l.b16 %v2796
        %v3895 = vunpack.c.h.b16 %v2796
        %v3896 = vunpack.c.l.b16 %v2797
        %v3897 = vunpack.c.h.b16 %v2797
        %v3898 = vunpack.c.l.b16 %v2798
        %v3899 = vunpack.c.h.b16 %v2798
        %v3900 = vunpack.c.l.b16 %v2799
        %v3901 = vunpack.c.h.b16 %v2799
        %v3902 = vunpack.c.l.b16 %v2800
        %v3903 = vunpack.c.h.b16 %v2800
        %v3904 = vunpack.c.l.b16 %v2801
        %v3905 = vunpack.c.h.b16 %v2801
        %v3906 = vunpack.c.l.b16 %v2802
        %v3907 = vunpack.c.h.b16 %v2802
        %v3908 = vunpack.c.l.b16 %v2803
        %v3909 = vunpack.c.h.b16 %v2803
        %v3910 = vunpack.c.l.b16 %v2804
        %v3911 = vunpack.c.h.b16 %v2804
        %v3912 = vunpack.c.l.b16 %v2805
        %v3913 = vunpack.c.h.b16 %v2805
        %v3914 = vunpack.c.l.b16 %v2806
        %v3915 = vunpack.c.h.b16 %v2806
        %v3916 = vunpack.c.l.b16 %v2807
        %v3917 = vunpack.c.h.b16 %v2807
        %v3918 = vunpack.c.l.b16 %v2808
        %v3919 = vunpack.c.h.b16 %v2808
        %v3920 = vunpack.c.l.b16 %v2809
        %v3921 = vunpack.c.h.b16 %v2809
        %v3922 = vunpack.c.l.b16 %v2810
        %v3923 = vunpack.c.h.b16 %v2810
        %v3924 = vunpack.c.l.b16 %v2811
        %v3925 = vunpack.c.h.b16 %v2811
        %v3926 = vunpack.c.l.b16 %v2812
        %v3927 = vunpack.c.h.b16 %v2812
        %v3928 = vunpack.c.l.b16 %v2813
        %v3929 = vunpack.c.h.b16 %v2813
        %v3930 = vunpack.c.l.b16 %v2814
        %v3931 = vunpack.c.h.b16 %v2814
        %v3932 = vunpack.c.l.b16 %v2815
        %v3933 = vunpack.c.h.b16 %v2815
        %v3934 = vunpack.c.l.b16 %v2816
        %v3935 = vunpack.c.h.b16 %v2816
        %v3936 = vunpack.c.l.b16 %v2817
        %v3937 = vunpack.c.h.b16 %v2817
        %v3938 = vunpack.c.l.b16 %v2818
        %v3939 = vunpack.c.h.b16 %v2818
        %v3940 = vunpack.c.l.b16 %v2819
        %v3941 = vunpack.c.h.b16 %v2819
        %v3942 = vunpack.c.l.b16 %v2820
        %v3943 = vunpack.c.h.b16 %v2820
        %v3944 = vunpack.c.l.b16 %v2821
        %v3945 = vunpack.c.h.b16 %v2821
        %v3946 = vunpack.c.l.b16 %v2822
        %v3947 = vunpack.c.h.b16 %v2822
        %v3948 = vunpack.c.l.b16 %v2823
        %v3949 = vunpack.c.h.b16 %v2823
        %v3950 = vunpack.c.l.b16 %v2824
        %v3951 = vunpack.c.h.b16 %v2824
        %v3952 = vunpack.c.l.b16 %v2825
        %v3953 = vunpack.c.h.b16 %v2825
        %v3954 = vunpack.c.l.b16 %v2826
        %v3955 = vunpack.c.h.b16 %v2826
        %v3956 = vunpack.c.l.b16 %v2827
        %v3957 = vunpack.c.h.b16 %v2827
        %v3958 = vunpack.c.l.b16 %v2828
        %v3959 = vunpack.c.h.b16 %v2828
        %v3960 = vunpack.c.l.b16 %v2829
        %v3961 = vunpack.c.h.b16 %v2829
        %v3962 = vunpack.c.l.b16 %v2830
        %v3963 = vunpack.c.h.b16 %v2830
        %v3964 = vunpack.c.l.b16 %v2831
        %v3965 = vunpack.c.h.b16 %v2831
        %v3966 = vunpack.c.l.b16 %v2832
        %v3967 = vunpack.c.h.b16 %v2832
        %v3968 = vunpack.c.l.b16 %v2833
        %v3969 = vunpack.c.h.b16 %v2833
        %v3970 = vunpack.c.l.b16 %v2834
        %v3971 = vunpack.c.h.b16 %v2834
        %v3972 = vunpack.c.l.b16 %v2835
        %v3973 = vunpack.c.h.b16 %v2835
        %v3974 = vunpack.c.l.b16 %v2836
        %v3975 = vunpack.c.h.b16 %v2836
        %v3976 = vunpack.c.l.b16 %v2837
        %v3977 = vunpack.c.h.b16 %v2837
        %v3978 = vunpack.c.l.b16 %v2838
        %v3979 = vunpack.c.h.b16 %v2838
        %v3980 = vunpack.c.l.b16 %v2839
        %v3981 = vunpack.c.h.b16 %v2839
        %v3982 = vunpack.c.l.b16 %v2840
        %v3983 = vunpack.c.h.b16 %v2840
        %v3984 = vunpack.c.l.b16 %v2841
        %v3985 = vunpack.c.h.b16 %v2841
        %v3986 = vunpack.c.l.b16 %v2842
        %v3987 = vunpack.c.h.b16 %v2842
        %v3988 = vunpack.c.l.b16 %v2843
        %v3989 = vunpack.c.h.b16 %v2843
        %v3990 = vunpack.c.l.b16 %v2844
        %v3991 = vunpack.c.h.b16 %v2844
        %v3992 = vunpack.c.l.b16 %v2845
        %v3993 = vunpack.c.h.b16 %v2845
        %v3994 = vunpack.c.l.b16 %v2846
        %v3995 = vunpack.c.h.b16 %v2846
        %v3996 = vunpack.c.l.b16 %v2847
        %v3997 = vunpack.c.h.b16 %v2847
        %v3998 = vunpack.c.l.b16 %v2848
        %v3999 = vunpack.c.h.b16 %v2848
        %v4000 = vunpack.c.l.b16 %v2849
        %v4001 = vunpack.c.h.b16 %v2849
        %v4002 = vpack.c.b16 %v3498, %v3490
        %v4003 = vpack.c.b16 %v3499, %v3491
        %v4004 = vpack.c.b16 %v3500, %v3492
        %v4005 = vpack.c.b16 %v3501, %v3493
        %v4006 = vpack.c.b16 %v3502, %v3494
        %v4007 = vpack.c.b16 %v3503, %v3495
        %v4008 = vpack.c.b16 %v3504, %v3496
        %v4009 = vpack.c.b16 %v3505, %v3497
        %v4010 = vpack.c.b16 %v3514, %v3506
        %v4011 = vpack.c.b16 %v3515, %v3507
        %v4012 = vpack.c.b16 %v3516, %v3508
        %v4013 = vpack.c.b16 %v3517, %v3509
        %v4014 = vpack.c.b16 %v3518, %v3510
        %v4015 = vpack.c.b16 %v3519, %v3511
        %v4016 = vpack.c.b16 %v3520, %v3512
        %v4017 = vpack.c.b16 %v3521, %v3513
        %v4018 = vpack.c.b16 %v3530, %v3522
        %v4019 = vpack.c.b16 %v3531, %v3523
        %v4020 = vpack.c.b16 %v3532, %v3524
        %v4021 = vpack.c.b16 %v3533, %v3525
        %v4022 = vpack.c.b16 %v3534, %v3526
        %v4023 = vpack.c.b16 %v3535, %v3527
        %v4024 = vpack.c.b16 %v3536, %v3528
        %v4025 = vpack.c.b16 %v3537, %v3529
        %v4026 = vpack.c.b16 %v3546, %v3538
        %v4027 = vpack.c.b16 %v3547, %v3539
        %v4028 = vpack.c.b16 %v3548, %v3540
        %v4029 = vpack.c.b16 %v3549, %v3541
        %v4030 = vpack.c.b16 %v3550, %v3542
        %v4031 = vpack.c.b16 %v3551, %v3543
        %v4032 = vpack.c.b16 %v3552, %v3544
        %v4033 = vpack.c.b16 %v3553, %v3545
        %v4034 = vpack.c.b16 %v3562, %v3554
        %v4035 = vpack.c.b16 %v3563, %v3555
        %v4036 = vpack.c.b16 %v3564, %v3556
        %v4037 = vpack.c.b16 %v3565, %v3557
        %v4038 = vpack.c.b16 %v3566, %v3558
        %v4039 = vpack.c.b16 %v3567, %v3559
        %v4040 = vpack.c.b16 %v3568, %v3560
        %v4041 = vpack.c.b16 %v3569, %v3561
        %v4042 = vpack.c.b16 %v3578, %v3570
        %v4043 = vpack.c.b16 %v3579, %v3571
        %v4044 = vpack.c.b16 %v3580, %v3572
        %v4045 = vpack.c.b16 %v3581, %v3573
        %v4046 = vpack.c.b16 %v3582, %v3574
        %v4047 = vpack.c.b16 %v3583, %v3575
        %v4048 = vpack.c.b16 %v3584, %v3576
        %v4049 = vpack.c.b16 %v3585, %v3577
        %v4050 = vpack.c.b16 %v3594, %v3586
        %v4051 = vpack.c.b16 %v3595, %v3587
        %v4052 = vpack.c.b16 %v3596, %v3588
        %v4053 = vpack.c.b16 %v3597, %v3589
        %v4054 = vpack.c.b16 %v3598, %v3590
        %v4055 = vpack.c.b16 %v3599, %v3591
        %v4056 = vpack.c.b16 %v3600, %v3592
        %v4057 = vpack.c.b16 %v3601, %v3593
        %v4058 = vpack.c.b16 %v3610, %v3602
        %v4059 = vpack.c.b16 %v3611, %v3603
        %v4060 = vpack.c.b16 %v3612, %v3604
        %v4061 = vpack.c.b16 %v3613, %v3605
        %v4062 = vpack.c.b16 %v3614, %v3606
        %v4063 = vpack.c.b16 %v3615, %v3607
        %v4064 = vpack.c.b16 %v3616, %v3608
        %v4065 = vpack.c.b16 %v3617, %v3609
        %v4066 = vpack.c.b16 %v3626, %v3618
        %v4067 = vpack.c.b16 %v3627, %v3619
        %v4068 = vpack.c.b16 %v3628, %v3620
        %v4069 = vpack.c.b16 %v3629, %v3621
        %v4070 = vpack.c.b16 %v3630, %v3622
        %v4071 = vpack.c.b16 %v3631, %v3623
        %v4072 = vpack.c.b16 %v3632, %v3624
        %v4073 = vpack.c.b16 %v3633, %v3625
        %v4074 = vpack.c.b16 %v3642, %v3634
        %v4075 = vpack.c.b16 %v3643, %v3635
        %v4076 = vpack.c.b16 %v3644, %v3636
        %v4077 = vpack.c.b16 %v3645, %v3637
        %v4078 = vpack.c.b16 %v3646, %v3638
        %v4079 = vpack.c.b16 %v3647, %v3639
        %v4080 = vpack.c.b16 %v3648, %v3640
        %v4081 = vpack.c.b16 %v3649, %v3641
        %v4082 = vpack.c.b16 %v3658, %v3650
        %v4083 = vpack.c.b16 %v3659, %v3651
        %v4084 = vpack.c.b16 %v3660, %v3652
        %v4085 = vpack.c.b16 %v3661, %v3653
        %v4086 = vpack.c.b16 %v3662, %v3654
        %v4087 = vpack.c.b16 %v3663, %v3655
        %v4088 = vpack.c.b16 %v3664, %v3656
        %v4089 = vpack.c.b16 %v3665, %v3657
        %v4090 = vpack.c.b16 %v3674, %v3666
        %v4091 = vpack.c.b16 %v3675, %v3667
        %v4092 = vpack.c.b16 %v3676, %v3668
        %v4093 = vpack.c.b16 %v3677, %v3669
        %v4094 = vpack.c.b16 %v3678, %v3670
        %v4095 = vpack.c.b16 %v3679, %v3671
        %v4096 = vpack.c.b16 %v3680, %v3672
        %v4097 = vpack.c.b16 %v3681, %v3673
        %v4098 = vpack.c.b16 %v3690, %v3682
        %v4099 = vpack.c.b16 %v3691, %v3683
        %v4100 = vpack.c.b16 %v3692, %v3684
        %v4101 = vpack.c.b16 %v3693, %v3685
        %v4102 = vpack.c.b16 %v3694, %v3686
        %v4103 = vpack.c.b16 %v3695, %v3687
        %v4104 = vpack.c.b16 %v3696, %v3688
        %v4105 = vpack.c.b16 %v3697, %v3689
        %v4106 = vpack.c.b16 %v3706, %v3698
        %v4107 = vpack.c.b16 %v3707, %v3699
        %v4108 = vpack.c.b16 %v3708, %v3700
        %v4109 = vpack.c.b16 %v3709, %v3701
        %v4110 = vpack.c.b16 %v3710, %v3702
        %v4111 = vpack.c.b16 %v3711, %v3703
        %v4112 = vpack.c.b16 %v3712, %v3704
        %v4113 = vpack.c.b16 %v3713, %v3705
        %v4114 = vpack.c.b16 %v3722, %v3714
        %v4115 = vpack.c.b16 %v3723, %v3715
        %v4116 = vpack.c.b16 %v3724, %v3716
        %v4117 = vpack.c.b16 %v3725, %v3717
        %v4118 = vpack.c.b16 %v3726, %v3718
        %v4119 = vpack.c.b16 %v3727, %v3719
        %v4120 = vpack.c.b16 %v3728, %v3720
        %v4121 = vpack.c.b16 %v3729, %v3721
        %v4122 = vpack.c.b16 %v3738, %v3730
        %v4123 = vpack.c.b16 %v3739, %v3731
        %v4124 = vpack.c.b16 %v3740, %v3732
        %v4125 = vpack.c.b16 %v3741, %v3733
        %v4126 = vpack.c.b16 %v3742, %v3734
        %v4127 = vpack.c.b16 %v3743, %v3735
        %v4128 = vpack.c.b16 %v3744, %v3736
        %v4129 = vpack.c.b16 %v3745, %v3737
        %v4130 = vpack.c.b16 %v3754, %v3746
        %v4131 = vpack.c.b16 %v3755, %v3747
        %v4132 = vpack.c.b16 %v3756, %v3748
        %v4133 = vpack.c.b16 %v3757, %v3749
        %v4134 = vpack.c.b16 %v3758, %v3750
        %v4135 = vpack.c.b16 %v3759, %v3751
        %v4136 = vpack.c.b16 %v3760, %v3752
        %v4137 = vpack.c.b16 %v3761, %v3753
        %v4138 = vpack.c.b16 %v3770, %v3762
        %v4139 = vpack.c.b16 %v3771, %v3763
        %v4140 = vpack.c.b16 %v3772, %v3764
        %v4141 = vpack.c.b16 %v3773, %v3765
        %v4142 = vpack.c.b16 %v3774, %v3766
        %v4143 = vpack.c.b16 %v3775, %v3767
        %v4144 = vpack.c.b16 %v3776, %v3768
        %v4145 = vpack.c.b16 %v3777, %v3769
        %v4146 = vpack.c.b16 %v3786, %v3778
        %v4147 = vpack.c.b16 %v3787, %v3779
        %v4148 = vpack.c.b16 %v3788, %v3780
        %v4149 = vpack.c.b16 %v3789, %v3781
        %v4150 = vpack.c.b16 %v3790, %v3782
        %v4151 = vpack.c.b16 %v3791, %v3783
        %v4152 = vpack.c.b16 %v3792, %v3784
        %v4153 = vpack.c.b16 %v3793, %v3785
        %v4154 = vpack.c.b16 %v3802, %v3794
        %v4155 = vpack.c.b16 %v3803, %v3795
        %v4156 = vpack.c.b16 %v3804, %v3796
        %v4157 = vpack.c.b16 %v3805, %v3797
        %v4158 = vpack.c.b16 %v3806, %v3798
        %v4159 = vpack.c.b16 %v3807, %v3799
        %v4160 = vpack.c.b16 %v3808, %v3800
        %v4161 = vpack.c.b16 %v3809, %v3801
        %v4162 = vpack.c.b16 %v3818, %v3810
        %v4163 = vpack.c.b16 %v3819, %v3811
        %v4164 = vpack.c.b16 %v3820, %v3812
        %v4165 = vpack.c.b16 %v3821, %v3813
        %v4166 = vpack.c.b16 %v3822, %v3814
        %v4167 = vpack.c.b16 %v3823, %v3815
        %v4168 = vpack.c.b16 %v3824, %v3816
        %v4169 = vpack.c.b16 %v3825, %v3817
        %v4170 = vpack.c.b16 %v3834, %v3826
        %v4171 = vpack.c.b16 %v3835, %v3827
        %v4172 = vpack.c.b16 %v3836, %v3828
        %v4173 = vpack.c.b16 %v3837, %v3829
        %v4174 = vpack.c.b16 %v3838, %v3830
        %v4175 = vpack.c.b16 %v3839, %v3831
        %v4176 = vpack.c.b16 %v3840, %v3832
        %v4177 = vpack.c.b16 %v3841, %v3833
        %v4178 = vpack.c.b16 %v3850, %v3842
        %v4179 = vpack.c.b16 %v3851, %v3843
        %v4180 = vpack.c.b16 %v3852, %v3844
        %v4181 = vpack.c.b16 %v3853, %v3845
        %v4182 = vpack.c.b16 %v3854, %v3846
        %v4183 = vpack.c.b16 %v3855, %v3847
        %v4184 = vpack.c.b16 %v3856, %v3848
        %v4185 = vpack.c.b16 %v3857, %v3849
        %v4186 = vpack.c.b16 %v3866, %v3858
        %v4187 = vpack.c.b16 %v3867, %v3859
        %v4188 = vpack.c.b16 %v3868, %v3860
        %v4189 = vpack.c.b16 %v3869, %v3861
        %v4190 = vpack.c.b16 %v3870, %v3862
        %v4191 = vpack.c.b16 %v3871, %v3863
        %v4192 = vpack.c.b16 %v3872, %v3864
        %v4193 = vpack.c.b16 %v3873, %v3865
        %v4194 = vpack.c.b16 %v3882, %v3874
        %v4195 = vpack.c.b16 %v3883, %v3875
        %v4196 = vpack.c.b16 %v3884, %v3876
        %v4197 = vpack.c.b16 %v3885, %v3877
        %v4198 = vpack.c.b16 %v3886, %v3878
        %v4199 = vpack.c.b16 %v3887, %v3879
        %v4200 = vpack.c.b16 %v3888, %v3880
        %v4201 = vpack.c.b16 %v3889, %v3881
        %v4202 = vpack.c.b16 %v3898, %v3890
        %v4203 = vpack.c.b16 %v3899, %v3891
        %v4204 = vpack.c.b16 %v3900, %v3892
        %v4205 = vpack.c.b16 %v3901, %v3893
        %v4206 = vpack.c.b16 %v3902, %v3894
        %v4207 = vpack.c.b16 %v3903, %v3895
        %v4208 = vpack.c.b16 %v3904, %v3896
        %v4209 = vpack.c.b16 %v3905, %v3897
        %v4210 = vpack.c.b16 %v3914, %v3906
        %v4211 = vpack.c.b16 %v3915, %v3907
        %v4212 = vpack.c.b16 %v3916, %v3908
        %v4213 = vpack.c.b16 %v3917, %v3909
        %v4214 = vpack.c.b16 %v3918, %v3910
        %v4215 = vpack.c.b16 %v3919, %v3911
        %v4216 = vpack.c.b16 %v3920, %v3912
        %v4217 = vpack.c.b16 %v3921, %v3913
        %v4218 = vpack.c.b16 %v3930, %v3922
        %v4219 = vpack.c.b16 %v3931, %v3923
        %v4220 = vpack.c.b16 %v3932, %v3924
        %v4221 = vpack.c.b16 %v3933, %v3925
        %v4222 = vpack.c.b16 %v3934, %v3926
        %v4223 = vpack.c.b16 %v3935, %v3927
        %v4224 = vpack.c.b16 %v3936, %v3928
        %v4225 = vpack.c.b16 %v3937, %v3929
        %v4226 = vpack.c.b16 %v3946, %v3938
        %v4227 = vpack.c.b16 %v3947, %v3939
        %v4228 = vpack.c.b16 %v3948, %v3940
        %v4229 = vpack.c.b16 %v3949, %v3941
        %v4230 = vpack.c.b16 %v3950, %v3942
        %v4231 = vpack.c.b16 %v3951, %v3943
        %v4232 = vpack.c.b16 %v3952, %v3944
        %v4233 = vpack.c.b16 %v3953, %v3945
        %v4234 = vpack.c.b16 %v3962, %v3954
        %v4235 = vpack.c.b16 %v3963, %v3955
        %v4236 = vpack.c.b16 %v3964, %v3956
        %v4237 = vpack.c.b16 %v3965, %v3957
        %v4238 = vpack.c.b16 %v3966, %v3958
        %v4239 = vpack.c.b16 %v3967, %v3959
        %v4240 = vpack.c.b16 %v3968, %v3960
        %v4241 = vpack.c.b16 %v3969, %v3961
        %v4242 = vpack.c.b16 %v3978, %v3970
        %v4243 = vpack.c.b16 %v3979, %v3971
        %v4244 = vpack.c.b16 %v3980, %v3972
        %v4245 = vpack.c.b16 %v3981, %v3973
        %v4246 = vpack.c.b16 %v3982, %v3974
        %v4247 = vpack.c.b16 %v3983, %v3975
        %v4248 = vpack.c.b16 %v3984, %v3976
        %v4249 = vpack.c.b16 %v3985, %v3977
        %v4250 = vpack.c.b16 %v3994, %v3986
        %v4251 = vpack.c.b16 %v3995, %v3987
        %v4252 = vpack.c.b16 %v3996, %v3988
        %v4253 = vpack.c.b16 %v3997, %v3989
        %v4254 = vpack.c.b16 %v3998, %v3990
        %v4255 = vpack.c.b16 %v3999, %v3991
        %v4256 = vpack.c.b16 %v4000, %v3992
        %v4257 = vpack.c.b16 %v4001, %v3993
        %4514 = vmatprep.subr.bf16.mxu0 0
        %4515 = vmatpush1.bf16.msra.mxu0 %v2530
        %4516 = vmatprep.subr.bf16.mxu0 0
        %4517 = vmatpush1.bf16.msra.mxu0 %v2531
        %4518 = vmatprep.subr.bf16.mxu0 0
        %4519 = vmatpush1.bf16.msra.mxu0 %v2532
        %4520 = vmatprep.subr.bf16.mxu0 0
        %4521 = vmatpush1.bf16.msra.mxu0 %v2533
        %4522 = vmatprep.subr.bf16.mxu0 0
        %4523 = vmatpush1.bf16.msra.mxu0 %v2534
        %4524 = vmatprep.subr.bf16.mxu0 0
        %4525 = vmatpush1.bf16.msra.mxu0 %v2535
        %4526 = vmatprep.subr.bf16.mxu0 0
        %4527 = vmatpush1.bf16.msra.mxu0 %v2536
        %4528 = vmatprep.subr.bf16.mxu0 0
        %4529 = vmatpush1.bf16.msra.mxu0 %v2537
        %4530 = vmatprep.subr.bf16.mxu0 0
        %4531 = vmatpush1.bf16.msra.mxu0 %v2538
        %4532 = vmatprep.subr.bf16.mxu0 0
        %4533 = vmatpush1.bf16.msra.mxu0 %v2539
        %4534 = vmatprep.subr.bf16.mxu0 0
        %4535 = vmatpush1.bf16.msra.mxu0 %v2540
        %4536 = vmatprep.subr.bf16.mxu0 0
        %4537 = vmatpush1.bf16.msra.mxu0 %v2541
        %4538 = vmatprep.subr.bf16.mxu0 0
        %4539 = vmatpush1.bf16.msra.mxu0 %v2542
        %4540 = vmatprep.subr.bf16.mxu0 0
        %4541 = vmatpush1.bf16.msra.mxu0 %v2543
        %4542 = vmatprep.subr.bf16.mxu0 0
        %4543 = vmatpush1.bf16.msra.mxu0 %v2544
        %4544 = vmatprep.subr.bf16.mxu0 0
        %4545 = vmatpush1.bf16.msra.mxu0 %v2545
        %4546 = vmatprep.mubr.bf16.mxu0 %v4003
        %4547 = vmatmul.mubr.bf16.gmra.mrb[0].mxu0 %v4002
        %v4548 = vpop.f32.mrb[0].mxu0
        %v4549 = vadd.f32 %v2917, %v4548
        %v4550 = vpop.f32.mrb[0].mxu0
        %v4551 = vpop.f32.mrb[0].mxu0
        %v4552 = vadd.f32 %v2922, %v4551
        %v4553 = vpop.f32.mrb[0].mxu0
        %4554 = vmatprep.mubr.bf16.mxu0 %v4011
        %4555 = vmatmul.mubr.bf16.gmra.mrb[0].mxu0 %v4010
        %v4556 = vpop.f32.mrb[0].mxu0
        %v4557 = vadd.f32 %v2927, %v4556
        %v4558 = vpop.f32.mrb[0].mxu0
        %v4559 = vpop.f32.mrb[0].mxu0
        %v4560 = vadd.f32 %v2932, %v4559
        %v4561 = vpop.f32.mrb[0].mxu0
        %4562 = vmatprep.mubr.bf16.mxu0 %v4019
        %4563 = vmatmul.mubr.bf16.gmra.mrb[0].mxu0 %v4018
        %v4564 = vpop.f32.mrb[0].mxu0
        %v4565 = vadd.f32 %v2937, %v4564
        %v4566 = vpop.f32.mrb[0].mxu0
        %v4567 = vpop.f32.mrb[0].mxu0
        %v4568 = vadd.f32 %v2942, %v4567
        %v4569 = vpop.f32.mrb[0].mxu0
        %4570 = vmatprep.mubr.bf16.mxu0 %v4027
        %4571 = vmatmul.mubr.bf16.gmra.mrb[0].mxu0 %v4026
        %v4572 = vpop.f32.mrb[0].mxu0
        %v4573 = vadd.f32 %v2947, %v4572
        %v4574 = vpop.f32.mrb[0].mxu0
        %v4575 = vpop.f32.mrb[0].mxu0
        %v4576 = vadd.f32 %v2952, %v4575
        %v4577 = vpop.f32.mrb[0].mxu0
        %4578 = vmatprep.mubr.bf16.mxu0 %v4035
        %4579 = vmatmul.mubr.bf16.gmra.mrb[0].mxu0 %v4034
        %v4580 = vpop.f32.mrb[0].mxu0
        %v4581 = vadd.f32 %v2957, %v4580
        %v4582 = vpop.f32.mrb[0].mxu0
        %v4583 = vpop.f32.mrb[0].mxu0
        %v4584 = vadd.f32 %v2962, %v4583
        %v4585 = vpop.f32.mrb[0].mxu0
        %4586 = vmatprep.mubr.bf16.mxu0 %v4043
        %4587 = vmatmul.mubr.bf16.gmra.mrb[0].mxu0 %v4042
        %v4588 = vpop.f32.mrb[0].mxu0
        %v4589 = vadd.f32 %v2967, %v4588
        %v4590 = vpop.f32.mrb[0].mxu0
        %v4591 = vpop.f32.mrb[0].mxu0
        %v4592 = vadd.f32 %v2972, %v4591
        %v4593 = vpop.f32.mrb[0].mxu0
        %4594 = vmatprep.mubr.bf16.mxu0 %v4051
        %4595 = vmatmul.mubr.bf16.gmra.mrb[0].mxu0 %v4050
        %v4596 = vpop.f32.mrb[0].mxu0
        %v4597 = vadd.f32 %v2977, %v4596
        %v4598 = vpop.f32.mrb[0].mxu0
        %v4599 = vpop.f32.mrb[0].mxu0
        %v4600 = vadd.f32 %v2982, %v4599
        %v4601 = vpop.f32.mrb[0].mxu0
        %4602 = vmatprep.mubr.bf16.mxu0 %v4059
        %4603 = vmatmul.mubr.bf16.gmra.mrb[0].mxu0 %v4058
        %v4604 = vpop.f32.mrb[0].mxu0
        %v4605 = vadd.f32 %v2987, %v4604
        %v4606 = vpop.f32.mrb[0].mxu0
        %v4607 = vpop.f32.mrb[0].mxu0
        %v4608 = vadd.f32 %v2992, %v4607
        %v4609 = vpop.f32.mrb[0].mxu0
        %4610 = vmatprep.mubr.bf16.mxu0 %v4067
        %4611 = vmatmul.mubr.bf16.gmra.mrb[0].mxu0 %v4066
        %v4612 = vpop.f32.mrb[0].mxu0
        %v4613 = vadd.f32 %v2997, %v4612
        %v4614 = vpop.f32.mrb[0].mxu0
        %v4615 = vpop.f32.mrb[0].mxu0
        %v4616 = vadd.f32 %v3002, %v4615
        %v4617 = vpop.f32.mrb[0].mxu0
        %4618 = vmatprep.mubr.bf16.mxu0 %v4075
        %4619 = vmatmul.mubr.bf16.gmra.mrb[0].mxu0 %v4074
        %v4620 = vpop.f32.mrb[0].mxu0
        %v4621 = vadd.f32 %v3007, %v4620
        %v4622 = vpop.f32.mrb[0].mxu0
        %v4623 = vpop.f32.mrb[0].mxu0
        %v4624 = vadd.f32 %v3012, %v4623
        %v4625 = vpop.f32.mrb[0].mxu0
        %4626 = vmatprep.mubr.bf16.mxu0 %v4083
        %4627 = vmatmul.mubr.bf16.gmra.mrb[0].mxu0 %v4082
        %v4628 = vpop.f32.mrb[0].mxu0
        %v4629 = vadd.f32 %v3017, %v4628
        %v4630 = vpop.f32.mrb[0].mxu0
        %v4631 = vpop.f32.mrb[0].mxu0
        %v4632 = vadd.f32 %v3022, %v4631
        %v4633 = vpop.f32.mrb[0].mxu0
        %4634 = vmatprep.mubr.bf16.mxu0 %v4091
        %4635 = vmatmul.mubr.bf16.gmra.mrb[0].mxu0 %v4090
        %v4636 = vpop.f32.mrb[0].mxu0
        %v4637 = vadd.f32 %v3027, %v4636
        %v4638 = vpop.f32.mrb[0].mxu0
        %v4639 = vpop.f32.mrb[0].mxu0
        %v4640 = vadd.f32 %v3032, %v4639
        %v4641 = vpop.f32.mrb[0].mxu0
        %4642 = vmatprep.mubr.bf16.mxu0 %v4099
        %4643 = vmatmul.mubr.bf16.gmra.mrb[0].mxu0 %v4098
        %v4644 = vpop.f32.mrb[0].mxu0
        %v4645 = vadd.f32 %v3037, %v4644
        %v4646 = vpop.f32.mrb[0].mxu0
        %v4647 = vpop.f32.mrb[0].mxu0
        %v4648 = vadd.f32 %v3042, %v4647
        %v4649 = vpop.f32.mrb[0].mxu0
        %4650 = vmatprep.mubr.bf16.mxu0 %v4107
        %4651 = vmatmul.mubr.bf16.gmra.mrb[0].mxu0 %v4106
        %v4652 = vpop.f32.mrb[0].mxu0
        %v4653 = vadd.f32 %v3047, %v4652
        %v4654 = vpop.f32.mrb[0].mxu0
        %v4655 = vpop.f32.mrb[0].mxu0
        %v4656 = vadd.f32 %v3052, %v4655
        %v4657 = vpop.f32.mrb[0].mxu0
        %4658 = vmatprep.mubr.bf16.mxu0 %v4115
        %4659 = vmatmul.mubr.bf16.gmra.mrb[0].mxu0 %v4114
        %v4660 = vpop.f32.mrb[0].mxu0
        %v4661 = vadd.f32 %v3057, %v4660
        %v4662 = vpop.f32.mrb[0].mxu0
        %v4663 = vpop.f32.mrb[0].mxu0
        %v4664 = vadd.f32 %v3062, %v4663
        %v4665 = vpop.f32.mrb[0].mxu0
        %4666 = vmatprep.mubr.bf16.mxu0 %v4123
        %4667 = vmatmul.mubr.bf16.gmra.mrb[0].mxu0 %v4122
        %v4668 = vpop.f32.mrb[0].mxu0
        %v4669 = vadd.f32 %v3067, %v4668
        %v4670 = vpop.f32.mrb[0].mxu0
        %v4671 = vpop.f32.mrb[0].mxu0
        %v4672 = vadd.f32 %v3072, %v4671
        %v4673 = vpop.f32.mrb[0].mxu0
        %4674 = vmatprep.mubr.bf16.mxu0 %v4131
        %4675 = vmatmul.mubr.bf16.gmra.mrb[0].mxu0 %v4130
        %v4676 = vpop.f32.mrb[0].mxu0
        %v4677 = vadd.f32 %v3077, %v4676
        %v4678 = vpop.f32.mrb[0].mxu0
        %v4679 = vpop.f32.mrb[0].mxu0
        %v4680 = vadd.f32 %v3082, %v4679
        %v4681 = vpop.f32.mrb[0].mxu0
        %4682 = vmatprep.mubr.bf16.mxu0 %v4139
        %4683 = vmatmul.mubr.bf16.gmra.mrb[0].mxu0 %v4138
        %v4684 = vpop.f32.mrb[0].mxu0
        %v4685 = vadd.f32 %v3087, %v4684
        %v4686 = vpop.f32.mrb[0].mxu0
        %v4687 = vpop.f32.mrb[0].mxu0
        %v4688 = vadd.f32 %v3092, %v4687
        %v4689 = vpop.f32.mrb[0].mxu0
        %4690 = vmatprep.mubr.bf16.mxu0 %v4147
        %4691 = vmatmul.mubr.bf16.gmra.mrb[0].mxu0 %v4146
        %v4692 = vpop.f32.mrb[0].mxu0
        %v4693 = vadd.f32 %v3097, %v4692
        %v4694 = vpop.f32.mrb[0].mxu0
        %v4695 = vpop.f32.mrb[0].mxu0
        %v4696 = vadd.f32 %v3102, %v4695
        %v4697 = vpop.f32.mrb[0].mxu0
        %4698 = vmatprep.mubr.bf16.mxu0 %v4155
        %4699 = vmatmul.mubr.bf16.gmra.mrb[0].mxu0 %v4154
        %v4700 = vpop.f32.mrb[0].mxu0
        %v4701 = vadd.f32 %v3107, %v4700
        %v4702 = vpop.f32.mrb[0].mxu0
        %v4703 = vpop.f32.mrb[0].mxu0
        %v4704 = vadd.f32 %v3112, %v4703
        %v4705 = vpop.f32.mrb[0].mxu0
        %4706 = vmatprep.mubr.bf16.mxu0 %v4163
        %4707 = vmatmul.mubr.bf16.gmra.mrb[0].mxu0 %v4162
        %v4708 = vpop.f32.mrb[0].mxu0
        %v4709 = vadd.f32 %v3117, %v4708
        %v4710 = vpop.f32.mrb[0].mxu0
        %v4711 = vpop.f32.mrb[0].mxu0
        %v4712 = vadd.f32 %v3122, %v4711
        %v4713 = vpop.f32.mrb[0].mxu0
        %4714 = vmatprep.mubr.bf16.mxu0 %v4171
        %4715 = vmatmul.mubr.bf16.gmra.mrb[0].mxu0 %v4170
        %v4716 = vpop.f32.mrb[0].mxu0
        %v4717 = vadd.f32 %v3127, %v4716
        %v4718 = vpop.f32.mrb[0].mxu0
        %v4719 = vpop.f32.mrb[0].mxu0
        %v4720 = vadd.f32 %v3132, %v4719
        %v4721 = vpop.f32.mrb[0].mxu0
        %4722 = vmatprep.mubr.bf16.mxu0 %v4179
        %4723 = vmatmul.mubr.bf16.gmra.mrb[0].mxu0 %v4178
        %v4724 = vpop.f32.mrb[0].mxu0
        %v4725 = vadd.f32 %v3137, %v4724
        %v4726 = vpop.f32.mrb[0].mxu0
        %v4727 = vpop.f32.mrb[0].mxu0
        %v4728 = vadd.f32 %v3142, %v4727
        %v4729 = vpop.f32.mrb[0].mxu0
        %4730 = vmatprep.mubr.bf16.mxu0 %v4187
        %4731 = vmatmul.mubr.bf16.gmra.mrb[0].mxu0 %v4186
        %v4732 = vpop.f32.mrb[0].mxu0
        %v4733 = vadd.f32 %v3147, %v4732
        %v4734 = vpop.f32.mrb[0].mxu0
        %v4735 = vpop.f32.mrb[0].mxu0
        %v4736 = vadd.f32 %v3152, %v4735
        %v4737 = vpop.f32.mrb[0].mxu0
        %4738 = vmatprep.mubr.bf16.mxu0 %v4195
        %4739 = vmatmul.mubr.bf16.gmra.mrb[0].mxu0 %v4194
        %v4740 = vpop.f32.mrb[0].mxu0
        %v4741 = vadd.f32 %v3157, %v4740
        %v4742 = vpop.f32.mrb[0].mxu0
        %v4743 = vpop.f32.mrb[0].mxu0
        %v4744 = vadd.f32 %v3162, %v4743
        %v4745 = vpop.f32.mrb[0].mxu0
        %4746 = vmatprep.mubr.bf16.mxu0 %v4203
        %4747 = vmatmul.mubr.bf16.gmra.mrb[0].mxu0 %v4202
        %v4748 = vpop.f32.mrb[0].mxu0
        %v4749 = vadd.f32 %v3167, %v4748
        %v4750 = vpop.f32.mrb[0].mxu0
        %v4751 = vpop.f32.mrb[0].mxu0
        %v4752 = vadd.f32 %v3172, %v4751
        %v4753 = vpop.f32.mrb[0].mxu0
        %4754 = vmatprep.mubr.bf16.mxu0 %v4211
        %4755 = vmatmul.mubr.bf16.gmra.mrb[0].mxu0 %v4210
        %v4756 = vpop.f32.mrb[0].mxu0
        %v4757 = vadd.f32 %v3177, %v4756
        %v4758 = vpop.f32.mrb[0].mxu0
        %v4759 = vpop.f32.mrb[0].mxu0
        %v4760 = vadd.f32 %v3182, %v4759
        %v4761 = vpop.f32.mrb[0].mxu0
        %4762 = vmatprep.mubr.bf16.mxu0 %v4219
        %4763 = vmatmul.mubr.bf16.gmra.mrb[0].mxu0 %v4218
        %v4764 = vpop.f32.mrb[0].mxu0
        %v4765 = vadd.f32 %v3187, %v4764
        %v4766 = vpop.f32.mrb[0].mxu0
        %v4767 = vpop.f32.mrb[0].mxu0
        %v4768 = vadd.f32 %v3192, %v4767
        %v4769 = vpop.f32.mrb[0].mxu0
        %4770 = vmatprep.mubr.bf16.mxu0 %v4227
        %4771 = vmatmul.mubr.bf16.gmra.mrb[0].mxu0 %v4226
        %v4772 = vpop.f32.mrb[0].mxu0
        %v4773 = vadd.f32 %v3197, %v4772
        %v4774 = vpop.f32.mrb[0].mxu0
        %v4775 = vpop.f32.mrb[0].mxu0
        %v4776 = vadd.f32 %v3202, %v4775
        %v4777 = vpop.f32.mrb[0].mxu0
        %4778 = vmatprep.mubr.bf16.mxu0 %v4235
        %4779 = vmatmul.mubr.bf16.gmra.mrb[0].mxu0 %v4234
        %v4780 = vpop.f32.mrb[0].mxu0
        %v4781 = vadd.f32 %v3207, %v4780
        %v4782 = vpop.f32.mrb[0].mxu0
        %v4783 = vpop.f32.mrb[0].mxu0
        %v4784 = vadd.f32 %v3212, %v4783
        %v4785 = vpop.f32.mrb[0].mxu0
        %4786 = vmatprep.mubr.bf16.mxu0 %v4243
        %4787 = vmatmul.mubr.bf16.gmra.mrb[0].mxu0 %v4242
        %v4788 = vpop.f32.mrb[0].mxu0
        %v4789 = vadd.f32 %v3217, %v4788
        %v4790 = vpop.f32.mrb[0].mxu0
        %v4791 = vpop.f32.mrb[0].mxu0
        %v4792 = vadd.f32 %v3222, %v4791
        %v4793 = vpop.f32.mrb[0].mxu0
        %4794 = vmatprep.mubr.bf16.mxu0 %v4251
        %4795 = vmatmul.mubr.bf16.gmra.mrb[0].mxu0 %v4250
        %v4796 = vpop.f32.mrb[0].mxu0
        %v4797 = vadd.f32 %v3227, %v4796
        %v4798 = vpop.f32.mrb[0].mxu0
        %v4799 = vpop.f32.mrb[0].mxu0
        %v4800 = vadd.f32 %v3232, %v4799
        %v4801 = vpop.f32.mrb[0].mxu0
        %4802 = vdwg.mxu0
        %4803 = vmatprep.subr.bf16.mxu0 0
        %4804 = vmatpush1.bf16.msra.mxu0 %v2546
        %4805 = vmatprep.subr.bf16.mxu0 0
        %4806 = vmatpush1.bf16.msra.mxu0 %v2547
        %4807 = vmatprep.subr.bf16.mxu0 0
        %4808 = vmatpush1.bf16.msra.mxu0 %v2548
        %4809 = vmatprep.subr.bf16.mxu0 0
        %4810 = vmatpush1.bf16.msra.mxu0 %v2549
        %4811 = vmatprep.subr.bf16.mxu0 0
        %4812 = vmatpush1.bf16.msra.mxu0 %v2550
        %4813 = vmatprep.subr.bf16.mxu0 0
        %4814 = vmatpush1.bf16.msra.mxu0 %v2551
        %4815 = vmatprep.subr.bf16.mxu0 0
        %4816 = vmatpush1.bf16.msra.mxu0 %v2552
        %4817 = vmatprep.subr.bf16.mxu0 0
        %4818 = vmatpush1.bf16.msra.mxu0 %v2553
        %4819 = vmatprep.subr.bf16.mxu0 0
        %4820 = vmatpush1.bf16.msra.mxu0 %v2554
        %4821 = vmatprep.subr.bf16.mxu0 0
        %4822 = vmatpush1.bf16.msra.mxu0 %v2555
        %4823 = vmatprep.subr.bf16.mxu0 0
        %4824 = vmatpush1.bf16.msra.mxu0 %v2556
        %4825 = vmatprep.subr.bf16.mxu0 0
        %4826 = vmatpush1.bf16.msra.mxu0 %v2557
        %4827 = vmatprep.subr.bf16.mxu0 0
        %4828 = vmatpush1.bf16.msra.mxu0 %v2558
        %4829 = vmatprep.subr.bf16.mxu0 0
        %4830 = vmatpush1.bf16.msra.mxu0 %v2559
        %4831 = vmatprep.subr.bf16.mxu0 0
        %4832 = vmatpush1.bf16.msra.mxu0 %v2560
        %4833 = vmatprep.subr.bf16.mxu0 0
        %4834 = vmatpush1.bf16.msra.mxu0 %v2561
        %4835 = vmatprep.mubr.bf16.mxu0 %v4005
        %4836 = vmatmul.mubr.bf16.gmra.mrb[0].mxu0 %v4004
        %v4837 = vpop.f32.mrb[0].mxu0
        %v4838 = vadd.f32 %v4549, %v4837
        %v4839 = vpop.f32.mrb[0].mxu0
        %v4840 = vpop.f32.mrb[0].mxu0
        %v4841 = vadd.f32 %v4552, %v4840
        %v4842 = vpop.f32.mrb[0].mxu0
        %4843 = vmatprep.mubr.bf16.mxu0 %v4013
        %4844 = vmatmul.mubr.bf16.gmra.mrb[0].mxu0 %v4012
        %v4845 = vpop.f32.mrb[0].mxu0
        %v4846 = vadd.f32 %v4557, %v4845
        %v4847 = vpop.f32.mrb[0].mxu0
        %v4848 = vpop.f32.mrb[0].mxu0
        %v4849 = vadd.f32 %v4560, %v4848
        %v4850 = vpop.f32.mrb[0].mxu0
        %4851 = vmatprep.mubr.bf16.mxu0 %v4021
        %4852 = vmatmul.mubr.bf16.gmra.mrb[0].mxu0 %v4020
        %v4853 = vpop.f32.mrb[0].mxu0
        %v4854 = vadd.f32 %v4565, %v4853
        %v4855 = vpop.f32.mrb[0].mxu0
        %v4856 = vpop.f32.mrb[0].mxu0
        %v4857 = vadd.f32 %v4568, %v4856
        %v4858 = vpop.f32.mrb[0].mxu0
        %4859 = vmatprep.mubr.bf16.mxu0 %v4029
        %4860 = vmatmul.mubr.bf16.gmra.mrb[0].mxu0 %v4028
        %v4861 = vpop.f32.mrb[0].mxu0
        %v4862 = vadd.f32 %v4573, %v4861
        %v4863 = vpop.f32.mrb[0].mxu0
        %v4864 = vpop.f32.mrb[0].mxu0
        %v4865 = vadd.f32 %v4576, %v4864
        %v4866 = vpop.f32.mrb[0].mxu0
        %4867 = vmatprep.mubr.bf16.mxu0 %v4037
        %4868 = vmatmul.mubr.bf16.gmra.mrb[0].mxu0 %v4036
        %v4869 = vpop.f32.mrb[0].mxu0
        %v4870 = vadd.f32 %v4581, %v4869
        %v4871 = vpop.f32.mrb[0].mxu0
        %v4872 = vpop.f32.mrb[0].mxu0
        %v4873 = vadd.f32 %v4584, %v4872
        %v4874 = vpop.f32.mrb[0].mxu0
        %4875 = vmatprep.mubr.bf16.mxu0 %v4045
        %4876 = vmatmul.mubr.bf16.gmra.mrb[0].mxu0 %v4044
        %v4877 = vpop.f32.mrb[0].mxu0
        %v4878 = vadd.f32 %v4589, %v4877
        %v4879 = vpop.f32.mrb[0].mxu0
        %v4880 = vpop.f32.mrb[0].mxu0
        %v4881 = vadd.f32 %v4592, %v4880
        %v4882 = vpop.f32.mrb[0].mxu0
        %4883 = vmatprep.mubr.bf16.mxu0 %v4053
        %4884 = vmatmul.mubr.bf16.gmra.mrb[0].mxu0 %v4052
        %v4885 = vpop.f32.mrb[0].mxu0
        %v4886 = vadd.f32 %v4597, %v4885
        %v4887 = vpop.f32.mrb[0].mxu0
        %v4888 = vpop.f32.mrb[0].mxu0
        %v4889 = vadd.f32 %v4600, %v4888
        %v4890 = vpop.f32.mrb[0].mxu0
        %4891 = vmatprep.mubr.bf16.mxu0 %v4061
        %4892 = vmatmul.mubr.bf16.gmra.mrb[0].mxu0 %v4060
        %v4893 = vpop.f32.mrb[0].mxu0
        %v4894 = vadd.f32 %v4605, %v4893
        %v4895 = vpop.f32.mrb[0].mxu0
        %v4896 = vpop.f32.mrb[0].mxu0
        %v4897 = vadd.f32 %v4608, %v4896
        %v4898 = vpop.f32.mrb[0].mxu0
        %4899 = vmatprep.mubr.bf16.mxu0 %v4069
        %4900 = vmatmul.mubr.bf16.gmra.mrb[0].mxu0 %v4068
        %v4901 = vpop.f32.mrb[0].mxu0
        %v4902 = vadd.f32 %v4613, %v4901
        %v4903 = vpop.f32.mrb[0].mxu0
        %v4904 = vpop.f32.mrb[0].mxu0
        %v4905 = vadd.f32 %v4616, %v4904
        %v4906 = vpop.f32.mrb[0].mxu0
        %4907 = vmatprep.mubr.bf16.mxu0 %v4077
        %4908 = vmatmul.mubr.bf16.gmra.mrb[0].mxu0 %v4076
        %v4909 = vpop.f32.mrb[0].mxu0
        %v4910 = vadd.f32 %v4621, %v4909
        %v4911 = vpop.f32.mrb[0].mxu0
        %v4912 = vpop.f32.mrb[0].mxu0
        %v4913 = vadd.f32 %v4624, %v4912
        %v4914 = vpop.f32.mrb[0].mxu0
        %4915 = vmatprep.mubr.bf16.mxu0 %v4085
        %4916 = vmatmul.mubr.bf16.gmra.mrb[0].mxu0 %v4084
        %v4917 = vpop.f32.mrb[0].mxu0
        %v4918 = vadd.f32 %v4629, %v4917
        %v4919 = vpop.f32.mrb[0].mxu0
        %v4920 = vpop.f32.mrb[0].mxu0
        %v4921 = vadd.f32 %v4632, %v4920
        %v4922 = vpop.f32.mrb[0].mxu0
        %4923 = vmatprep.mubr.bf16.mxu0 %v4093
        %4924 = vmatmul.mubr.bf16.gmra.mrb[0].mxu0 %v4092
        %v4925 = vpop.f32.mrb[0].mxu0
        %v4926 = vadd.f32 %v4637, %v4925
        %v4927 = vpop.f32.mrb[0].mxu0
        %v4928 = vpop.f32.mrb[0].mxu0
        %v4929 = vadd.f32 %v4640, %v4928
        %v4930 = vpop.f32.mrb[0].mxu0
        %4931 = vmatprep.mubr.bf16.mxu0 %v4101
        %4932 = vmatmul.mubr.bf16.gmra.mrb[0].mxu0 %v4100
        %v4933 = vpop.f32.mrb[0].mxu0
        %v4934 = vadd.f32 %v4645, %v4933
        %v4935 = vpop.f32.mrb[0].mxu0
        %v4936 = vpop.f32.mrb[0].mxu0
        %v4937 = vadd.f32 %v4648, %v4936
        %v4938 = vpop.f32.mrb[0].mxu0
        %4939 = vmatprep.mubr.bf16.mxu0 %v4109
        %4940 = vmatmul.mubr.bf16.gmra.mrb[0].mxu0 %v4108
        %v4941 = vpop.f32.mrb[0].mxu0
        %v4942 = vadd.f32 %v4653, %v4941
        %v4943 = vpop.f32.mrb[0].mxu0
        %v4944 = vpop.f32.mrb[0].mxu0
        %v4945 = vadd.f32 %v4656, %v4944
        %v4946 = vpop.f32.mrb[0].mxu0
        %4947 = vmatprep.mubr.bf16.mxu0 %v4117
        %4948 = vmatmul.mubr.bf16.gmra.mrb[0].mxu0 %v4116
        %v4949 = vpop.f32.mrb[0].mxu0
        %v4950 = vadd.f32 %v4661, %v4949
        %v4951 = vpop.f32.mrb[0].mxu0
        %v4952 = vpop.f32.mrb[0].mxu0
        %v4953 = vadd.f32 %v4664, %v4952
        %v4954 = vpop.f32.mrb[0].mxu0
        %4955 = vmatprep.mubr.bf16.mxu0 %v4125
        %4956 = vmatmul.mubr.bf16.gmra.mrb[0].mxu0 %v4124
        %v4957 = vpop.f32.mrb[0].mxu0
        %v4958 = vadd.f32 %v4669, %v4957
        %v4959 = vpop.f32.mrb[0].mxu0
        %v4960 = vpop.f32.mrb[0].mxu0
        %v4961 = vadd.f32 %v4672, %v4960
        %v4962 = vpop.f32.mrb[0].mxu0
        %4963 = vmatprep.mubr.bf16.mxu0 %v4133
        %4964 = vmatmul.mubr.bf16.gmra.mrb[0].mxu0 %v4132
        %v4965 = vpop.f32.mrb[0].mxu0
        %v4966 = vadd.f32 %v4677, %v4965
        %v4967 = vpop.f32.mrb[0].mxu0
        %v4968 = vpop.f32.mrb[0].mxu0
        %v4969 = vadd.f32 %v4680, %v4968
        %v4970 = vpop.f32.mrb[0].mxu0
        %4971 = vmatprep.mubr.bf16.mxu0 %v4141
        %4972 = vmatmul.mubr.bf16.gmra.mrb[0].mxu0 %v4140
        %v4973 = vpop.f32.mrb[0].mxu0
        %v4974 = vadd.f32 %v4685, %v4973
        %v4975 = vpop.f32.mrb[0].mxu0
        %v4976 = vpop.f32.mrb[0].mxu0
        %v4977 = vadd.f32 %v4688, %v4976
        %v4978 = vpop.f32.mrb[0].mxu0
        %4979 = vmatprep.mubr.bf16.mxu0 %v4149
        %4980 = vmatmul.mubr.bf16.gmra.mrb[0].mxu0 %v4148
        %v4981 = vpop.f32.mrb[0].mxu0
        %v4982 = vadd.f32 %v4693, %v4981
        %v4983 = vpop.f32.mrb[0].mxu0
        %v4984 = vpop.f32.mrb[0].mxu0
        %v4985 = vadd.f32 %v4696, %v4984
        %v4986 = vpop.f32.mrb[0].mxu0
        %4987 = vmatprep.mubr.bf16.mxu0 %v4157
        %4988 = vmatmul.mubr.bf16.gmra.mrb[0].mxu0 %v4156
        %v4989 = vpop.f32.mrb[0].mxu0
        %v4990 = vadd.f32 %v4701, %v4989
        %v4991 = vpop.f32.mrb[0].mxu0
        %v4992 = vpop.f32.mrb[0].mxu0
        %v4993 = vadd.f32 %v4704, %v4992
        %v4994 = vpop.f32.mrb[0].mxu0
        %4995 = vmatprep.mubr.bf16.mxu0 %v4165
        %4996 = vmatmul.mubr.bf16.gmra.mrb[0].mxu0 %v4164
        %v4997 = vpop.f32.mrb[0].mxu0
        %v4998 = vadd.f32 %v4709, %v4997
        %v4999 = vpop.f32.mrb[0].mxu0
        %v5000 = vpop.f32.mrb[0].mxu0
        %v5001 = vadd.f32 %v4712, %v5000
        %v5002 = vpop.f32.mrb[0].mxu0
        %5003 = vmatprep.mubr.bf16.mxu0 %v4173
        %5004 = vmatmul.mubr.bf16.gmra.mrb[0].mxu0 %v4172
        %v5005 = vpop.f32.mrb[0].mxu0
        %v5006 = vadd.f32 %v4717, %v5005
        %v5007 = vpop.f32.mrb[0].mxu0
        %v5008 = vpop.f32.mrb[0].mxu0
        %v5009 = vadd.f32 %v4720, %v5008
        %v5010 = vpop.f32.mrb[0].mxu0
        %5011 = vmatprep.mubr.bf16.mxu0 %v4181
        %5012 = vmatmul.mubr.bf16.gmra.mrb[0].mxu0 %v4180
        %v5013 = vpop.f32.mrb[0].mxu0
        %v5014 = vadd.f32 %v4725, %v5013
        %v5015 = vpop.f32.mrb[0].mxu0
        %v5016 = vpop.f32.mrb[0].mxu0
        %v5017 = vadd.f32 %v4728, %v5016
        %v5018 = vpop.f32.mrb[0].mxu0
        %5019 = vmatprep.mubr.bf16.mxu0 %v4189
        %5020 = vmatmul.mubr.bf16.gmra.mrb[0].mxu0 %v4188
        %v5021 = vpop.f32.mrb[0].mxu0
        %v5022 = vadd.f32 %v4733, %v5021
        %v5023 = vpop.f32.mrb[0].mxu0
        %v5024 = vpop.f32.mrb[0].mxu0
        %v5025 = vadd.f32 %v4736, %v5024
        %v5026 = vpop.f32.mrb[0].mxu0
        %5027 = vmatprep.mubr.bf16.mxu0 %v4197
        %5028 = vmatmul.mubr.bf16.gmra.mrb[0].mxu0 %v4196
        %v5029 = vpop.f32.mrb[0].mxu0
        %v5030 = vadd.f32 %v4741, %v5029
        %v5031 = vpop.f32.mrb[0].mxu0
        %v5032 = vpop.f32.mrb[0].mxu0
        %v5033 = vadd.f32 %v4744, %v5032
        %v5034 = vpop.f32.mrb[0].mxu0
        %5035 = vmatprep.mubr.bf16.mxu0 %v4205
        %5036 = vmatmul.mubr.bf16.gmra.mrb[0].mxu0 %v4204
        %v5037 = vpop.f32.mrb[0].mxu0
        %v5038 = vadd.f32 %v4749, %v5037
        %v5039 = vpop.f32.mrb[0].mxu0
        %v5040 = vpop.f32.mrb[0].mxu0
        %v5041 = vadd.f32 %v4752, %v5040
        %v5042 = vpop.f32.mrb[0].mxu0
        %5043 = vmatprep.mubr.bf16.mxu0 %v4213
        %5044 = vmatmul.mubr.bf16.gmra.mrb[0].mxu0 %v4212
        %v5045 = vpop.f32.mrb[0].mxu0
        %v5046 = vadd.f32 %v4757, %v5045
        %v5047 = vpop.f32.mrb[0].mxu0
        %v5048 = vpop.f32.mrb[0].mxu0
        %v5049 = vadd.f32 %v4760, %v5048
        %v5050 = vpop.f32.mrb[0].mxu0
        %5051 = vmatprep.mubr.bf16.mxu0 %v4221
        %5052 = vmatmul.mubr.bf16.gmra.mrb[0].mxu0 %v4220
        %v5053 = vpop.f32.mrb[0].mxu0
        %v5054 = vadd.f32 %v4765, %v5053
        %v5055 = vpop.f32.mrb[0].mxu0
        %v5056 = vpop.f32.mrb[0].mxu0
        %v5057 = vadd.f32 %v4768, %v5056
        %v5058 = vpop.f32.mrb[0].mxu0
        %5059 = vmatprep.mubr.bf16.mxu0 %v4229
        %5060 = vmatmul.mubr.bf16.gmra.mrb[0].mxu0 %v4228
        %v5061 = vpop.f32.mrb[0].mxu0
        %v5062 = vadd.f32 %v4773, %v5061
        %v5063 = vpop.f32.mrb[0].mxu0
        %v5064 = vpop.f32.mrb[0].mxu0
        %v5065 = vadd.f32 %v4776, %v5064
        %v5066 = vpop.f32.mrb[0].mxu0
        %5067 = vmatprep.mubr.bf16.mxu0 %v4237
        %5068 = vmatmul.mubr.bf16.gmra.mrb[0].mxu0 %v4236
        %v5069 = vpop.f32.mrb[0].mxu0
        %v5070 = vadd.f32 %v4781, %v5069
        %v5071 = vpop.f32.mrb[0].mxu0
        %v5072 = vpop.f32.mrb[0].mxu0
        %v5073 = vadd.f32 %v4784, %v5072
        %v5074 = vpop.f32.mrb[0].mxu0
        %5075 = vmatprep.mubr.bf16.mxu0 %v4245
        %5076 = vmatmul.mubr.bf16.gmra.mrb[0].mxu0 %v4244
        %v5077 = vpop.f32.mrb[0].mxu0
        %v5078 = vadd.f32 %v4789, %v5077
        %v5079 = vpop.f32.mrb[0].mxu0
        %v5080 = vpop.f32.mrb[0].mxu0
        %v5081 = vadd.f32 %v4792, %v5080
        %v5082 = vpop.f32.mrb[0].mxu0
        %5083 = vmatprep.mubr.bf16.mxu0 %v4253
        %5084 = vmatmul.mubr.bf16.gmra.mrb[0].mxu0 %v4252
        %v5085 = vpop.f32.mrb[0].mxu0
        %v5086 = vadd.f32 %v4797, %v5085
        %v5087 = vpop.f32.mrb[0].mxu0
        %v5088 = vpop.f32.mrb[0].mxu0
        %v5089 = vadd.f32 %v4800, %v5088
        %v5090 = vpop.f32.mrb[0].mxu0
        %5091 = vdwg.mxu0
        %5092 = vmatprep.subr.bf16.mxu0 0
        %5093 = vmatpush1.bf16.msra.mxu0 %v2562
        %5094 = vmatprep.subr.bf16.mxu0 0
        %5095 = vmatpush1.bf16.msra.mxu0 %v2563
        %5096 = vmatprep.subr.bf16.mxu0 0
        %5097 = vmatpush1.bf16.msra.mxu0 %v2564
        %5098 = vmatprep.subr.bf16.mxu0 0
        %5099 = vmatpush1.bf16.msra.mxu0 %v2565
        %5100 = vmatprep.subr.bf16.mxu0 0
        %5101 = vmatpush1.bf16.msra.mxu0 %v2566
        %5102 = vmatprep.subr.bf16.mxu0 0
        %5103 = vmatpush1.bf16.msra.mxu0 %v2567
        %5104 = vmatprep.subr.bf16.mxu0 0
        %5105 = vmatpush1.bf16.msra.mxu0 %v2568
        %5106 = vmatprep.subr.bf16.mxu0 0
        %5107 = vmatpush1.bf16.msra.mxu0 %v2569
        %5108 = vmatprep.subr.bf16.mxu0 0
        %5109 = vmatpush1.bf16.msra.mxu0 %v2570
        %5110 = vmatprep.subr.bf16.mxu0 0
        %5111 = vmatpush1.bf16.msra.mxu0 %v2571
        %5112 = vmatprep.subr.bf16.mxu0 0
        %5113 = vmatpush1.bf16.msra.mxu0 %v2572
        %5114 = vmatprep.subr.bf16.mxu0 0
        %5115 = vmatpush1.bf16.msra.mxu0 %v2573
        %5116 = vmatprep.subr.bf16.mxu0 0
        %5117 = vmatpush1.bf16.msra.mxu0 %v2574
        %5118 = vmatprep.subr.bf16.mxu0 0
        %5119 = vmatpush1.bf16.msra.mxu0 %v2575
        %5120 = vmatprep.subr.bf16.mxu0 0
        %5121 = vmatpush1.bf16.msra.mxu0 %v2576
        %5122 = vmatprep.subr.bf16.mxu0 0
        %5123 = vmatpush1.bf16.msra.mxu0 %v2577
        %5124 = vmatprep.mubr.bf16.mxu0 %v4007
        %5125 = vmatmul.mubr.bf16.gmra.mrb[0].mxu0 %v4006
        %v5126 = vpop.f32.mrb[0].mxu0
        %v5127 = vadd.f32 %v4838, %v5126
        %v5128 = vpop.f32.mrb[0].mxu0
        %v5129 = vpop.f32.mrb[0].mxu0
        %v5130 = vadd.f32 %v4841, %v5129
        %v5131 = vpop.f32.mrb[0].mxu0
        %5132 = vmatprep.mubr.bf16.mxu0 %v4015
        %5133 = vmatmul.mubr.bf16.gmra.mrb[0].mxu0 %v4014
        %v5134 = vpop.f32.mrb[0].mxu0
        %v5135 = vadd.f32 %v4846, %v5134
        %v5136 = vpop.f32.mrb[0].mxu0
        %v5137 = vpop.f32.mrb[0].mxu0
        %v5138 = vadd.f32 %v4849, %v5137
        %v5139 = vpop.f32.mrb[0].mxu0
        %5140 = vmatprep.mubr.bf16.mxu0 %v4023
        %5141 = vmatmul.mubr.bf16.gmra.mrb[0].mxu0 %v4022
        %v5142 = vpop.f32.mrb[0].mxu0
        %v5143 = vadd.f32 %v4854, %v5142
        %v5144 = vpop.f32.mrb[0].mxu0
        %v5145 = vpop.f32.mrb[0].mxu0
        %v5146 = vadd.f32 %v4857, %v5145
        %v5147 = vpop.f32.mrb[0].mxu0
        %5148 = vmatprep.mubr.bf16.mxu0 %v4031
        %5149 = vmatmul.mubr.bf16.gmra.mrb[0].mxu0 %v4030
        %v5150 = vpop.f32.mrb[0].mxu0
        %v5151 = vadd.f32 %v4862, %v5150
        %v5152 = vpop.f32.mrb[0].mxu0
        %v5153 = vpop.f32.mrb[0].mxu0
        %v5154 = vadd.f32 %v4865, %v5153
        %v5155 = vpop.f32.mrb[0].mxu0
        %5156 = vmatprep.mubr.bf16.mxu0 %v4039
        %5157 = vmatmul.mubr.bf16.gmra.mrb[0].mxu0 %v4038
        %v5158 = vpop.f32.mrb[0].mxu0
        %v5159 = vadd.f32 %v4870, %v5158
        %v5160 = vpop.f32.mrb[0].mxu0
        %v5161 = vpop.f32.mrb[0].mxu0
        %v5162 = vadd.f32 %v4873, %v5161
        %v5163 = vpop.f32.mrb[0].mxu0
        %5164 = vmatprep.mubr.bf16.mxu0 %v4047
        %5165 = vmatmul.mubr.bf16.gmra.mrb[0].mxu0 %v4046
        %v5166 = vpop.f32.mrb[0].mxu0
        %v5167 = vadd.f32 %v4878, %v5166
        %v5168 = vpop.f32.mrb[0].mxu0
        %v5169 = vpop.f32.mrb[0].mxu0
        %v5170 = vadd.f32 %v4881, %v5169
        %v5171 = vpop.f32.mrb[0].mxu0
        %5172 = vmatprep.mubr.bf16.mxu0 %v4055
        %5173 = vmatmul.mubr.bf16.gmra.mrb[0].mxu0 %v4054
        %v5174 = vpop.f32.mrb[0].mxu0
        %v5175 = vadd.f32 %v4886, %v5174
        %v5176 = vpop.f32.mrb[0].mxu0
        %v5177 = vpop.f32.mrb[0].mxu0
        %v5178 = vadd.f32 %v4889, %v5177
        %v5179 = vpop.f32.mrb[0].mxu0
        %5180 = vmatprep.mubr.bf16.mxu0 %v4063
        %5181 = vmatmul.mubr.bf16.gmra.mrb[0].mxu0 %v4062
        %v5182 = vpop.f32.mrb[0].mxu0
        %v5183 = vadd.f32 %v4894, %v5182
        %v5184 = vpop.f32.mrb[0].mxu0
        %v5185 = vpop.f32.mrb[0].mxu0
        %v5186 = vadd.f32 %v4897, %v5185
        %v5187 = vpop.f32.mrb[0].mxu0
        %5188 = vmatprep.mubr.bf16.mxu0 %v4071
        %5189 = vmatmul.mubr.bf16.gmra.mrb[0].mxu0 %v4070
        %v5190 = vpop.f32.mrb[0].mxu0
        %v5191 = vadd.f32 %v4902, %v5190
        %v5192 = vpop.f32.mrb[0].mxu0
        %v5193 = vpop.f32.mrb[0].mxu0
        %v5194 = vadd.f32 %v4905, %v5193
        %v5195 = vpop.f32.mrb[0].mxu0
        %5196 = vmatprep.mubr.bf16.mxu0 %v4079
        %5197 = vmatmul.mubr.bf16.gmra.mrb[0].mxu0 %v4078
        %v5198 = vpop.f32.mrb[0].mxu0
        %v5199 = vadd.f32 %v4910, %v5198
        %v5200 = vpop.f32.mrb[0].mxu0
        %v5201 = vpop.f32.mrb[0].mxu0
        %v5202 = vadd.f32 %v4913, %v5201
        %v5203 = vpop.f32.mrb[0].mxu0
        %5204 = vmatprep.mubr.bf16.mxu0 %v4087
        %5205 = vmatmul.mubr.bf16.gmra.mrb[0].mxu0 %v4086
        %v5206 = vpop.f32.mrb[0].mxu0
        %v5207 = vadd.f32 %v4918, %v5206
        %v5208 = vpop.f32.mrb[0].mxu0
        %v5209 = vpop.f32.mrb[0].mxu0
        %v5210 = vadd.f32 %v4921, %v5209
        %v5211 = vpop.f32.mrb[0].mxu0
        %5212 = vmatprep.mubr.bf16.mxu0 %v4095
        %5213 = vmatmul.mubr.bf16.gmra.mrb[0].mxu0 %v4094
        %v5214 = vpop.f32.mrb[0].mxu0
        %v5215 = vadd.f32 %v4926, %v5214
        %v5216 = vpop.f32.mrb[0].mxu0
        %v5217 = vpop.f32.mrb[0].mxu0
        %v5218 = vadd.f32 %v4929, %v5217
        %v5219 = vpop.f32.mrb[0].mxu0
        %5220 = vmatprep.mubr.bf16.mxu0 %v4103
        %5221 = vmatmul.mubr.bf16.gmra.mrb[0].mxu0 %v4102
        %v5222 = vpop.f32.mrb[0].mxu0
        %v5223 = vadd.f32 %v4934, %v5222
        %v5224 = vpop.f32.mrb[0].mxu0
        %v5225 = vpop.f32.mrb[0].mxu0
        %v5226 = vadd.f32 %v4937, %v5225
        %v5227 = vpop.f32.mrb[0].mxu0
        %5228 = vmatprep.mubr.bf16.mxu0 %v4111
        %5229 = vmatmul.mubr.bf16.gmra.mrb[0].mxu0 %v4110
        %v5230 = vpop.f32.mrb[0].mxu0
        %v5231 = vadd.f32 %v4942, %v5230
        %v5232 = vpop.f32.mrb[0].mxu0
        %v5233 = vpop.f32.mrb[0].mxu0
        %v5234 = vadd.f32 %v4945, %v5233
        %v5235 = vpop.f32.mrb[0].mxu0
        %5236 = vmatprep.mubr.bf16.mxu0 %v4119
        %5237 = vmatmul.mubr.bf16.gmra.mrb[0].mxu0 %v4118
        %v5238 = vpop.f32.mrb[0].mxu0
        %v5239 = vadd.f32 %v4950, %v5238
        %v5240 = vpop.f32.mrb[0].mxu0
        %v5241 = vpop.f32.mrb[0].mxu0
        %v5242 = vadd.f32 %v4953, %v5241
        %v5243 = vpop.f32.mrb[0].mxu0
        %5244 = vmatprep.mubr.bf16.mxu0 %v4127
        %5245 = vmatmul.mubr.bf16.gmra.mrb[0].mxu0 %v4126
        %v5246 = vpop.f32.mrb[0].mxu0
        %v5247 = vadd.f32 %v4958, %v5246
        %v5248 = vpop.f32.mrb[0].mxu0
        %v5249 = vpop.f32.mrb[0].mxu0
        %v5250 = vadd.f32 %v4961, %v5249
        %v5251 = vpop.f32.mrb[0].mxu0
        %5252 = vmatprep.mubr.bf16.mxu0 %v4135
        %5253 = vmatmul.mubr.bf16.gmra.mrb[0].mxu0 %v4134
        %v5254 = vpop.f32.mrb[0].mxu0
        %v5255 = vadd.f32 %v4966, %v5254
        %v5256 = vpop.f32.mrb[0].mxu0
        %v5257 = vpop.f32.mrb[0].mxu0
        %v5258 = vadd.f32 %v4969, %v5257
        %v5259 = vpop.f32.mrb[0].mxu0
        %5260 = vmatprep.mubr.bf16.mxu0 %v4143
        %5261 = vmatmul.mubr.bf16.gmra.mrb[0].mxu0 %v4142
        %v5262 = vpop.f32.mrb[0].mxu0
        %v5263 = vadd.f32 %v4974, %v5262
        %v5264 = vpop.f32.mrb[0].mxu0
        %v5265 = vpop.f32.mrb[0].mxu0
        %v5266 = vadd.f32 %v4977, %v5265
        %v5267 = vpop.f32.mrb[0].mxu0
        %5268 = vmatprep.mubr.bf16.mxu0 %v4151
        %5269 = vmatmul.mubr.bf16.gmra.mrb[0].mxu0 %v4150
        %v5270 = vpop.f32.mrb[0].mxu0
        %v5271 = vadd.f32 %v4982, %v5270
        %v5272 = vpop.f32.mrb[0].mxu0
        %v5273 = vpop.f32.mrb[0].mxu0
        %v5274 = vadd.f32 %v4985, %v5273
        %v5275 = vpop.f32.mrb[0].mxu0
        %5276 = vmatprep.mubr.bf16.mxu0 %v4159
        %5277 = vmatmul.mubr.bf16.gmra.mrb[0].mxu0 %v4158
        %v5278 = vpop.f32.mrb[0].mxu0
        %v5279 = vadd.f32 %v4990, %v5278
        %v5280 = vpop.f32.mrb[0].mxu0
        %v5281 = vpop.f32.mrb[0].mxu0
        %v5282 = vadd.f32 %v4993, %v5281
        %v5283 = vpop.f32.mrb[0].mxu0
        %5284 = vmatprep.mubr.bf16.mxu0 %v4167
        %5285 = vmatmul.mubr.bf16.gmra.mrb[0].mxu0 %v4166
        %v5286 = vpop.f32.mrb[0].mxu0
        %v5287 = vadd.f32 %v4998, %v5286
        %v5288 = vpop.f32.mrb[0].mxu0
        %v5289 = vpop.f32.mrb[0].mxu0
        %v5290 = vadd.f32 %v5001, %v5289
        %v5291 = vpop.f32.mrb[0].mxu0
        %5292 = vmatprep.mubr.bf16.mxu0 %v4175
        %5293 = vmatmul.mubr.bf16.gmra.mrb[0].mxu0 %v4174
        %v5294 = vpop.f32.mrb[0].mxu0
        %v5295 = vadd.f32 %v5006, %v5294
        %v5296 = vpop.f32.mrb[0].mxu0
        %v5297 = vpop.f32.mrb[0].mxu0
        %v5298 = vadd.f32 %v5009, %v5297
        %v5299 = vpop.f32.mrb[0].mxu0
        %5300 = vmatprep.mubr.bf16.mxu0 %v4183
        %5301 = vmatmul.mubr.bf16.gmra.mrb[0].mxu0 %v4182
        %v5302 = vpop.f32.mrb[0].mxu0
        %v5303 = vadd.f32 %v5014, %v5302
        %v5304 = vpop.f32.mrb[0].mxu0
        %v5305 = vpop.f32.mrb[0].mxu0
        %v5306 = vadd.f32 %v5017, %v5305
        %v5307 = vpop.f32.mrb[0].mxu0
        %5308 = vmatprep.mubr.bf16.mxu0 %v4191
        %5309 = vmatmul.mubr.bf16.gmra.mrb[0].mxu0 %v4190
        %v5310 = vpop.f32.mrb[0].mxu0
        %v5311 = vadd.f32 %v5022, %v5310
        %v5312 = vpop.f32.mrb[0].mxu0
        %v5313 = vpop.f32.mrb[0].mxu0
        %v5314 = vadd.f32 %v5025, %v5313
        %v5315 = vpop.f32.mrb[0].mxu0
        %5316 = vmatprep.mubr.bf16.mxu0 %v4199
        %5317 = vmatmul.mubr.bf16.gmra.mrb[0].mxu0 %v4198
        %v5318 = vpop.f32.mrb[0].mxu0
        %v5319 = vadd.f32 %v5030, %v5318
        %v5320 = vpop.f32.mrb[0].mxu0
        %v5321 = vpop.f32.mrb[0].mxu0
        %v5322 = vadd.f32 %v5033, %v5321
        %v5323 = vpop.f32.mrb[0].mxu0
        %5324 = vmatprep.mubr.bf16.mxu0 %v4207
        %5325 = vmatmul.mubr.bf16.gmra.mrb[0].mxu0 %v4206
        %v5326 = vpop.f32.mrb[0].mxu0
        %v5327 = vadd.f32 %v5038, %v5326
        %v5328 = vpop.f32.mrb[0].mxu0
        %v5329 = vpop.f32.mrb[0].mxu0
        %v5330 = vadd.f32 %v5041, %v5329
        %v5331 = vpop.f32.mrb[0].mxu0
        %5332 = vmatprep.mubr.bf16.mxu0 %v4215
        %5333 = vmatmul.mubr.bf16.gmra.mrb[0].mxu0 %v4214
        %v5334 = vpop.f32.mrb[0].mxu0
        %v5335 = vadd.f32 %v5046, %v5334
        %v5336 = vpop.f32.mrb[0].mxu0
        %v5337 = vpop.f32.mrb[0].mxu0
        %v5338 = vadd.f32 %v5049, %v5337
        %v5339 = vpop.f32.mrb[0].mxu0
        %5340 = vmatprep.mubr.bf16.mxu0 %v4223
        %5341 = vmatmul.mubr.bf16.gmra.mrb[0].mxu0 %v4222
        %v5342 = vpop.f32.mrb[0].mxu0
        %v5343 = vadd.f32 %v5054, %v5342
        %v5344 = vpop.f32.mrb[0].mxu0
        %v5345 = vpop.f32.mrb[0].mxu0
        %v5346 = vadd.f32 %v5057, %v5345
        %v5347 = vpop.f32.mrb[0].mxu0
        %5348 = vmatprep.mubr.bf16.mxu0 %v4231
        %5349 = vmatmul.mubr.bf16.gmra.mrb[0].mxu0 %v4230
        %v5350 = vpop.f32.mrb[0].mxu0
        %v5351 = vadd.f32 %v5062, %v5350
        %v5352 = vpop.f32.mrb[0].mxu0
        %v5353 = vpop.f32.mrb[0].mxu0
        %v5354 = vadd.f32 %v5065, %v5353
        %v5355 = vpop.f32.mrb[0].mxu0
        %5356 = vmatprep.mubr.bf16.mxu0 %v4239
        %5357 = vmatmul.mubr.bf16.gmra.mrb[0].mxu0 %v4238
        %v5358 = vpop.f32.mrb[0].mxu0
        %v5359 = vadd.f32 %v5070, %v5358
        %v5360 = vpop.f32.mrb[0].mxu0
        %v5361 = vpop.f32.mrb[0].mxu0
        %v5362 = vadd.f32 %v5073, %v5361
        %v5363 = vpop.f32.mrb[0].mxu0
        %5364 = vmatprep.mubr.bf16.mxu0 %v4247
        %5365 = vmatmul.mubr.bf16.gmra.mrb[0].mxu0 %v4246
        %v5366 = vpop.f32.mrb[0].mxu0
        %v5367 = vadd.f32 %v5078, %v5366
        %v5368 = vpop.f32.mrb[0].mxu0
        %v5369 = vpop.f32.mrb[0].mxu0
        %v5370 = vadd.f32 %v5081, %v5369
        %v5371 = vpop.f32.mrb[0].mxu0
        %5372 = vmatprep.mubr.bf16.mxu0 %v4255
        %5373 = vmatmul.mubr.bf16.gmra.mrb[0].mxu0 %v4254
        %v5374 = vpop.f32.mrb[0].mxu0
        %v5375 = vadd.f32 %v5086, %v5374
        %v5376 = vpop.f32.mrb[0].mxu0
        %v5377 = vpop.f32.mrb[0].mxu0
        %v5378 = vadd.f32 %v5089, %v5377
        %v5379 = vpop.f32.mrb[0].mxu0
        %5380 = vdwg.mxu0
        %5381 = vmatprep.subr.bf16.mxu0 0
        %5382 = vmatpush1.bf16.msra.mxu0 %v2578
        %5383 = vmatprep.subr.bf16.mxu0 0
        %5384 = vmatpush1.bf16.msra.mxu0 %v2579
        %5385 = vmatprep.subr.bf16.mxu0 0
        %5386 = vmatpush1.bf16.msra.mxu0 %v2580
        %5387 = vmatprep.subr.bf16.mxu0 0
        %5388 = vmatpush1.bf16.msra.mxu0 %v2581
        %5389 = vmatprep.subr.bf16.mxu0 0
        %5390 = vmatpush1.bf16.msra.mxu0 %v2582
        %5391 = vmatprep.subr.bf16.mxu0 0
        %5392 = vmatpush1.bf16.msra.mxu0 %v2583
        %5393 = vmatprep.subr.bf16.mxu0 0
        %5394 = vmatpush1.bf16.msra.mxu0 %v2584
        %5395 = vmatprep.subr.bf16.mxu0 0
        %5396 = vmatpush1.bf16.msra.mxu0 %v2585
        %5397 = vmatprep.subr.bf16.mxu0 0
        %5398 = vmatpush1.bf16.msra.mxu0 %v2586
        %5399 = vmatprep.subr.bf16.mxu0 0
        %5400 = vmatpush1.bf16.msra.mxu0 %v2587
        %5401 = vmatprep.subr.bf16.mxu0 0
        %5402 = vmatpush1.bf16.msra.mxu0 %v2588
        %5403 = vmatprep.subr.bf16.mxu0 0
        %5404 = vmatpush1.bf16.msra.mxu0 %v2589
        %5405 = vmatprep.subr.bf16.mxu0 0
        %5406 = vmatpush1.bf16.msra.mxu0 %v2590
        %5407 = vmatprep.subr.bf16.mxu0 0
        %5408 = vmatpush1.bf16.msra.mxu0 %v2591
        %5409 = vmatprep.subr.bf16.mxu0 0
        %5410 = vmatpush1.bf16.msra.mxu0 %v2592
        %5411 = vmatprep.subr.bf16.mxu0 0
        %5412 = vmatpush1.bf16.msra.mxu0 %v2593
        %5413 = vmatprep.mubr.bf16.mxu0 %v4009
        %5414 = vmatmul.mubr.bf16.gmra.mrb[0].mxu0 %v4008
        %v5415 = vpop.f32.mrb[0].mxu0
        %v5416 = vadd.f32 %v5127, %v5415
        %v5417 = vpop.f32.mrb[0].mxu0
        %v5418 = vpop.f32.mrb[0].mxu0
        %v5419 = vadd.f32 %v5130, %v5418
        %v5420 = vpop.f32.mrb[0].mxu0
        %5421 = vmatprep.mubr.bf16.mxu0 %v4017
        %5422 = vmatmul.mubr.bf16.gmra.mrb[0].mxu0 %v4016
        %v5423 = vpop.f32.mrb[0].mxu0
        %v5424 = vadd.f32 %v5135, %v5423
        %v5425 = vpop.f32.mrb[0].mxu0
        %v5426 = vpop.f32.mrb[0].mxu0
        %v5427 = vadd.f32 %v5138, %v5426
        %v5428 = vpop.f32.mrb[0].mxu0
        %5429 = vmatprep.mubr.bf16.mxu0 %v4025
        %5430 = vmatmul.mubr.bf16.gmra.mrb[0].mxu0 %v4024
        %v5431 = vpop.f32.mrb[0].mxu0
        %v5432 = vadd.f32 %v5143, %v5431
        %v5433 = vpop.f32.mrb[0].mxu0
        %v5434 = vpop.f32.mrb[0].mxu0
        %v5435 = vadd.f32 %v5146, %v5434
        %v5436 = vpop.f32.mrb[0].mxu0
        %5437 = vmatprep.mubr.bf16.mxu0 %v4033
        %5438 = vmatmul.mubr.bf16.gmra.mrb[0].mxu0 %v4032
        %v5439 = vpop.f32.mrb[0].mxu0
        %v5440 = vadd.f32 %v5151, %v5439
        %v5441 = vpop.f32.mrb[0].mxu0
        %v5442 = vpop.f32.mrb[0].mxu0
        %v5443 = vadd.f32 %v5154, %v5442
        %v5444 = vpop.f32.mrb[0].mxu0
        %5445 = vmatprep.mubr.bf16.mxu0 %v4041
        %5446 = vmatmul.mubr.bf16.gmra.mrb[0].mxu0 %v4040
        %v5447 = vpop.f32.mrb[0].mxu0
        %v5448 = vadd.f32 %v5159, %v5447
        %v5449 = vpop.f32.mrb[0].mxu0
        %v5450 = vpop.f32.mrb[0].mxu0
        %v5451 = vadd.f32 %v5162, %v5450
        %v5452 = vpop.f32.mrb[0].mxu0
        %5453 = vmatprep.mubr.bf16.mxu0 %v4049
        %5454 = vmatmul.mubr.bf16.gmra.mrb[0].mxu0 %v4048
        %v5455 = vpop.f32.mrb[0].mxu0
        %v5456 = vadd.f32 %v5167, %v5455
        %v5457 = vpop.f32.mrb[0].mxu0
        %v5458 = vpop.f32.mrb[0].mxu0
        %v5459 = vadd.f32 %v5170, %v5458
        %v5460 = vpop.f32.mrb[0].mxu0
        %5461 = vmatprep.mubr.bf16.mxu0 %v4057
        %5462 = vmatmul.mubr.bf16.gmra.mrb[0].mxu0 %v4056
        %v5463 = vpop.f32.mrb[0].mxu0
        %v5464 = vadd.f32 %v5175, %v5463
        %v5465 = vpop.f32.mrb[0].mxu0
        %v5466 = vpop.f32.mrb[0].mxu0
        %v5467 = vadd.f32 %v5178, %v5466
        %v5468 = vpop.f32.mrb[0].mxu0
        %5469 = vmatprep.mubr.bf16.mxu0 %v4065
        %5470 = vmatmul.mubr.bf16.gmra.mrb[0].mxu0 %v4064
        %v5471 = vpop.f32.mrb[0].mxu0
        %v5472 = vadd.f32 %v5183, %v5471
        %v5473 = vpop.f32.mrb[0].mxu0
        %v5474 = vpop.f32.mrb[0].mxu0
        %v5475 = vadd.f32 %v5186, %v5474
        %v5476 = vpop.f32.mrb[0].mxu0
        %5477 = vmatprep.mubr.bf16.mxu0 %v4073
        %5478 = vmatmul.mubr.bf16.gmra.mrb[0].mxu0 %v4072
        %v5479 = vpop.f32.mrb[0].mxu0
        %v5480 = vadd.f32 %v5191, %v5479
        %v5481 = vpop.f32.mrb[0].mxu0
        %v5482 = vpop.f32.mrb[0].mxu0
        %v5483 = vadd.f32 %v5194, %v5482
        %v5484 = vpop.f32.mrb[0].mxu0
        %5485 = vmatprep.mubr.bf16.mxu0 %v4081
        %5486 = vmatmul.mubr.bf16.gmra.mrb[0].mxu0 %v4080
        %v5487 = vpop.f32.mrb[0].mxu0
        %v5488 = vadd.f32 %v5199, %v5487
        %v5489 = vpop.f32.mrb[0].mxu0
        %v5490 = vpop.f32.mrb[0].mxu0
        %v5491 = vadd.f32 %v5202, %v5490
        %v5492 = vpop.f32.mrb[0].mxu0
        %5493 = vmatprep.mubr.bf16.mxu0 %v4089
        %5494 = vmatmul.mubr.bf16.gmra.mrb[0].mxu0 %v4088
        %v5495 = vpop.f32.mrb[0].mxu0
        %v5496 = vadd.f32 %v5207, %v5495
        %v5497 = vpop.f32.mrb[0].mxu0
        %v5498 = vpop.f32.mrb[0].mxu0
        %v5499 = vadd.f32 %v5210, %v5498
        %v5500 = vpop.f32.mrb[0].mxu0
        %5501 = vmatprep.mubr.bf16.mxu0 %v4097
        %5502 = vmatmul.mubr.bf16.gmra.mrb[0].mxu0 %v4096
        %v5503 = vpop.f32.mrb[0].mxu0
        %v5504 = vadd.f32 %v5215, %v5503
        %v5505 = vpop.f32.mrb[0].mxu0
        %v5506 = vpop.f32.mrb[0].mxu0
        %v5507 = vadd.f32 %v5218, %v5506
        %v5508 = vpop.f32.mrb[0].mxu0
        %5509 = vmatprep.mubr.bf16.mxu0 %v4105
        %5510 = vmatmul.mubr.bf16.gmra.mrb[0].mxu0 %v4104
        %v5511 = vpop.f32.mrb[0].mxu0
        %v5512 = vadd.f32 %v5223, %v5511
        %v5513 = vpop.f32.mrb[0].mxu0
        %v5514 = vpop.f32.mrb[0].mxu0
        %v5515 = vadd.f32 %v5226, %v5514
        %v5516 = vpop.f32.mrb[0].mxu0
        %5517 = vmatprep.mubr.bf16.mxu0 %v4113
        %5518 = vmatmul.mubr.bf16.gmra.mrb[0].mxu0 %v4112
        %v5519 = vpop.f32.mrb[0].mxu0
        %v5520 = vadd.f32 %v5231, %v5519
        %v5521 = vpop.f32.mrb[0].mxu0
        %v5522 = vpop.f32.mrb[0].mxu0
        %v5523 = vadd.f32 %v5234, %v5522
        %v5524 = vpop.f32.mrb[0].mxu0
        %5525 = vmatprep.mubr.bf16.mxu0 %v4121
        %5526 = vmatmul.mubr.bf16.gmra.mrb[0].mxu0 %v4120
        %v5527 = vpop.f32.mrb[0].mxu0
        %v5528 = vadd.f32 %v5239, %v5527
        %v5529 = vpop.f32.mrb[0].mxu0
        %v5530 = vpop.f32.mrb[0].mxu0
        %v5531 = vadd.f32 %v5242, %v5530
        %v5532 = vpop.f32.mrb[0].mxu0
        %5533 = vmatprep.mubr.bf16.mxu0 %v4129
        %5534 = vmatmul.mubr.bf16.gmra.mrb[0].mxu0 %v4128
        %v5535 = vpop.f32.mrb[0].mxu0
        %v5536 = vadd.f32 %v5247, %v5535
        %v5537 = vpop.f32.mrb[0].mxu0
        %v5538 = vpop.f32.mrb[0].mxu0
        %v5539 = vadd.f32 %v5250, %v5538
        %v5540 = vpop.f32.mrb[0].mxu0
        %5541 = vmatprep.mubr.bf16.mxu0 %v4137
        %5542 = vmatmul.mubr.bf16.gmra.mrb[0].mxu0 %v4136
        %v5543 = vpop.f32.mrb[0].mxu0
        %v5544 = vadd.f32 %v5255, %v5543
        %v5545 = vpop.f32.mrb[0].mxu0
        %v5546 = vpop.f32.mrb[0].mxu0
        %v5547 = vadd.f32 %v5258, %v5546
        %v5548 = vpop.f32.mrb[0].mxu0
        %5549 = vmatprep.mubr.bf16.mxu0 %v4145
        %5550 = vmatmul.mubr.bf16.gmra.mrb[0].mxu0 %v4144
        %v5551 = vpop.f32.mrb[0].mxu0
        %v5552 = vadd.f32 %v5263, %v5551
        %v5553 = vpop.f32.mrb[0].mxu0
        %v5554 = vpop.f32.mrb[0].mxu0
        %v5555 = vadd.f32 %v5266, %v5554
        %v5556 = vpop.f32.mrb[0].mxu0
        %5557 = vmatprep.mubr.bf16.mxu0 %v4153
        %5558 = vmatmul.mubr.bf16.gmra.mrb[0].mxu0 %v4152
        %v5559 = vpop.f32.mrb[0].mxu0
        %v5560 = vadd.f32 %v5271, %v5559
        %v5561 = vpop.f32.mrb[0].mxu0
        %v5562 = vpop.f32.mrb[0].mxu0
        %v5563 = vadd.f32 %v5274, %v5562
        %v5564 = vpop.f32.mrb[0].mxu0
        %5565 = vmatprep.mubr.bf16.mxu0 %v4161
        %5566 = vmatmul.mubr.bf16.gmra.mrb[0].mxu0 %v4160
        %v5567 = vpop.f32.mrb[0].mxu0
        %v5568 = vadd.f32 %v5279, %v5567
        %v5569 = vpop.f32.mrb[0].mxu0
        %v5570 = vpop.f32.mrb[0].mxu0
        %v5571 = vadd.f32 %v5282, %v5570
        %v5572 = vpop.f32.mrb[0].mxu0
        %5573 = vmatprep.mubr.bf16.mxu0 %v4169
        %5574 = vmatmul.mubr.bf16.gmra.mrb[0].mxu0 %v4168
        %v5575 = vpop.f32.mrb[0].mxu0
        %v5576 = vadd.f32 %v5287, %v5575
        %v5577 = vpop.f32.mrb[0].mxu0
        %v5578 = vpop.f32.mrb[0].mxu0
        %v5579 = vadd.f32 %v5290, %v5578
        %v5580 = vpop.f32.mrb[0].mxu0
        %5581 = vmatprep.mubr.bf16.mxu0 %v4177
        %5582 = vmatmul.mubr.bf16.gmra.mrb[0].mxu0 %v4176
        %v5583 = vpop.f32.mrb[0].mxu0
        %v5584 = vadd.f32 %v5295, %v5583
        %v5585 = vpop.f32.mrb[0].mxu0
        %v5586 = vpop.f32.mrb[0].mxu0
        %v5587 = vadd.f32 %v5298, %v5586
        %v5588 = vpop.f32.mrb[0].mxu0
        %5589 = vmatprep.mubr.bf16.mxu0 %v4185
        %5590 = vmatmul.mubr.bf16.gmra.mrb[0].mxu0 %v4184
        %v5591 = vpop.f32.mrb[0].mxu0
        %v5592 = vadd.f32 %v5303, %v5591
        %v5593 = vpop.f32.mrb[0].mxu0
        %v5594 = vpop.f32.mrb[0].mxu0
        %v5595 = vadd.f32 %v5306, %v5594
        %v5596 = vpop.f32.mrb[0].mxu0
        %5597 = vmatprep.mubr.bf16.mxu0 %v4193
        %5598 = vmatmul.mubr.bf16.gmra.mrb[0].mxu0 %v4192
        %v5599 = vpop.f32.mrb[0].mxu0
        %v5600 = vadd.f32 %v5311, %v5599
        %v5601 = vpop.f32.mrb[0].mxu0
        %v5602 = vpop.f32.mrb[0].mxu0
        %v5603 = vadd.f32 %v5314, %v5602
        %v5604 = vpop.f32.mrb[0].mxu0
        %5605 = vmatprep.mubr.bf16.mxu0 %v4201
        %5606 = vmatmul.mubr.bf16.gmra.mrb[0].mxu0 %v4200
        %v5607 = vpop.f32.mrb[0].mxu0
        %v5608 = vadd.f32 %v5319, %v5607
        %v5609 = vpop.f32.mrb[0].mxu0
        %v5610 = vpop.f32.mrb[0].mxu0
        %v5611 = vadd.f32 %v5322, %v5610
        %v5612 = vpop.f32.mrb[0].mxu0
        %5613 = vmatprep.mubr.bf16.mxu0 %v4209
        %5614 = vmatmul.mubr.bf16.gmra.mrb[0].mxu0 %v4208
        %v5615 = vpop.f32.mrb[0].mxu0
        %v5616 = vadd.f32 %v5327, %v5615
        %v5617 = vpop.f32.mrb[0].mxu0
        %v5618 = vpop.f32.mrb[0].mxu0
        %v5619 = vadd.f32 %v5330, %v5618
        %v5620 = vpop.f32.mrb[0].mxu0
        %5621 = vmatprep.mubr.bf16.mxu0 %v4217
        %5622 = vmatmul.mubr.bf16.gmra.mrb[0].mxu0 %v4216
        %v5623 = vpop.f32.mrb[0].mxu0
        %v5624 = vadd.f32 %v5335, %v5623
        %v5625 = vpop.f32.mrb[0].mxu0
        %v5626 = vpop.f32.mrb[0].mxu0
        %v5627 = vadd.f32 %v5338, %v5626
        %v5628 = vpop.f32.mrb[0].mxu0
        %5629 = vmatprep.mubr.bf16.mxu0 %v4225
        %5630 = vmatmul.mubr.bf16.gmra.mrb[0].mxu0 %v4224
        %v5631 = vpop.f32.mrb[0].mxu0
        %v5632 = vadd.f32 %v5343, %v5631
        %v5633 = vpop.f32.mrb[0].mxu0
        %v5634 = vpop.f32.mrb[0].mxu0
        %v5635 = vadd.f32 %v5346, %v5634
        %v5636 = vpop.f32.mrb[0].mxu0
        %5637 = vmatprep.mubr.bf16.mxu0 %v4233
        %5638 = vmatmul.mubr.bf16.gmra.mrb[0].mxu0 %v4232
        %v5639 = vpop.f32.mrb[0].mxu0
        %v5640 = vadd.f32 %v5351, %v5639
        %v5641 = vpop.f32.mrb[0].mxu0
        %v5642 = vpop.f32.mrb[0].mxu0
        %v5643 = vadd.f32 %v5354, %v5642
        %v5644 = vpop.f32.mrb[0].mxu0
        %5645 = vmatprep.mubr.bf16.mxu0 %v4241
        %5646 = vmatmul.mubr.bf16.gmra.mrb[0].mxu0 %v4240
        %v5647 = vpop.f32.mrb[0].mxu0
        %v5648 = vadd.f32 %v5359, %v5647
        %v5649 = vpop.f32.mrb[0].mxu0
        %v5650 = vpop.f32.mrb[0].mxu0
        %v5651 = vadd.f32 %v5362, %v5650
        %v5652 = vpop.f32.mrb[0].mxu0
        %5653 = vmatprep.mubr.bf16.mxu0 %v4249
        %5654 = vmatmul.mubr.bf16.gmra.mrb[0].mxu0 %v4248
        %v5655 = vpop.f32.mrb[0].mxu0
        %v5656 = vadd.f32 %v5367, %v5655
        %v5657 = vpop.f32.mrb[0].mxu0
        %v5658 = vpop.f32.mrb[0].mxu0
        %v5659 = vadd.f32 %v5370, %v5658
        %v5660 = vpop.f32.mrb[0].mxu0
        %5661 = vmatprep.mubr.bf16.mxu0 %v4257
        %5662 = vmatmul.mubr.bf16.gmra.mrb[0].mxu0 %v4256
        %v5663 = vpop.f32.mrb[0].mxu0
        %v5664 = vadd.f32 %v5375, %v5663
        %v5665 = vpop.f32.mrb[0].mxu0
        %v5666 = vpop.f32.mrb[0].mxu0
        %v5667 = vadd.f32 %v5378, %v5666
        %v5668 = vpop.f32.mrb[0].mxu0
        %5669 = vdwg.mxu0
        %v5670 = vmax.f32 %v5416, 0.0
        %v5671 = vmax.f32 %v5419, 0.0
        %v5672 = vmax.f32 %v5424, 0.0
        %v5673 = vmax.f32 %v5427, 0.0
        %v5674 = vmax.f32 %v5432, 0.0
        %v5675 = vmax.f32 %v5435, 0.0
        %v5676 = vmax.f32 %v5440, 0.0
        %v5677 = vmax.f32 %v5443, 0.0
        %v5678 = vmax.f32 %v5448, 0.0
        %v5679 = vmax.f32 %v5451, 0.0
        %v5680 = vmax.f32 %v5456, 0.0
        %v5681 = vmax.f32 %v5459, 0.0
        %v5682 = vmax.f32 %v5464, 0.0
        %v5683 = vmax.f32 %v5467, 0.0
        %v5684 = vmax.f32 %v5472, 0.0
        %v5685 = vmax.f32 %v5475, 0.0
        %v5686 = vmax.f32 %v5480, 0.0
        %v5687 = vmax.f32 %v5483, 0.0
        %v5688 = vmax.f32 %v5488, 0.0
        %v5689 = vmax.f32 %v5491, 0.0
        %v5690 = vmax.f32 %v5496, 0.0
        %v5691 = vmax.f32 %v5499, 0.0
        %v5692 = vmax.f32 %v5504, 0.0
        %v5693 = vmax.f32 %v5507, 0.0
        %v5694 = vmax.f32 %v5512, 0.0
        %v5695 = vmax.f32 %v5515, 0.0
        %v5696 = vmax.f32 %v5520, 0.0
        %v5697 = vmax.f32 %v5523, 0.0
        %v5698 = vmax.f32 %v5528, 0.0
        %v5699 = vmax.f32 %v5531, 0.0
        %v5700 = vmax.f32 %v5536, 0.0
        %v5701 = vmax.f32 %v5539, 0.0
        %v5702 = vmax.f32 %v5544, 0.0
        %v5703 = vmax.f32 %v5547, 0.0
        %v5704 = vmax.f32 %v5552, 0.0
        %v5705 = vmax.f32 %v5555, 0.0
        %v5706 = vmax.f32 %v5560, 0.0
        %v5707 = vmax.f32 %v5563, 0.0
        %v5708 = vmax.f32 %v5568, 0.0
        %v5709 = vmax.f32 %v5571, 0.0
        %v5710 = vmax.f32 %v5576, 0.0
        %v5711 = vmax.f32 %v5579, 0.0
        %v5712 = vmax.f32 %v5584, 0.0
        %v5713 = vmax.f32 %v5587, 0.0
        %v5714 = vmax.f32 %v5592, 0.0
        %v5715 = vmax.f32 %v5595, 0.0
        %v5716 = vmax.f32 %v5600, 0.0
        %v5717 = vmax.f32 %v5603, 0.0
        %v5718 = vmax.f32 %v5608, 0.0
        %v5719 = vmax.f32 %v5611, 0.0
        %v5720 = vmax.f32 %v5616, 0.0
        %v5721 = vmax.f32 %v5619, 0.0
        %v5722 = vmax.f32 %v5624, 0.0
        %v5723 = vmax.f32 %v5627, 0.0
        %v5724 = vmax.f32 %v5632, 0.0
        %v5725 = vmax.f32 %v5635, 0.0
        %v5726 = vmax.f32 %v5640, 0.0
        %v5727 = vmax.f32 %v5643, 0.0
        %v5728 = vmax.f32 %v5648, 0.0
        %v5729 = vmax.f32 %v5651, 0.0
        %v5730 = vmax.f32 %v5656, 0.0
        %v5731 = vmax.f32 %v5659, 0.0
        %v5732 = vmax.f32 %v5664, 0.0
        %v5733 = vmax.f32 %v5667, 0.0
        %v5734 = vpack.c.bf16 %v5671, %v5670
        %v5735 = vpack.c.bf16 %v5673, %v5672
        %v5736 = vpack.c.bf16 %v5675, %v5674
        %v5737 = vpack.c.bf16 %v5677, %v5676
        %v5738 = vpack.c.bf16 %v5679, %v5678
        %v5739 = vpack.c.bf16 %v5681, %v5680
        %v5740 = vpack.c.bf16 %v5683, %v5682
        %v5741 = vpack.c.bf16 %v5685, %v5684
        %v5742 = vpack.c.bf16 %v5687, %v5686
        %v5743 = vpack.c.bf16 %v5689, %v5688
        %v5744 = vpack.c.bf16 %v5691, %v5690
        %v5745 = vpack.c.bf16 %v5693, %v5692
        %v5746 = vpack.c.bf16 %v5695, %v5694
        %v5747 = vpack.c.bf16 %v5697, %v5696
        %v5748 = vpack.c.bf16 %v5699, %v5698
        %v5749 = vpack.c.bf16 %v5701, %v5700
        %v5750 = vpack.c.bf16 %v5703, %v5702
        %v5751 = vpack.c.bf16 %v5705, %v5704
        %v5752 = vpack.c.bf16 %v5707, %v5706
        %v5753 = vpack.c.bf16 %v5709, %v5708
        %v5754 = vpack.c.bf16 %v5711, %v5710
        %v5755 = vpack.c.bf16 %v5713, %v5712
        %v5756 = vpack.c.bf16 %v5715, %v5714
        %v5757 = vpack.c.bf16 %v5717, %v5716
        %v5758 = vpack.c.bf16 %v5719, %v5718
        %v5759 = vpack.c.bf16 %v5721, %v5720
        %v5760 = vpack.c.bf16 %v5723, %v5722
        %v5761 = vpack.c.bf16 %v5725, %v5724
        %v5762 = vpack.c.bf16 %v5727, %v5726
        %v5763 = vpack.c.bf16 %v5729, %v5728
        %v5764 = vpack.c.bf16 %v5731, %v5730
        %v5765 = vpack.c.bf16 %v5733, %v5732
        %v5766 = vld [vmem:[%s5] sm:$0xff]
        %v5767 = vld [vmem:[%s5 + $0x8] sm:$0xff]
        %v5768 = vld [vmem:[%s5 + $0x10] sm:$0xff]
        %v5769 = vld [vmem:[%s5 + $0x18] sm:$0xff]
        %v5770 = vld [vmem:[%s5 + $0x20] sm:$0xff]
        %v5771 = vld [vmem:[%s5 + $0x28] sm:$0xff]
        %v5772 = vld [vmem:[%s5 + $0x30] sm:$0xff]
        %v5773 = vld [vmem:[%s5 + $0x38] sm:$0xff]
        %v5774 = vld [vmem:[%s5 + $0x40] sm:$0xff]
        %v5775 = vld [vmem:[%s5 + $0x48] sm:$0xff]
        %v5776 = vld [vmem:[%s5 + $0x50] sm:$0xff]
        %v5777 = vld [vmem:[%s5 + $0x58] sm:$0xff]
        %v5778 = vld [vmem:[%s5 + $0x60] sm:$0xff]
        %v5779 = vld [vmem:[%s5 + $0x68] sm:$0xff]
        %v5780 = vld [vmem:[%s5 + $0x70] sm:$0xff]
        %v5781 = vld [vmem:[%s5 + $0x78] sm:$0xff]
        %v5782 = vld [vmem:[%s5 + $0x80] sm:$0xff]
        %v5783 = vld [vmem:[%s5 + $0x88] sm:$0xff]
        %v5784 = vld [vmem:[%s5 + $0x90] sm:$0xff]
        %v5785 = vld [vmem:[%s5 + $0x98] sm:$0xff]
        %v5786 = vld [vmem:[%s5 + $0xa0] sm:$0xff]
        %v5787 = vld [vmem:[%s5 + $0xa8] sm:$0xff]
        %v5788 = vld [vmem:[%s5 + $0xb0] sm:$0xff]
        %v5789 = vld [vmem:[%s5 + $0xb8] sm:$0xff]
        %v5790 = vld [vmem:[%s5 + $0xc0] sm:$0xff]
        %v5791 = vld [vmem:[%s5 + $0xc8] sm:$0xff]
        %v5792 = vld [vmem:[%s5 + $0xd0] sm:$0xff]
        %v5793 = vld [vmem:[%s5 + $0xd8] sm:$0xff]
        %v5794 = vld [vmem:[%s5 + $0xe0] sm:$0xff]
        %v5795 = vld [vmem:[%s5 + $0xe8] sm:$0xff]
        %v5796 = vld [vmem:[%s5 + $0xf0] sm:$0xff]
        %v5797 = vld [vmem:[%s5 + $0xf8] sm:$0xff]
        %v5798 = vld [vmem:[%s5 + $0x100] sm:$0xff]
        %v5799 = vld [vmem:[%s5 + $0x108] sm:$0xff]
        %v5800 = vld [vmem:[%s5 + $0x110] sm:$0xff]
        %v5801 = vld [vmem:[%s5 + $0x118] sm:$0xff]
        %v5802 = vld [vmem:[%s5 + $0x120] sm:$0xff]
        %v5803 = vld [vmem:[%s5 + $0x128] sm:$0xff]
        %v5804 = vld [vmem:[%s5 + $0x130] sm:$0xff]
        %v5805 = vld [vmem:[%s5 + $0x138] sm:$0xff]
        %v5806 = vld [vmem:[%s5 + $0x140] sm:$0xff]
        %v5807 = vld [vmem:[%s5 + $0x148] sm:$0xff]
        %v5808 = vld [vmem:[%s5 + $0x150] sm:$0xff]
        %v5809 = vld [vmem:[%s5 + $0x158] sm:$0xff]
        %v5810 = vld [vmem:[%s5 + $0x160] sm:$0xff]
        %v5811 = vld [vmem:[%s5 + $0x168] sm:$0xff]
        %v5812 = vld [vmem:[%s5 + $0x170] sm:$0xff]
        %v5813 = vld [vmem:[%s5 + $0x178] sm:$0xff]
        %v5814 = vld [vmem:[%s5 + $0x180] sm:$0xff]
        %v5815 = vld [vmem:[%s5 + $0x188] sm:$0xff]
        %v5816 = vld [vmem:[%s5 + $0x190] sm:$0xff]
        %v5817 = vld [vmem:[%s5 + $0x198] sm:$0xff]
        %v5818 = vld [vmem:[%s5 + $0x1a0] sm:$0xff]
        %v5819 = vld [vmem:[%s5 + $0x1a8] sm:$0xff]
        %v5820 = vld [vmem:[%s5 + $0x1b0] sm:$0xff]
        %v5821 = vld [vmem:[%s5 + $0x1b8] sm:$0xff]
        %v5822 = vld [vmem:[%s5 + $0x1c0] sm:$0xff]
        %v5823 = vld [vmem:[%s5 + $0x1c8] sm:$0xff]
        %v5824 = vld [vmem:[%s5 + $0x1d0] sm:$0xff]
        %v5825 = vld [vmem:[%s5 + $0x1d8] sm:$0xff]
        %v5826 = vld [vmem:[%s5 + $0x1e0] sm:$0xff]
        %v5827 = vld [vmem:[%s5 + $0x1e8] sm:$0xff]
        %v5828 = vld [vmem:[%s5 + $0x1f0] sm:$0xff]
        %v5829 = vld [vmem:[%s5 + $0x1f8] sm:$0xff]
        %v5830 = vld [vmem:[%s6] sm:$0xff]
        %v5831 = vld [vmem:[%s6 + $0x8] sm:$0xff]
        %v5832 = vld [vmem:[%s6 + $0x10] sm:$0xff]
        %v5833 = vld [vmem:[%s6 + $0x18] sm:$0xff]
        %v5834 = vld [vmem:[%s6 + $0x20] sm:$0xff]
        %v5835 = vld [vmem:[%s6 + $0x28] sm:$0xff]
        %v5836 = vld [vmem:[%s6 + $0x30] sm:$0xff]
        %v5837 = vld [vmem:[%s6 + $0x38] sm:$0xff]
        %v5838 = vld [vmem:[%s6 + $0x40] sm:$0xff]
        %v5839 = vld [vmem:[%s6 + $0x48] sm:$0xff]
        %v5840 = vld [vmem:[%s6 + $0x50] sm:$0xff]
        %v5841 = vld [vmem:[%s6 + $0x58] sm:$0xff]
        %v5842 = vld [vmem:[%s6 + $0x60] sm:$0xff]
        %v5843 = vld [vmem:[%s6 + $0x68] sm:$0xff]
        %v5844 = vld [vmem:[%s6 + $0x70] sm:$0xff]
        %v5845 = vld [vmem:[%s6 + $0x78] sm:$0xff]
        %v5846 = vld [vmem:[%s6 + $0x80] sm:$0xff]
        %v5847 = vld [vmem:[%s6 + $0x88] sm:$0xff]
        %v5848 = vld [vmem:[%s6 + $0x90] sm:$0xff]
        %v5849 = vld [vmem:[%s6 + $0x98] sm:$0xff]
        %v5850 = vld [vmem:[%s6 + $0xa0] sm:$0xff]
        %v5851 = vld [vmem:[%s6 + $0xa8] sm:$0xff]
        %v5852 = vld [vmem:[%s6 + $0xb0] sm:$0xff]
        %v5853 = vld [vmem:[%s6 + $0xb8] sm:$0xff]
        %v5854 = vld [vmem:[%s6 + $0xc0] sm:$0xff]
        %v5855 = vld [vmem:[%s6 + $0xc8] sm:$0xff]
        %v5856 = vld [vmem:[%s6 + $0xd0] sm:$0xff]
        %v5857 = vld [vmem:[%s6 + $0xd8] sm:$0xff]
        %v5858 = vld [vmem:[%s6 + $0xe0] sm:$0xff]
        %v5859 = vld [vmem:[%s6 + $0xe8] sm:$0xff]
        %v5860 = vld [vmem:[%s6 + $0xf0] sm:$0xff]
        %v5861 = vld [vmem:[%s6 + $0xf8] sm:$0xff]
        %5863 = vset.pattern.permute.xlu0 0
        %5864 = vperm.xlu0 %5863, %v5830
        %v5865 = vpop.permute.xlu0 %5864
        %5868 = vset.pattern.permute.xlu0 0
        %5869 = vperm.xlu0 %5868, %v5831
        %v5870 = vpop.permute.xlu0 %5869
        %5873 = vset.pattern.permute.xlu0 0
        %5874 = vperm.xlu0 %5873, %v5832
        %v5875 = vpop.permute.xlu0 %5874
        %5878 = vset.pattern.permute.xlu0 0
        %5879 = vperm.xlu0 %5878, %v5833
        %v5880 = vpop.permute.xlu0 %5879
        %5883 = vset.pattern.permute.xlu0 0
        %5884 = vperm.xlu0 %5883, %v5834
        %v5885 = vpop.permute.xlu0 %5884
        %5888 = vset.pattern.permute.xlu0 0
        %5889 = vperm.xlu0 %5888, %v5835
        %v5890 = vpop.permute.xlu0 %5889
        %5893 = vset.pattern.permute.xlu0 0
        %5894 = vperm.xlu0 %5893, %v5836
        %v5895 = vpop.permute.xlu0 %5894
        %5898 = vset.pattern.permute.xlu0 0
        %5899 = vperm.xlu0 %5898, %v5837
        %v5900 = vpop.permute.xlu0 %5899
        %5903 = vset.pattern.permute.xlu0 0
        %5904 = vperm.xlu0 %5903, %v5838
        %v5905 = vpop.permute.xlu0 %5904
        %5908 = vset.pattern.permute.xlu0 0
        %5909 = vperm.xlu0 %5908, %v5839
        %v5910 = vpop.permute.xlu0 %5909
        %5913 = vset.pattern.permute.xlu0 0
        %5914 = vperm.xlu0 %5913, %v5840
        %v5915 = vpop.permute.xlu0 %5914
        %5918 = vset.pattern.permute.xlu0 0
        %5919 = vperm.xlu0 %5918, %v5841
        %v5920 = vpop.permute.xlu0 %5919
        %5923 = vset.pattern.permute.xlu0 0
        %5924 = vperm.xlu0 %5923, %v5842
        %v5925 = vpop.permute.xlu0 %5924
        %5928 = vset.pattern.permute.xlu0 0
        %5929 = vperm.xlu0 %5928, %v5843
        %v5930 = vpop.permute.xlu0 %5929
        %5933 = vset.pattern.permute.xlu0 0
        %5934 = vperm.xlu0 %5933, %v5844
        %v5935 = vpop.permute.xlu0 %5934
        %5938 = vset.pattern.permute.xlu0 0
        %5939 = vperm.xlu0 %5938, %v5845
        %v5940 = vpop.permute.xlu0 %5939
        %5943 = vset.pattern.permute.xlu0 0
        %5944 = vperm.xlu0 %5943, %v5846
        %v5945 = vpop.permute.xlu0 %5944
        %5948 = vset.pattern.permute.xlu0 0
        %5949 = vperm.xlu0 %5948, %v5847
        %v5950 = vpop.permute.xlu0 %5949
        %5953 = vset.pattern.permute.xlu0 0
        %5954 = vperm.xlu0 %5953, %v5848
        %v5955 = vpop.permute.xlu0 %5954
        %5958 = vset.pattern.permute.xlu0 0
        %5959 = vperm.xlu0 %5958, %v5849
        %v5960 = vpop.permute.xlu0 %5959
        %5963 = vset.pattern.permute.xlu0 0
        %5964 = vperm.xlu0 %5963, %v5850
        %v5965 = vpop.permute.xlu0 %5964
        %5968 = vset.pattern.permute.xlu0 0
        %5969 = vperm.xlu0 %5968, %v5851
        %v5970 = vpop.permute.xlu0 %5969
        %5973 = vset.pattern.permute.xlu0 0
        %5974 = vperm.xlu0 %5973, %v5852
        %v5975 = vpop.permute.xlu0 %5974
        %5978 = vset.pattern.permute.xlu0 0
        %5979 = vperm.xlu0 %5978, %v5853
        %v5980 = vpop.permute.xlu0 %5979
        %5983 = vset.pattern.permute.xlu0 0
        %5984 = vperm.xlu0 %5983, %v5854
        %v5985 = vpop.permute.xlu0 %5984
        %5988 = vset.pattern.permute.xlu0 0
        %5989 = vperm.xlu0 %5988, %v5855
        %v5990 = vpop.permute.xlu0 %5989
        %5993 = vset.pattern.permute.xlu0 0
        %5994 = vperm.xlu0 %5993, %v5856
        %v5995 = vpop.permute.xlu0 %5994
        %5998 = vset.pattern.permute.xlu0 0
        %5999 = vperm.xlu0 %5998, %v5857
        %v6000 = vpop.permute.xlu0 %5999
        %6003 = vset.pattern.permute.xlu0 0
        %6004 = vperm.xlu0 %6003, %v5858
        %v6005 = vpop.permute.xlu0 %6004
        %6008 = vset.pattern.permute.xlu0 0
        %6009 = vperm.xlu0 %6008, %v5859
        %v6010 = vpop.permute.xlu0 %6009
        %6013 = vset.pattern.permute.xlu0 0
        %6014 = vperm.xlu0 %6013, %v5860
        %v6015 = vpop.permute.xlu0 %6014
        %6018 = vset.pattern.permute.xlu0 0
        %6019 = vperm.xlu0 %6018, %v5861
        %v6020 = vpop.permute.xlu0 %6019
        %v6086 = vunpack.c.l.b16 %v5766
        %v6087 = vunpack.c.h.b16 %v5766
        %v6088 = vunpack.c.l.b16 %v5767
        %v6089 = vunpack.c.h.b16 %v5767
        %v6090 = vunpack.c.l.b16 %v5768
        %v6091 = vunpack.c.h.b16 %v5768
        %v6092 = vunpack.c.l.b16 %v5769
        %v6093 = vunpack.c.h.b16 %v5769
        %v6094 = vunpack.c.l.b16 %v5770
        %v6095 = vunpack.c.h.b16 %v5770
        %v6096 = vunpack.c.l.b16 %v5771
        %v6097 = vunpack.c.h.b16 %v5771
        %v6098 = vunpack.c.l.b16 %v5772
        %v6099 = vunpack.c.h.b16 %v5772
        %v6100 = vunpack.c.l.b16 %v5773
        %v6101 = vunpack.c.h.b16 %v5773
        %v6102 = vunpack.c.l.b16 %v5774
        %v6103 = vunpack.c.h.b16 %v5774
        %v6104 = vunpack.c.l.b16 %v5775
        %v6105 = vunpack.c.h.b16 %v5775
        %v6106 = vunpack.c.l.b16 %v5776
        %v6107 = vunpack.c.h.b16 %v5776
        %v6108 = vunpack.c.l.b16 %v5777
        %v6109 = vunpack.c.h.b16 %v5777
        %v6110 = vunpack.c.l.b16 %v5778
        %v6111 = vunpack.c.h.b16 %v5778
        %v6112 = vunpack.c.l.b16 %v5779
        %v6113 = vunpack.c.h.b16 %v5779
        %v6114 = vunpack.c.l.b16 %v5780
        %v6115 = vunpack.c.h.b16 %v5780
        %v6116 = vunpack.c.l.b16 %v5781
        %v6117 = vunpack.c.h.b16 %v5781
        %v6118 = vunpack.c.l.b16 %v5782
        %v6119 = vunpack.c.h.b16 %v5782
        %v6120 = vunpack.c.l.b16 %v5783
        %v6121 = vunpack.c.h.b16 %v5783
        %v6122 = vunpack.c.l.b16 %v5784
        %v6123 = vunpack.c.h.b16 %v5784
        %v6124 = vunpack.c.l.b16 %v5785
        %v6125 = vunpack.c.h.b16 %v5785
        %v6126 = vunpack.c.l.b16 %v5786
        %v6127 = vunpack.c.h.b16 %v5786
        %v6128 = vunpack.c.l.b16 %v5787
        %v6129 = vunpack.c.h.b16 %v5787
        %v6130 = vunpack.c.l.b16 %v5788
        %v6131 = vunpack.c.h.b16 %v5788
        %v6132 = vunpack.c.l.b16 %v5789
        %v6133 = vunpack.c.h.b16 %v5789
        %v6134 = vunpack.c.l.b16 %v5790
        %v6135 = vunpack.c.h.b16 %v5790
        %v6136 = vunpack.c.l.b16 %v5791
        %v6137 = vunpack.c.h.b16 %v5791
        %v6138 = vunpack.c.l.b16 %v5792
        %v6139 = vunpack.c.h.b16 %v5792
        %v6140 = vunpack.c.l.b16 %v5793
        %v6141 = vunpack.c.h.b16 %v5793
        %v6142 = vunpack.c.l.b16 %v5794
        %v6143 = vunpack.c.h.b16 %v5794
        %v6144 = vunpack.c.l.b16 %v5795
        %v6145 = vunpack.c.h.b16 %v5795
        %v6146 = vunpack.c.l.b16 %v5796
        %v6147 = vunpack.c.h.b16 %v5796
        %v6148 = vunpack.c.l.b16 %v5797
        %v6149 = vunpack.c.h.b16 %v5797
        %v6150 = vunpack.c.l.b16 %v5798
        %v6151 = vunpack.c.h.b16 %v5798
        %v6152 = vunpack.c.l.b16 %v5799
        %v6153 = vunpack.c.h.b16 %v5799
        %v6154 = vunpack.c.l.b16 %v5800
        %v6155 = vunpack.c.h.b16 %v5800
        %v6156 = vunpack.c.l.b16 %v5801
        %v6157 = vunpack.c.h.b16 %v5801
        %v6158 = vunpack.c.l.b16 %v5802
        %v6159 = vunpack.c.h.b16 %v5802
        %v6160 = vunpack.c.l.b16 %v5803
        %v6161 = vunpack.c.h.b16 %v5803
        %v6162 = vunpack.c.l.b16 %v5804
        %v6163 = vunpack.c.h.b16 %v5804
        %v6164 = vunpack.c.l.b16 %v5805
        %v6165 = vunpack.c.h.b16 %v5805
        %v6166 = vunpack.c.l.b16 %v5806
        %v6167 = vunpack.c.h.b16 %v5806
        %v6168 = vunpack.c.l.b16 %v5807
        %v6169 = vunpack.c.h.b16 %v5807
        %v6170 = vunpack.c.l.b16 %v5808
        %v6171 = vunpack.c.h.b16 %v5808
        %v6172 = vunpack.c.l.b16 %v5809
        %v6173 = vunpack.c.h.b16 %v5809
        %v6174 = vunpack.c.l.b16 %v5810
        %v6175 = vunpack.c.h.b16 %v5810
        %v6176 = vunpack.c.l.b16 %v5811
        %v6177 = vunpack.c.h.b16 %v5811
        %v6178 = vunpack.c.l.b16 %v5812
        %v6179 = vunpack.c.h.b16 %v5812
        %v6180 = vunpack.c.l.b16 %v5813
        %v6181 = vunpack.c.h.b16 %v5813
        %v6182 = vunpack.c.l.b16 %v5814
        %v6183 = vunpack.c.h.b16 %v5814
        %v6184 = vunpack.c.l.b16 %v5815
        %v6185 = vunpack.c.h.b16 %v5815
        %v6186 = vunpack.c.l.b16 %v5816
        %v6187 = vunpack.c.h.b16 %v5816
        %v6188 = vunpack.c.l.b16 %v5817
        %v6189 = vunpack.c.h.b16 %v5817
        %v6190 = vunpack.c.l.b16 %v5818
        %v6191 = vunpack.c.h.b16 %v5818
        %v6192 = vunpack.c.l.b16 %v5819
        %v6193 = vunpack.c.h.b16 %v5819
        %v6194 = vunpack.c.l.b16 %v5820
        %v6195 = vunpack.c.h.b16 %v5820
        %v6196 = vunpack.c.l.b16 %v5821
        %v6197 = vunpack.c.h.b16 %v5821
        %v6198 = vunpack.c.l.b16 %v5822
        %v6199 = vunpack.c.h.b16 %v5822
        %v6200 = vunpack.c.l.b16 %v5823
        %v6201 = vunpack.c.h.b16 %v5823
        %v6202 = vunpack.c.l.b16 %v5824
        %v6203 = vunpack.c.h.b16 %v5824
        %v6204 = vunpack.c.l.b16 %v5825
        %v6205 = vunpack.c.h.b16 %v5825
        %v6206 = vunpack.c.l.b16 %v5826
        %v6207 = vunpack.c.h.b16 %v5826
        %v6208 = vunpack.c.l.b16 %v5827
        %v6209 = vunpack.c.h.b16 %v5827
        %v6210 = vunpack.c.l.b16 %v5828
        %v6211 = vunpack.c.h.b16 %v5828
        %v6212 = vunpack.c.l.b16 %v5829
        %v6213 = vunpack.c.h.b16 %v5829
        %v6214 = vpack.c.b16 %v6090, %v6086
        %v6215 = vpack.c.b16 %v6091, %v6087
        %v6216 = vpack.c.b16 %v6092, %v6088
        %v6217 = vpack.c.b16 %v6093, %v6089
        %v6218 = vpack.c.b16 %v6098, %v6094
        %v6219 = vpack.c.b16 %v6099, %v6095
        %v6220 = vpack.c.b16 %v6100, %v6096
        %v6221 = vpack.c.b16 %v6101, %v6097
        %v6222 = vpack.c.b16 %v6106, %v6102
        %v6223 = vpack.c.b16 %v6107, %v6103
        %v6224 = vpack.c.b16 %v6108, %v6104
        %v6225 = vpack.c.b16 %v6109, %v6105
        %v6226 = vpack.c.b16 %v6114, %v6110
        %v6227 = vpack.c.b16 %v6115, %v6111
        %v6228 = vpack.c.b16 %v6116, %v6112
        %v6229 = vpack.c.b16 %v6117, %v6113
        %v6230 = vpack.c.b16 %v6122, %v6118
        %v6231 = vpack.c.b16 %v6123, %v6119
        %v6232 = vpack.c.b16 %v6124, %v6120
        %v6233 = vpack.c.b16 %v6125, %v6121
        %v6234 = vpack.c.b16 %v6130, %v6126
        %v6235 = vpack.c.b16 %v6131, %v6127
        %v6236 = vpack.c.b16 %v6132, %v6128
        %v6237 = vpack.c.b16 %v6133, %v6129
        %v6238 = vpack.c.b16 %v6138, %v6134
        %v6239 = vpack.c.b16 %v6139, %v6135
        %v6240 = vpack.c.b16 %v6140, %v6136
        %v6241 = vpack.c.b16 %v6141, %v6137
        %v6242 = vpack.c.b16 %v6146, %v6142
        %v6243 = vpack.c.b16 %v6147, %v6143
        %v6244 = vpack.c.b16 %v6148, %v6144
        %v6245 = vpack.c.b16 %v6149, %v6145
        %v6246 = vpack.c.b16 %v6154, %v6150
        %v6247 = vpack.c.b16 %v6155, %v6151
        %v6248 = vpack.c.b16 %v6156, %v6152
        %v6249 = vpack.c.b16 %v6157, %v6153
        %v6250 = vpack.c.b16 %v6162, %v6158
        %v6251 = vpack.c.b16 %v6163, %v6159
        %v6252 = vpack.c.b16 %v6164, %v6160
        %v6253 = vpack.c.b16 %v6165, %v6161
        %v6254 = vpack.c.b16 %v6170, %v6166
        %v6255 = vpack.c.b16 %v6171, %v6167
        %v6256 = vpack.c.b16 %v6172, %v6168
        %v6257 = vpack.c.b16 %v6173, %v6169
        %v6258 = vpack.c.b16 %v6178, %v6174
        %v6259 = vpack.c.b16 %v6179, %v6175
        %v6260 = vpack.c.b16 %v6180, %v6176
        %v6261 = vpack.c.b16 %v6181, %v6177
        %v6262 = vpack.c.b16 %v6186, %v6182
        %v6263 = vpack.c.b16 %v6187, %v6183
        %v6264 = vpack.c.b16 %v6188, %v6184
        %v6265 = vpack.c.b16 %v6189, %v6185
        %v6266 = vpack.c.b16 %v6194, %v6190
        %v6267 = vpack.c.b16 %v6195, %v6191
        %v6268 = vpack.c.b16 %v6196, %v6192
        %v6269 = vpack.c.b16 %v6197, %v6193
        %v6270 = vpack.c.b16 %v6202, %v6198
        %v6271 = vpack.c.b16 %v6203, %v6199
        %v6272 = vpack.c.b16 %v6204, %v6200
        %v6273 = vpack.c.b16 %v6205, %v6201
        %v6274 = vpack.c.b16 %v6210, %v6206
        %v6275 = vpack.c.b16 %v6211, %v6207
        %v6276 = vpack.c.b16 %v6212, %v6208
        %v6277 = vpack.c.b16 %v6213, %v6209
        %6342 = vmatprep.subr.bf16.mxu0 0
        %6343 = vmatpush1.bf16.msra.mxu0 %v5734
        %6344 = vmatprep.subr.bf16.mxu0 0
        %6345 = vmatpush1.bf16.msra.mxu0 %v5735
        %6346 = vmatprep.subr.bf16.mxu0 0
        %6347 = vmatpush1.bf16.msra.mxu0 %v5736
        %6348 = vmatprep.subr.bf16.mxu0 0
        %6349 = vmatpush1.bf16.msra.mxu0 %v5737
        %6350 = vmatprep.subr.bf16.mxu0 0
        %6351 = vmatpush1.bf16.msra.mxu0 %v5738
        %6352 = vmatprep.subr.bf16.mxu0 0
        %6353 = vmatpush1.bf16.msra.mxu0 %v5739
        %6354 = vmatprep.subr.bf16.mxu0 0
        %6355 = vmatpush1.bf16.msra.mxu0 %v5740
        %6356 = vmatprep.subr.bf16.mxu0 0
        %6357 = vmatpush1.bf16.msra.mxu0 %v5741
        %6358 = vmatprep.subr.bf16.mxu0 0
        %6359 = vmatpush1.bf16.msra.mxu0 %v5742
        %6360 = vmatprep.subr.bf16.mxu0 0
        %6361 = vmatpush1.bf16.msra.mxu0 %v5743
        %6362 = vmatprep.subr.bf16.mxu0 0
        %6363 = vmatpush1.bf16.msra.mxu0 %v5744
        %6364 = vmatprep.subr.bf16.mxu0 0
        %6365 = vmatpush1.bf16.msra.mxu0 %v5745
        %6366 = vmatprep.subr.bf16.mxu0 0
        %6367 = vmatpush1.bf16.msra.mxu0 %v5746
        %6368 = vmatprep.subr.bf16.mxu0 0
        %6369 = vmatpush1.bf16.msra.mxu0 %v5747
        %6370 = vmatprep.subr.bf16.mxu0 0
        %6371 = vmatpush1.bf16.msra.mxu0 %v5748
        %6372 = vmatprep.subr.bf16.mxu0 0
        %6373 = vmatpush1.bf16.msra.mxu0 %v5749
        %6374 = vmatprep.mubr.bf16.mxu0 %v6215
        %6375 = vmatmul.mubr.bf16.gmra.mrb[0].mxu0 %v6214
        %v6376 = vpop.f32.mrb[0].mxu0
        %v6377 = vadd.f32 %v5865, %v6376
        %v6378 = vpop.f32.mrb[0].mxu0
        %v6379 = vpop.f32.mrb[0].mxu0
        %v6380 = vadd.f32 %v5870, %v6379
        %v6381 = vpop.f32.mrb[0].mxu0
        %6382 = vmatprep.mubr.bf16.mxu0 %v6219
        %6383 = vmatmul.mubr.bf16.gmra.mrb[0].mxu0 %v6218
        %v6384 = vpop.f32.mrb[0].mxu0
        %v6385 = vadd.f32 %v5875, %v6384
        %v6386 = vpop.f32.mrb[0].mxu0
        %v6387 = vpop.f32.mrb[0].mxu0
        %v6388 = vadd.f32 %v5880, %v6387
        %v6389 = vpop.f32.mrb[0].mxu0
        %6390 = vmatprep.mubr.bf16.mxu0 %v6223
        %6391 = vmatmul.mubr.bf16.gmra.mrb[0].mxu0 %v6222
        %v6392 = vpop.f32.mrb[0].mxu0
        %v6393 = vadd.f32 %v5885, %v6392
        %v6394 = vpop.f32.mrb[0].mxu0
        %v6395 = vpop.f32.mrb[0].mxu0
        %v6396 = vadd.f32 %v5890, %v6395
        %v6397 = vpop.f32.mrb[0].mxu0
        %6398 = vmatprep.mubr.bf16.mxu0 %v6227
        %6399 = vmatmul.mubr.bf16.gmra.mrb[0].mxu0 %v6226
        %v6400 = vpop.f32.mrb[0].mxu0
        %v6401 = vadd.f32 %v5895, %v6400
        %v6402 = vpop.f32.mrb[0].mxu0
        %v6403 = vpop.f32.mrb[0].mxu0
        %v6404 = vadd.f32 %v5900, %v6403
        %v6405 = vpop.f32.mrb[0].mxu0
        %6406 = vmatprep.mubr.bf16.mxu0 %v6231
        %6407 = vmatmul.mubr.bf16.gmra.mrb[0].mxu0 %v6230
        %v6408 = vpop.f32.mrb[0].mxu0
        %v6409 = vadd.f32 %v5905, %v6408
        %v6410 = vpop.f32.mrb[0].mxu0
        %v6411 = vpop.f32.mrb[0].mxu0
        %v6412 = vadd.f32 %v5910, %v6411
        %v6413 = vpop.f32.mrb[0].mxu0
        %6414 = vmatprep.mubr.bf16.mxu0 %v6235
        %6415 = vmatmul.mubr.bf16.gmra.mrb[0].mxu0 %v6234
        %v6416 = vpop.f32.mrb[0].mxu0
        %v6417 = vadd.f32 %v5915, %v6416
        %v6418 = vpop.f32.mrb[0].mxu0
        %v6419 = vpop.f32.mrb[0].mxu0
        %v6420 = vadd.f32 %v5920, %v6419
        %v6421 = vpop.f32.mrb[0].mxu0
        %6422 = vmatprep.mubr.bf16.mxu0 %v6239
        %6423 = vmatmul.mubr.bf16.gmra.mrb[0].mxu0 %v6238
        %v6424 = vpop.f32.mrb[0].mxu0
        %v6425 = vadd.f32 %v5925, %v6424
        %v6426 = vpop.f32.mrb[0].mxu0
        %v6427 = vpop.f32.mrb[0].mxu0
        %v6428 = vadd.f32 %v5930, %v6427
        %v6429 = vpop.f32.mrb[0].mxu0
        %6430 = vmatprep.mubr.bf16.mxu0 %v6243
        %6431 = vmatmul.mubr.bf16.gmra.mrb[0].mxu0 %v6242
        %v6432 = vpop.f32.mrb[0].mxu0
        %v6433 = vadd.f32 %v5935, %v6432
        %v6434 = vpop.f32.mrb[0].mxu0
        %v6435 = vpop.f32.mrb[0].mxu0
        %v6436 = vadd.f32 %v5940, %v6435
        %v6437 = vpop.f32.mrb[0].mxu0
        %6438 = vmatprep.mubr.bf16.mxu0 %v6247
        %6439 = vmatmul.mubr.bf16.gmra.mrb[0].mxu0 %v6246
        %v6440 = vpop.f32.mrb[0].mxu0
        %v6441 = vadd.f32 %v5945, %v6440
        %v6442 = vpop.f32.mrb[0].mxu0
        %v6443 = vpop.f32.mrb[0].mxu0
        %v6444 = vadd.f32 %v5950, %v6443
        %v6445 = vpop.f32.mrb[0].mxu0
        %6446 = vmatprep.mubr.bf16.mxu0 %v6251
        %6447 = vmatmul.mubr.bf16.gmra.mrb[0].mxu0 %v6250
        %v6448 = vpop.f32.mrb[0].mxu0
        %v6449 = vadd.f32 %v5955, %v6448
        %v6450 = vpop.f32.mrb[0].mxu0
        %v6451 = vpop.f32.mrb[0].mxu0
        %v6452 = vadd.f32 %v5960, %v6451
        %v6453 = vpop.f32.mrb[0].mxu0
        %6454 = vmatprep.mubr.bf16.mxu0 %v6255
        %6455 = vmatmul.mubr.bf16.gmra.mrb[0].mxu0 %v6254
        %v6456 = vpop.f32.mrb[0].mxu0
        %v6457 = vadd.f32 %v5965, %v6456
        %v6458 = vpop.f32.mrb[0].mxu0
        %v6459 = vpop.f32.mrb[0].mxu0
        %v6460 = vadd.f32 %v5970, %v6459
        %v6461 = vpop.f32.mrb[0].mxu0
        %6462 = vmatprep.mubr.bf16.mxu0 %v6259
        %6463 = vmatmul.mubr.bf16.gmra.mrb[0].mxu0 %v6258
        %v6464 = vpop.f32.mrb[0].mxu0
        %v6465 = vadd.f32 %v5975, %v6464
        %v6466 = vpop.f32.mrb[0].mxu0
        %v6467 = vpop.f32.mrb[0].mxu0
        %v6468 = vadd.f32 %v5980, %v6467
        %v6469 = vpop.f32.mrb[0].mxu0
        %6470 = vmatprep.mubr.bf16.mxu0 %v6263
        %6471 = vmatmul.mubr.bf16.gmra.mrb[0].mxu0 %v6262
        %v6472 = vpop.f32.mrb[0].mxu0
        %v6473 = vadd.f32 %v5985, %v6472
        %v6474 = vpop.f32.mrb[0].mxu0
        %v6475 = vpop.f32.mrb[0].mxu0
        %v6476 = vadd.f32 %v5990, %v6475
        %v6477 = vpop.f32.mrb[0].mxu0
        %6478 = vmatprep.mubr.bf16.mxu0 %v6267
        %6479 = vmatmul.mubr.bf16.gmra.mrb[0].mxu0 %v6266
        %v6480 = vpop.f32.mrb[0].mxu0
        %v6481 = vadd.f32 %v5995, %v6480
        %v6482 = vpop.f32.mrb[0].mxu0
        %v6483 = vpop.f32.mrb[0].mxu0
        %v6484 = vadd.f32 %v6000, %v6483
        %v6485 = vpop.f32.mrb[0].mxu0
        %6486 = vmatprep.mubr.bf16.mxu0 %v6271
        %6487 = vmatmul.mubr.bf16.gmra.mrb[0].mxu0 %v6270
        %v6488 = vpop.f32.mrb[0].mxu0
        %v6489 = vadd.f32 %v6005, %v6488
        %v6490 = vpop.f32.mrb[0].mxu0
        %v6491 = vpop.f32.mrb[0].mxu0
        %v6492 = vadd.f32 %v6010, %v6491
        %v6493 = vpop.f32.mrb[0].mxu0
        %6494 = vmatprep.mubr.bf16.mxu0 %v6275
        %6495 = vmatmul.mubr.bf16.gmra.mrb[0].mxu0 %v6274
        %v6496 = vpop.f32.mrb[0].mxu0
        %v6497 = vadd.f32 %v6015, %v6496
        %v6498 = vpop.f32.mrb[0].mxu0
        %v6499 = vpop.f32.mrb[0].mxu0
        %v6500 = vadd.f32 %v6020, %v6499
        %v6501 = vpop.f32.mrb[0].mxu0
        %6502 = vdwg.mxu0
        %6503 = vmatprep.subr.bf16.mxu0 0
        %6504 = vmatpush1.bf16.msra.mxu0 %v5750
        %6505 = vmatprep.subr.bf16.mxu0 0
        %6506 = vmatpush1.bf16.msra.mxu0 %v5751
        %6507 = vmatprep.subr.bf16.mxu0 0
        %6508 = vmatpush1.bf16.msra.mxu0 %v5752
        %6509 = vmatprep.subr.bf16.mxu0 0
        %6510 = vmatpush1.bf16.msra.mxu0 %v5753
        %6511 = vmatprep.subr.bf16.mxu0 0
        %6512 = vmatpush1.bf16.msra.mxu0 %v5754
        %6513 = vmatprep.subr.bf16.mxu0 0
        %6514 = vmatpush1.bf16.msra.mxu0 %v5755
        %6515 = vmatprep.subr.bf16.mxu0 0
        %6516 = vmatpush1.bf16.msra.mxu0 %v5756
        %6517 = vmatprep.subr.bf16.mxu0 0
        %6518 = vmatpush1.bf16.msra.mxu0 %v5757
        %6519 = vmatprep.subr.bf16.mxu0 0
        %6520 = vmatpush1.bf16.msra.mxu0 %v5758
        %6521 = vmatprep.subr.bf16.mxu0 0
        %6522 = vmatpush1.bf16.msra.mxu0 %v5759
        %6523 = vmatprep.subr.bf16.mxu0 0
        %6524 = vmatpush1.bf16.msra.mxu0 %v5760
        %6525 = vmatprep.subr.bf16.mxu0 0
        %6526 = vmatpush1.bf16.msra.mxu0 %v5761
        %6527 = vmatprep.subr.bf16.mxu0 0
        %6528 = vmatpush1.bf16.msra.mxu0 %v5762
        %6529 = vmatprep.subr.bf16.mxu0 0
        %6530 = vmatpush1.bf16.msra.mxu0 %v5763
        %6531 = vmatprep.subr.bf16.mxu0 0
        %6532 = vmatpush1.bf16.msra.mxu0 %v5764
        %6533 = vmatprep.subr.bf16.mxu0 0
        %6534 = vmatpush1.bf16.msra.mxu0 %v5765
        %6535 = vmatprep.mubr.bf16.mxu0 %v6217
        %6536 = vmatmul.mubr.bf16.gmra.mrb[0].mxu0 %v6216
        %v6537 = vpop.f32.mrb[0].mxu0
        %v6538 = vadd.f32 %v6377, %v6537
        %v6539 = vpop.f32.mrb[0].mxu0
        %v6540 = vpop.f32.mrb[0].mxu0
        %v6541 = vadd.f32 %v6380, %v6540
        %v6542 = vpop.f32.mrb[0].mxu0
        %6543 = vmatprep.mubr.bf16.mxu0 %v6221
        %6544 = vmatmul.mubr.bf16.gmra.mrb[0].mxu0 %v6220
        %v6545 = vpop.f32.mrb[0].mxu0
        %v6546 = vadd.f32 %v6385, %v6545
        %v6547 = vpop.f32.mrb[0].mxu0
        %v6548 = vpop.f32.mrb[0].mxu0
        %v6549 = vadd.f32 %v6388, %v6548
        %v6550 = vpop.f32.mrb[0].mxu0
        %6551 = vmatprep.mubr.bf16.mxu0 %v6225
        %6552 = vmatmul.mubr.bf16.gmra.mrb[0].mxu0 %v6224
        %v6553 = vpop.f32.mrb[0].mxu0
        %v6554 = vadd.f32 %v6393, %v6553
        %v6555 = vpop.f32.mrb[0].mxu0
        %v6556 = vpop.f32.mrb[0].mxu0
        %v6557 = vadd.f32 %v6396, %v6556
        %v6558 = vpop.f32.mrb[0].mxu0
        %6559 = vmatprep.mubr.bf16.mxu0 %v6229
        %6560 = vmatmul.mubr.bf16.gmra.mrb[0].mxu0 %v6228
        %v6561 = vpop.f32.mrb[0].mxu0
        %v6562 = vadd.f32 %v6401, %v6561
        %v6563 = vpop.f32.mrb[0].mxu0
        %v6564 = vpop.f32.mrb[0].mxu0
        %v6565 = vadd.f32 %v6404, %v6564
        %v6566 = vpop.f32.mrb[0].mxu0
        %6567 = vmatprep.mubr.bf16.mxu0 %v6233
        %6568 = vmatmul.mubr.bf16.gmra.mrb[0].mxu0 %v6232
        %v6569 = vpop.f32.mrb[0].mxu0
        %v6570 = vadd.f32 %v6409, %v6569
        %v6571 = vpop.f32.mrb[0].mxu0
        %v6572 = vpop.f32.mrb[0].mxu0
        %v6573 = vadd.f32 %v6412, %v6572
        %v6574 = vpop.f32.mrb[0].mxu0
        %6575 = vmatprep.mubr.bf16.mxu0 %v6237
        %6576 = vmatmul.mubr.bf16.gmra.mrb[0].mxu0 %v6236
        %v6577 = vpop.f32.mrb[0].mxu0
        %v6578 = vadd.f32 %v6417, %v6577
        %v6579 = vpop.f32.mrb[0].mxu0
        %v6580 = vpop.f32.mrb[0].mxu0
        %v6581 = vadd.f32 %v6420, %v6580
        %v6582 = vpop.f32.mrb[0].mxu0
        %6583 = vmatprep.mubr.bf16.mxu0 %v6241
        %6584 = vmatmul.mubr.bf16.gmra.mrb[0].mxu0 %v6240
        %v6585 = vpop.f32.mrb[0].mxu0
        %v6586 = vadd.f32 %v6425, %v6585
        %v6587 = vpop.f32.mrb[0].mxu0
        %v6588 = vpop.f32.mrb[0].mxu0
        %v6589 = vadd.f32 %v6428, %v6588
        %v6590 = vpop.f32.mrb[0].mxu0
        %6591 = vmatprep.mubr.bf16.mxu0 %v6245
        %6592 = vmatmul.mubr.bf16.gmra.mrb[0].mxu0 %v6244
        %v6593 = vpop.f32.mrb[0].mxu0
        %v6594 = vadd.f32 %v6433, %v6593
        %v6595 = vpop.f32.mrb[0].mxu0
        %v6596 = vpop.f32.mrb[0].mxu0
        %v6597 = vadd.f32 %v6436, %v6596
        %v6598 = vpop.f32.mrb[0].mxu0
        %6599 = vmatprep.mubr.bf16.mxu0 %v6249
        %6600 = vmatmul.mubr.bf16.gmra.mrb[0].mxu0 %v6248
        %v6601 = vpop.f32.mrb[0].mxu0
        %v6602 = vadd.f32 %v6441, %v6601
        %v6603 = vpop.f32.mrb[0].mxu0
        %v6604 = vpop.f32.mrb[0].mxu0
        %v6605 = vadd.f32 %v6444, %v6604
        %v6606 = vpop.f32.mrb[0].mxu0
        %6607 = vmatprep.mubr.bf16.mxu0 %v6253
        %6608 = vmatmul.mubr.bf16.gmra.mrb[0].mxu0 %v6252
        %v6609 = vpop.f32.mrb[0].mxu0
        %v6610 = vadd.f32 %v6449, %v6609
        %v6611 = vpop.f32.mrb[0].mxu0
        %v6612 = vpop.f32.mrb[0].mxu0
        %v6613 = vadd.f32 %v6452, %v6612
        %v6614 = vpop.f32.mrb[0].mxu0
        %6615 = vmatprep.mubr.bf16.mxu0 %v6257
        %6616 = vmatmul.mubr.bf16.gmra.mrb[0].mxu0 %v6256
        %v6617 = vpop.f32.mrb[0].mxu0
        %v6618 = vadd.f32 %v6457, %v6617
        %v6619 = vpop.f32.mrb[0].mxu0
        %v6620 = vpop.f32.mrb[0].mxu0
        %v6621 = vadd.f32 %v6460, %v6620
        %v6622 = vpop.f32.mrb[0].mxu0
        %6623 = vmatprep.mubr.bf16.mxu0 %v6261
        %6624 = vmatmul.mubr.bf16.gmra.mrb[0].mxu0 %v6260
        %v6625 = vpop.f32.mrb[0].mxu0
        %v6626 = vadd.f32 %v6465, %v6625
        %v6627 = vpop.f32.mrb[0].mxu0
        %v6628 = vpop.f32.mrb[0].mxu0
        %v6629 = vadd.f32 %v6468, %v6628
        %v6630 = vpop.f32.mrb[0].mxu0
        %6631 = vmatprep.mubr.bf16.mxu0 %v6265
        %6632 = vmatmul.mubr.bf16.gmra.mrb[0].mxu0 %v6264
        %v6633 = vpop.f32.mrb[0].mxu0
        %v6634 = vadd.f32 %v6473, %v6633
        %v6635 = vpop.f32.mrb[0].mxu0
        %v6636 = vpop.f32.mrb[0].mxu0
        %v6637 = vadd.f32 %v6476, %v6636
        %v6638 = vpop.f32.mrb[0].mxu0
        %6639 = vmatprep.mubr.bf16.mxu0 %v6269
        %6640 = vmatmul.mubr.bf16.gmra.mrb[0].mxu0 %v6268
        %v6641 = vpop.f32.mrb[0].mxu0
        %v6642 = vadd.f32 %v6481, %v6641
        %v6643 = vpop.f32.mrb[0].mxu0
        %v6644 = vpop.f32.mrb[0].mxu0
        %v6645 = vadd.f32 %v6484, %v6644
        %v6646 = vpop.f32.mrb[0].mxu0
        %6647 = vmatprep.mubr.bf16.mxu0 %v6273
        %6648 = vmatmul.mubr.bf16.gmra.mrb[0].mxu0 %v6272
        %v6649 = vpop.f32.mrb[0].mxu0
        %v6650 = vadd.f32 %v6489, %v6649
        %v6651 = vpop.f32.mrb[0].mxu0
        %v6652 = vpop.f32.mrb[0].mxu0
        %v6653 = vadd.f32 %v6492, %v6652
        %v6654 = vpop.f32.mrb[0].mxu0
        %6655 = vmatprep.mubr.bf16.mxu0 %v6277
        %6656 = vmatmul.mubr.bf16.gmra.mrb[0].mxu0 %v6276
        %v6657 = vpop.f32.mrb[0].mxu0
        %v6658 = vadd.f32 %v6497, %v6657
        %v6659 = vpop.f32.mrb[0].mxu0
        %v6660 = vpop.f32.mrb[0].mxu0
        %v6661 = vadd.f32 %v6500, %v6660
        %v6662 = vpop.f32.mrb[0].mxu0
        %6663 = vdwg.mxu0
        %v6664 = vmax.f32 %v6538, 0.0
        %v6665 = vmax.f32 %v6541, 0.0
        %v6666 = vmax.f32 %v6546, 0.0
        %v6667 = vmax.f32 %v6549, 0.0
        %v6668 = vmax.f32 %v6554, 0.0
        %v6669 = vmax.f32 %v6557, 0.0
        %v6670 = vmax.f32 %v6562, 0.0
        %v6671 = vmax.f32 %v6565, 0.0
        %v6672 = vmax.f32 %v6570, 0.0
        %v6673 = vmax.f32 %v6573, 0.0
        %v6674 = vmax.f32 %v6578, 0.0
        %v6675 = vmax.f32 %v6581, 0.0
        %v6676 = vmax.f32 %v6586, 0.0
        %v6677 = vmax.f32 %v6589, 0.0
        %v6678 = vmax.f32 %v6594, 0.0
        %v6679 = vmax.f32 %v6597, 0.0
        %v6680 = vmax.f32 %v6602, 0.0
        %v6681 = vmax.f32 %v6605, 0.0
        %v6682 = vmax.f32 %v6610, 0.0
        %v6683 = vmax.f32 %v6613, 0.0
        %v6684 = vmax.f32 %v6618, 0.0
        %v6685 = vmax.f32 %v6621, 0.0
        %v6686 = vmax.f32 %v6626, 0.0
        %v6687 = vmax.f32 %v6629, 0.0
        %v6688 = vmax.f32 %v6634, 0.0
        %v6689 = vmax.f32 %v6637, 0.0
        %v6690 = vmax.f32 %v6642, 0.0
        %v6691 = vmax.f32 %v6645, 0.0
        %v6692 = vmax.f32 %v6650, 0.0
        %v6693 = vmax.f32 %v6653, 0.0
        %v6694 = vmax.f32 %v6658, 0.0
        %v6695 = vmax.f32 %v6661, 0.0
        %v6696 = vpack.c.bf16 %v6665, %v6664
        %v6697 = vpack.c.bf16 %v6667, %v6666
        %v6698 = vpack.c.bf16 %v6669, %v6668
        %v6699 = vpack.c.bf16 %v6671, %v6670
        %v6700 = vpack.c.bf16 %v6673, %v6672
        %v6701 = vpack.c.bf16 %v6675, %v6674
        %v6702 = vpack.c.bf16 %v6677, %v6676
        %v6703 = vpack.c.bf16 %v6679, %v6678
        %v6704 = vpack.c.bf16 %v6681, %v6680
        %v6705 = vpack.c.bf16 %v6683, %v6682
        %v6706 = vpack.c.bf16 %v6685, %v6684
        %v6707 = vpack.c.bf16 %v6687, %v6686
        %v6708 = vpack.c.bf16 %v6689, %v6688
        %v6709 = vpack.c.bf16 %v6691, %v6690
        %v6710 = vpack.c.bf16 %v6693, %v6692
        %v6711 = vpack.c.bf16 %v6695, %v6694
        %v6712 = vld [vmem:[%s7] sm:$0xff]
        %v6713 = vld [vmem:[%s7 + $0x8] sm:$0xff]
        %v6714 = vld [vmem:[%s7 + $0x10] sm:$0xff]
        %v6715 = vld [vmem:[%s7 + $0x18] sm:$0xff]
        %v6716 = vld [vmem:[%s7 + $0x20] sm:$0xff]
        %v6717 = vld [vmem:[%s7 + $0x28] sm:$0xff]
        %v6718 = vld [vmem:[%s7 + $0x30] sm:$0xff]
        %v6719 = vld [vmem:[%s7 + $0x38] sm:$0xff]
        %v6720 = vld [vmem:[%s7 + $0x40] sm:$0xff]
        %v6721 = vld [vmem:[%s7 + $0x48] sm:$0xff]
        %v6722 = vld [vmem:[%s7 + $0x50] sm:$0xff]
        %v6723 = vld [vmem:[%s7 + $0x58] sm:$0xff]
        %v6724 = vld [vmem:[%s7 + $0x60] sm:$0xff]
        %v6725 = vld [vmem:[%s7 + $0x68] sm:$0xff]
        %v6726 = vld [vmem:[%s7 + $0x70] sm:$0xff]
        %v6727 = vld [vmem:[%s7 + $0x78] sm:$0xff]
        %v6728 = vld [vmem:[%s8] sm:$0xff]
        %v6729 = vld [vmem:[%s8 + $0x8] sm:$0xff]
        %v6730 = vld [vmem:[%s8 + $0x10] sm:$0xff]
        %v6731 = vld [vmem:[%s8 + $0x18] sm:$0xff]
        %v6732 = vld [vmem:[%s8 + $0x20] sm:$0xff]
        %v6733 = vld [vmem:[%s8 + $0x28] sm:$0xff]
        %v6734 = vld [vmem:[%s8 + $0x30] sm:$0xff]
        %v6735 = vld [vmem:[%s8 + $0x38] sm:$0xff]
        %v6736 = vld [vmem:[%s8 + $0x40] sm:$0xff]
        %v6737 = vld [vmem:[%s8 + $0x48] sm:$0xff]
        %v6738 = vld [vmem:[%s8 + $0x50] sm:$0xff]
        %v6739 = vld [vmem:[%s8 + $0x58] sm:$0xff]
        %v6740 = vld [vmem:[%s8 + $0x60] sm:$0xff]
        %v6741 = vld [vmem:[%s8 + $0x68] sm:$0xff]
        %v6742 = vld [vmem:[%s8 + $0x70] sm:$0xff]
        %v6743 = vld [vmem:[%s8 + $0x78] sm:$0xff]
        %6745 = vset.pattern.permute.xlu0 0
        %6746 = vperm.xlu0 %6745, %v6728
        %v6747 = vpop.permute.xlu0 %6746
        %6750 = vset.pattern.permute.xlu0 0
        %6751 = vperm.xlu0 %6750, %v6729
        %v6752 = vpop.permute.xlu0 %6751
        %6755 = vset.pattern.permute.xlu0 0
        %6756 = vperm.xlu0 %6755, %v6730
        %v6757 = vpop.permute.xlu0 %6756
        %6760 = vset.pattern.permute.xlu0 0
        %6761 = vperm.xlu0 %6760, %v6731
        %v6762 = vpop.permute.xlu0 %6761
        %6765 = vset.pattern.permute.xlu0 0
        %6766 = vperm.xlu0 %6765, %v6732
        %v6767 = vpop.permute.xlu0 %6766
        %6770 = vset.pattern.permute.xlu0 0
        %6771 = vperm.xlu0 %6770, %v6733
        %v6772 = vpop.permute.xlu0 %6771
        %6775 = vset.pattern.permute.xlu0 0
        %6776 = vperm.xlu0 %6775, %v6734
        %v6777 = vpop.permute.xlu0 %6776
        %6780 = vset.pattern.permute.xlu0 0
        %6781 = vperm.xlu0 %6780, %v6735
        %v6782 = vpop.permute.xlu0 %6781
        %6785 = vset.pattern.permute.xlu0 0
        %6786 = vperm.xlu0 %6785, %v6736
        %v6787 = vpop.permute.xlu0 %6786
        %6790 = vset.pattern.permute.xlu0 0
        %6791 = vperm.xlu0 %6790, %v6737
        %v6792 = vpop.permute.xlu0 %6791
        %6795 = vset.pattern.permute.xlu0 0
        %6796 = vperm.xlu0 %6795, %v6738
        %v6797 = vpop.permute.xlu0 %6796
        %6800 = vset.pattern.permute.xlu0 0
        %6801 = vperm.xlu0 %6800, %v6739
        %v6802 = vpop.permute.xlu0 %6801
        %6805 = vset.pattern.permute.xlu0 0
        %6806 = vperm.xlu0 %6805, %v6740
        %v6807 = vpop.permute.xlu0 %6806
        %6810 = vset.pattern.permute.xlu0 0
        %6811 = vperm.xlu0 %6810, %v6741
        %v6812 = vpop.permute.xlu0 %6811
        %6815 = vset.pattern.permute.xlu0 0
        %6816 = vperm.xlu0 %6815, %v6742
        %v6817 = vpop.permute.xlu0 %6816
        %6820 = vset.pattern.permute.xlu0 0
        %6821 = vperm.xlu0 %6820, %v6743
        %v6822 = vpop.permute.xlu0 %6821
        %v6840 = vunpack.c.l.b16 %v6712
        %v6841 = vunpack.c.h.b16 %v6712
        %v6842 = vunpack.c.l.b16 %v6713
        %v6843 = vunpack.c.h.b16 %v6713
        %v6844 = vunpack.c.l.b16 %v6714
        %v6845 = vunpack.c.h.b16 %v6714
        %v6846 = vunpack.c.l.b16 %v6715
        %v6847 = vunpack.c.h.b16 %v6715
        %v6848 = vunpack.c.l.b16 %v6716
        %v6849 = vunpack.c.h.b16 %v6716
        %v6850 = vunpack.c.l.b16 %v6717
        %v6851 = vunpack.c.h.b16 %v6717
        %v6852 = vunpack.c.l.b16 %v6718
        %v6853 = vunpack.c.h.b16 %v6718
        %v6854 = vunpack.c.l.b16 %v6719
        %v6855 = vunpack.c.h.b16 %v6719
        %v6856 = vunpack.c.l.b16 %v6720
        %v6857 = vunpack.c.h.b16 %v6720
        %v6858 = vunpack.c.l.b16 %v6721
        %v6859 = vunpack.c.h.b16 %v6721
        %v6860 = vunpack.c.l.b16 %v6722
        %v6861 = vunpack.c.h.b16 %v6722
        %v6862 = vunpack.c.l.b16 %v6723
        %v6863 = vunpack.c.h.b16 %v6723
        %v6864 = vunpack.c.l.b16 %v6724
        %v6865 = vunpack.c.h.b16 %v6724
        %v6866 = vunpack.c.l.b16 %v6725
        %v6867 = vunpack.c.h.b16 %v6725
        %v6868 = vunpack.c.l.b16 %v6726
        %v6869 = vunpack.c.h.b16 %v6726
        %v6870 = vunpack.c.l.b16 %v6727
        %v6871 = vunpack.c.h.b16 %v6727
        %v6872 = vpack.c.b16 %v6842, %v6840
        %v6873 = vpack.c.b16 %v6843, %v6841
        %v6874 = vpack.c.b16 %v6846, %v6844
        %v6875 = vpack.c.b16 %v6847, %v6845
        %v6876 = vpack.c.b16 %v6850, %v6848
        %v6877 = vpack.c.b16 %v6851, %v6849
        %v6878 = vpack.c.b16 %v6854, %v6852
        %v6879 = vpack.c.b16 %v6855, %v6853
        %v6880 = vpack.c.b16 %v6858, %v6856
        %v6881 = vpack.c.b16 %v6859, %v6857
        %v6882 = vpack.c.b16 %v6862, %v6860
        %v6883 = vpack.c.b16 %v6863, %v6861
        %v6884 = vpack.c.b16 %v6866, %v6864
        %v6885 = vpack.c.b16 %v6867, %v6865
        %v6886 = vpack.c.b16 %v6870, %v6868
        %v6887 = vpack.c.b16 %v6871, %v6869
        %6904 = vmatprep.subr.bf16.mxu0 0
        %6905 = vmatpush1.bf16.msra.mxu0 %v6696
        %6906 = vmatprep.subr.bf16.mxu0 0
        %6907 = vmatpush1.bf16.msra.mxu0 %v6697
        %6908 = vmatprep.subr.bf16.mxu0 0
        %6909 = vmatpush1.bf16.msra.mxu0 %v6698
        %6910 = vmatprep.subr.bf16.mxu0 0
        %6911 = vmatpush1.bf16.msra.mxu0 %v6699
        %6912 = vmatprep.subr.bf16.mxu0 0
        %6913 = vmatpush1.bf16.msra.mxu0 %v6700
        %6914 = vmatprep.subr.bf16.mxu0 0
        %6915 = vmatpush1.bf16.msra.mxu0 %v6701
        %6916 = vmatprep.subr.bf16.mxu0 0
        %6917 = vmatpush1.bf16.msra.mxu0 %v6702
        %6918 = vmatprep.subr.bf16.mxu0 0
        %6919 = vmatpush1.bf16.msra.mxu0 %v6703
        %6920 = vmatprep.subr.bf16.mxu0 0
        %6921 = vmatpush1.bf16.msra.mxu0 %v6704
        %6922 = vmatprep.subr.bf16.mxu0 0
        %6923 = vmatpush1.bf16.msra.mxu0 %v6705
        %6924 = vmatprep.subr.bf16.mxu0 0
        %6925 = vmatpush1.bf16.msra.mxu0 %v6706
        %6926 = vmatprep.subr.bf16.mxu0 0
        %6927 = vmatpush1.bf16.msra.mxu0 %v6707
        %6928 = vmatprep.subr.bf16.mxu0 0
        %6929 = vmatpush1.bf16.msra.mxu0 %v6708
        %6930 = vmatprep.subr.bf16.mxu0 0
        %6931 = vmatpush1.bf16.msra.mxu0 %v6709
        %6932 = vmatprep.subr.bf16.mxu0 0
        %6933 = vmatpush1.bf16.msra.mxu0 %v6710
        %6934 = vmatprep.subr.bf16.mxu0 0
        %6935 = vmatpush1.bf16.msra.mxu0 %v6711
        %6936 = vmatprep.mubr.bf16.mxu0 %v6873
        %6937 = vmatmul.mubr.bf16.gmra.mrb[0].mxu0 %v6872
        %v6938 = vpop.f32.mrb[0].mxu0
        %v6939 = vadd.f32 %v6747, %v6938
        %v6940 = vpop.f32.mrb[0].mxu0
        %v6941 = vpop.f32.mrb[0].mxu0
        %v6942 = vadd.f32 %v6752, %v6941
        %v6943 = vpop.f32.mrb[0].mxu0
        %6944 = vmatprep.mubr.bf16.mxu0 %v6875
        %6945 = vmatmul.mubr.bf16.gmra.mrb[0].mxu0 %v6874
        %v6946 = vpop.f32.mrb[0].mxu0
        %v6947 = vadd.f32 %v6757, %v6946
        %v6948 = vpop.f32.mrb[0].mxu0
        %v6949 = vpop.f32.mrb[0].mxu0
        %v6950 = vadd.f32 %v6762, %v6949
        %v6951 = vpop.f32.mrb[0].mxu0
        %6952 = vmatprep.mubr.bf16.mxu0 %v6877
        %6953 = vmatmul.mubr.bf16.gmra.mrb[0].mxu0 %v6876
        %v6954 = vpop.f32.mrb[0].mxu0
        %v6955 = vadd.f32 %v6767, %v6954
        %v6956 = vpop.f32.mrb[0].mxu0
        %v6957 = vpop.f32.mrb[0].mxu0
        %v6958 = vadd.f32 %v6772, %v6957
        %v6959 = vpop.f32.mrb[0].mxu0
        %6960 = vmatprep.mubr.bf16.mxu0 %v6879
        %6961 = vmatmul.mubr.bf16.gmra.mrb[0].mxu0 %v6878
        %v6962 = vpop.f32.mrb[0].mxu0
        %v6963 = vadd.f32 %v6777, %v6962
        %v6964 = vpop.f32.mrb[0].mxu0
        %v6965 = vpop.f32.mrb[0].mxu0
        %v6966 = vadd.f32 %v6782, %v6965
        %v6967 = vpop.f32.mrb[0].mxu0
        %6968 = vmatprep.mubr.bf16.mxu0 %v6881
        %6969 = vmatmul.mubr.bf16.gmra.mrb[0].mxu0 %v6880
        %v6970 = vpop.f32.mrb[0].mxu0
        %v6971 = vadd.f32 %v6787, %v6970
        %v6972 = vpop.f32.mrb[0].mxu0
        %v6973 = vpop.f32.mrb[0].mxu0
        %v6974 = vadd.f32 %v6792, %v6973
        %v6975 = vpop.f32.mrb[0].mxu0
        %6976 = vmatprep.mubr.bf16.mxu0 %v6883
        %6977 = vmatmul.mubr.bf16.gmra.mrb[0].mxu0 %v6882
        %v6978 = vpop.f32.mrb[0].mxu0
        %v6979 = vadd.f32 %v6797, %v6978
        %v6980 = vpop.f32.mrb[0].mxu0
        %v6981 = vpop.f32.mrb[0].mxu0
        %v6982 = vadd.f32 %v6802, %v6981
        %v6983 = vpop.f32.mrb[0].mxu0
        %6984 = vmatprep.mubr.bf16.mxu0 %v6885
        %6985 = vmatmul.mubr.bf16.gmra.mrb[0].mxu0 %v6884
        %v6986 = vpop.f32.mrb[0].mxu0
        %v6987 = vadd.f32 %v6807, %v6986
        %v6988 = vpop.f32.mrb[0].mxu0
        %v6989 = vpop.f32.mrb[0].mxu0
        %v6990 = vadd.f32 %v6812, %v6989
        %v6991 = vpop.f32.mrb[0].mxu0
        %6992 = vmatprep.mubr.bf16.mxu0 %v6887
        %6993 = vmatmul.mubr.bf16.gmra.mrb[0].mxu0 %v6886
        %v6994 = vpop.f32.mrb[0].mxu0
        %v6995 = vadd.f32 %v6817, %v6994
        %v6996 = vpop.f32.mrb[0].mxu0
        %v6997 = vpop.f32.mrb[0].mxu0
        %v6998 = vadd.f32 %v6822, %v6997
        %v6999 = vpop.f32.mrb[0].mxu0
        %7000 = vdwg.mxu0
        %v7001 = vmax.f32 %v6939, 0.0
        %v7002 = vmax.f32 %v6942, 0.0
        %v7003 = vmax.f32 %v6947, 0.0
        %v7004 = vmax.f32 %v6950, 0.0
        %v7005 = vmax.f32 %v6955, 0.0
        %v7006 = vmax.f32 %v6958, 0.0
        %v7007 = vmax.f32 %v6963, 0.0
        %v7008 = vmax.f32 %v6966, 0.0
        %v7009 = vmax.f32 %v6971, 0.0
        %v7010 = vmax.f32 %v6974, 0.0
        %v7011 = vmax.f32 %v6979, 0.0
        %v7012 = vmax.f32 %v6982, 0.0
        %v7013 = vmax.f32 %v6987, 0.0
        %v7014 = vmax.f32 %v6990, 0.0
        %v7015 = vmax.f32 %v6995, 0.0
        %v7016 = vmax.f32 %v6998, 0.0
        %v7017 = vpack.c.bf16 %v7002, %v7001
        %v7018 = vpack.c.bf16 %v7004, %v7003
        %v7019 = vpack.c.bf16 %v7006, %v7005
        %v7020 = vpack.c.bf16 %v7008, %v7007
        %v7021 = vpack.c.bf16 %v7010, %v7009
        %v7022 = vpack.c.bf16 %v7012, %v7011
        %v7023 = vpack.c.bf16 %v7014, %v7013
        %v7024 = vpack.c.bf16 %v7016, %v7015
        %v7025 = vld [vmem:[%s9] sm:$0x1]
        %v7026 = vld [vmem:[#allocation2] sm:$0x1]
        %7028 = vset.pattern.permute.xlu0 0
        %7029 = vperm.xlu0 %7028, %v7026
        %v7030 = vpop.permute.xlu0 %7029
        %v7032 = vlaneseq
        %v7033 = vshrl.u32 %v7032, 7
        %v7034 = vsub.s32 0, %v7033
        %v7035 = vrot.slane %v7030, %v7034
        %7036 = vmatprep.subr.bf16.mxu0 0
        %7037 = vmatpush1.bf16.msra.mxu0 %v7017
        %7038 = vmatprep.subr.bf16.mxu0 0
        %7039 = vmatpush1.bf16.msra.mxu0 %v7018
        %7040 = vmatprep.subr.bf16.mxu0 0
        %7041 = vmatpush1.bf16.msra.mxu0 %v7019
        %7042 = vmatprep.subr.bf16.mxu0 0
        %7043 = vmatpush1.bf16.msra.mxu0 %v7020
        %7044 = vmatprep.subr.bf16.mxu0 0
        %7045 = vmatpush1.bf16.msra.mxu0 %v7021
        %7046 = vmatprep.subr.bf16.mxu0 0
        %7047 = vmatpush1.bf16.msra.mxu0 %v7022
        %7048 = vmatprep.subr.bf16.mxu0 0
        %7049 = vmatpush1.bf16.msra.mxu0 %v7023
        %7050 = vmatprep.subr.bf16.mxu0 0
        %7051 = vmatpush1.bf16.msra.mxu0 %v7024
        %7052 = vmatprep.subr.bf16.mxu0 0
        %7053 = vmatpush1.bf16.msra.mxu0 0
        %7054 = vmatprep.subr.bf16.mxu0 0
        %7055 = vmatpush1.bf16.msra.mxu0 0
        %7056 = vmatprep.subr.bf16.mxu0 0
        %7057 = vmatpush1.bf16.msra.mxu0 0
        %7058 = vmatprep.subr.bf16.mxu0 0
        %7059 = vmatpush1.bf16.msra.mxu0 0
        %7060 = vmatprep.subr.bf16.mxu0 0
        %7061 = vmatpush1.bf16.msra.mxu0 0
        %7062 = vmatprep.subr.bf16.mxu0 0
        %7063 = vmatpush1.bf16.msra.mxu0 0
        %7064 = vmatprep.subr.bf16.mxu0 0
        %7065 = vmatpush1.bf16.msra.mxu0 0
        %7066 = vmatprep.subr.bf16.mxu0 0
        %7067 = vmatpush1.bf16.msra.mxu0 0
        %7068 = vmatprep.mubr.bf16.mxu0 0
        %7069 = vmatmul.mubr.bf16.gmra.mrb[0].mxu0 %v7025
        %v7070 = vpop.f32.mrb[0].mxu0
        %v7071 = vadd.f32 %v7035, %v7070
        %v7072 = vpop.f32.mrb[0].mxu0
        %v7073 = vpop.f32.mrb[0].mxu0
        %v7074 = vpop.f32.mrb[0].mxu0
        %7075 = vdwg.mxu0
        %vm7076 = vcmp.gt.f32.partialorder %v7071, 0.0
        %v7077 = vsel %vm7076, 1, 0
        %7078 = vst [vmem:[%s417] sm:$0x1] %v7077
        %s7079 = sand.u32 %s292, 1
        %s7080 = scalar_lea.sflag [#allocation4], %s7079
        %s7081 = sand.u32 %s292, 1
        %s7082 = scalar_lea.vmem [#allocation3], %s7081
        // Predicated region
        $region65: #{_forward_impl.1} parent=63 // pred_check
          %p7083 = pneg %p302
        $region66: #{_forward_impl.1} parent=63 // pred_check_branch
          %7085 = sbr.rel (%p7083) target = $region68
        $region67: #{_forward_impl.1} parent=63 // pred_region
          %s7087 = ssub.s32 16, 16
          %7088 = vsyncadd %s7080, %s7087
          %s7089 = sadd.s32 %s32, %s31
          %s7090 = smul.addr %s7089, 16
          %s7091 = scalar_lea.hbm %s11, %s7090
          %s7093 = sshll.u32 %s7082, 4
          %s7094 = int_to_ptr.vmem [resolvable:$true] %s7093
          %7096 = dma.vmem_to_hbm [thread:$0]  %s7094, 16, %s7091, %s7080
        $region68: #{_forward_impl.1} parent=63 // pred_fallthru
          _
      $region64: #{_forward_impl.1} parent=5 // pred_fallthru
        _
      %p7097 = scmp.le.s32.totalorder 2, %s22
      // Predicated region
      $region69: #{_forward_impl.1} parent=5 // pred_check
        %p7098 = pneg %p7097
      $region70: #{_forward_impl.1} parent=5 // pred_check_branch
        %7100 = sbr.rel (%p7098) target = $region72
      $region71: #{_forward_impl.1} parent=5 // pred_region
        %s7101 = ssub.s32 %s22, 2
        // Predicated region
        $region73: #{_forward_impl.1} parent=71 // pred_check
          %p7102 = pneg %p308
        $region74: #{_forward_impl.1} parent=71 // pred_check_branch
          %7104 = sbr.rel (%p7102) target = $region76
        $region75: #{_forward_impl.1} parent=71 // pred_region
          %s7105 = sand.u32 %s293, 1
          %s7106 = scalar_lea.sflag [#allocation4], %s7105
          %s7107 = sand.u32 %s293, 1
          %s7108 = scalar_lea.vmem [#allocation3], %s7107
          %7109 = dma.done %s7106, 16
        $region76: #{_forward_impl.1} parent=71 // pred_fallthru
          _
      $region72: #{_forward_impl.1} parent=5 // pred_fallthru
        _
    $region6: #{_forward_impl.1} parent=1 // loop_footer
      %s26 = sadd.s32 1, %s22
    $region7: #{_forward_impl.1} parent=1 // loop_footer_branch
      %21 = sbr.rel target = $region3
    $region8: #{_forward_impl.1} parent=1 // loop_exit
      _
    %7110 = vsyncpa [#allocation4], 1
    %s7111 = scalar_lea.sflag [#allocation4], 1
    %7112 = vsyncpa %s7111, 1

</llo_original>
